<compile_context>
chip_gen: v7x
topology: tpu7x:2x2x1
jax: 0.10.0
libtpu: 0.0.40
codegen_flags: <defaults>
</compile_context>

<pallas_src>
import functools

import jax
import jax.numpy as jnp
from jax import lax
from jax.experimental import pallas as pl
from jax.experimental.pallas import tpu as pltpu

DROP_P = 0.1
KEEP_SCALE = 1.0 / (1.0 - DROP_P)
# keep iff uniform-u32 bits >= DROP_P * 2^32  ->  P(keep) = 1 - DROP_P
_DROP_THRESHOLD_U32 = int(DROP_P * (2 ** 32))

# splitmix32 constants (signed int32 bit patterns) -- fallback RNG only.
_C1 = 0x7FEB352D                   # 2146156845
_C2 = 0x846CA68B - (1 << 32)       # -2073319797
_GOLDEN = 0x9E3779B9 - (1 << 32)   # -1640531527
_THRESH_S32 = _DROP_THRESHOLD_U32 - (1 << 31)


def _srl32(x, k):
    """Logical right shift for int32."""
    return (x >> k) & jnp.int32((1 << (32 - k)) - 1)


def _mix32(x):
    """splitmix32 finalizer on int32 (bit-exact with the uint32 formulation)."""
    x = x ^ _srl32(x, 16)
    x = x * jnp.int32(_C1)
    x = x ^ _srl32(x, 15)
    x = x * jnp.int32(_C2)
    x = x ^ _srl32(x, 16)
    return x


def _make_kernel(use_hw_rng, seq_len, q_tile):
    def kernel(seed_ref, bias_ref, scores_ref, v_ref, out_ref):
        G, TQ, S = scores_ref.shape  # G heads x TQ query rows per grid step

        # ---- bias add + numerically stable softmax numerator (f32) ---------
        x = scores_ref[...] + bias_ref[...]              # (G,TQ,S) + (1,S)
        m = jnp.max(x, axis=-1, keepdims=True)
        e = jnp.exp(x - m)                               # (G,TQ,S), in (0,1]
        denom = jnp.sum(e, axis=-1, keepdims=True)       # (G,TQ,1)
        # Fold dropout's 1/(1-p) into the per-row normalizer; it is applied
        # AFTER the matmul on the (G,TQ,D) output (6x fewer elements).
        inv = jnp.float32(KEEP_SCALE) / denom            # tiny, exact divide

        # ---- dropout keep mask ----------------------------------------------
        if use_hw_rng:
            # Distinct stream per (head-group, query-tile) grid step.
            pltpu.prng_seed(seed_ref[0], pl.program_id(0), pl.program_id(1))
            bits = pltpu.bitcast(pltpu.prng_random_bits((G, TQ, S)), jnp.uint32)
            keep = bits >= jnp.uint32(_DROP_THRESHOLD_U32)   # P(keep)=1-DROP_P
        else:
            # Fallback: stateless splitmix32 counter hash (interpret / non-TPU).
            # Per-row part hoisted to a (G,TQ,1) tensor; only the final mix runs
            # on the full (G,TQ,S) tensor.
            head0 = pl.program_id(0) * G
            row0 = pl.program_id(1) * q_tile
            g = lax.broadcasted_iota(jnp.int32, (G, TQ, 1), 0)
            r = lax.broadcasted_iota(jnp.int32, (G, TQ, 1), 1)
            c = lax.broadcasted_iota(jnp.int32, (1, 1, S), 2)
            base = seed_ref[0] + (((g + head0) * seq_len + (r + row0))
                                  * seq_len) * jnp.int32(_GOLDEN)
            bits = _mix32(base + c * jnp.int32(_GOLDEN))
            keep = bits >= jnp.int32(_THRESH_S32)            # P(keep)=1-DROP_P

        # Single (G,TQ,S) select; bf16 MXU operands, f32 accumulation.
        p = jnp.where(keep, e, jnp.float32(0.0)).astype(jnp.bfloat16)
        o = jnp.einsum(
            "gqk,gkd->gqd",
            p,
            v_ref[...].astype(jnp.bfloat16),
            preferred_element_type=jnp.float32,
        )                                               # (G,TQ,D) f32
        out_ref[...] = (o * inv).astype(out_ref.dtype)  # scale after matmul

    return kernel


@functools.partial(jax.jit, static_argnames=("use_hw_rng", "q_tile"))
def _add_softmax_dropout_matmul_impl(scores, bias, values, seed, use_hw_rng, q_tile):
    B, H, S, S2 = scores.shape
    assert S == S2
    D = values.shape[-1]
    BH = B * H
    G = 2 if BH % 2 == 0 else 1                      # heads per grid step
    TQ = q_tile if (S % q_tile == 0 and q_tile < S) else S

    scores2 = scores.reshape(BH, S, S)
    values2 = values.reshape(BH, S, D)
    bias2 = bias.reshape(1, S)
    seed_arr = jnp.reshape(jnp.asarray(seed, dtype=jnp.int32), (1,))

    kernel = _make_kernel(use_hw_rng, S, TQ)

    out = pl.pallas_call(
        kernel,
        out_shape=jax.ShapeDtypeStruct((BH, S, D), jnp.float32),
        grid_spec=pltpu.PrefetchScalarGridSpec(
            num_scalar_prefetch=1,
            grid=(BH // G, S // TQ),
            in_specs=[
                # bias row: constant across the grid
                pl.BlockSpec((1, S), lambda i, q, seed: (0, 0)),
                # G heads x TQ query rows of scores
                pl.BlockSpec((G, TQ, S), lambda i, q, seed: (i, q, 0)),
                # G heads of values; constant along q -> stays VMEM-resident
                pl.BlockSpec((G, S, D), lambda i, q, seed: (i, 0, 0)),
            ],
            out_specs=pl.BlockSpec((G, TQ, D), lambda i, q, seed: (i, q, 0)),
        ),
        compiler_params=pltpu.CompilerParams(
            # Head-group axis is independent -> shards across v7x's 2 TCs
            # (harmless on v5e/v6e); query axis is a plain pipelined loop.
            dimension_semantics=("parallel", "arbitrary"),
        ),
    )(seed_arr, bias2, scores2, values2)

    return out.reshape(B, H, S, D)


def add_softmax_dropout_matmul(scores, bias, values, seed=0, q_tile=128):
    """scores: [B,H,S,S] f32, bias: [1,1,1,S] f32, values: [B,H,S,D] f32."""
    use_hw_rng = jax.default_backend() == "tpu"
    return _add_softmax_dropout_matmul_impl(scores, bias, values, seed,
                                            use_hw_rng, q_tile)


if __name__ == "__main__":
    # Shapes from the module: scores [1,4,384,384], values [1,4,384,64],
    # bias [1,1,1,384].
    B, H, S, D = 1, 4, 384, 64

    key = jax.random.PRNGKey(0)
    k1, k2, k3 = jax.random.split(key, 3)
    x176 = jax.random.normal(k1, (B, H, S, S), dtype=jnp.float32)   # scores
    x168 = jax.random.normal(k2, (B, H, S, D), dtype=jnp.float32)   # values
    bias = jax.random.uniform(k3, (1, 1, 1, S), dtype=jnp.float32)  # constant

    out = add_softmax_dropout_matmul(x176, bias, x168, seed=0)
    jax.block_until_ready(out)
    assert out.shape == (B, H, S, D)
    assert out.dtype == jnp.float32
    assert bool(jnp.all(jnp.isfinite(out)))
    # TODO(synk): dropout mask stream comes from the TPU hardware PRNG, so it is
    # only statistically (not elementwise) equivalent to torch's Dropout RNG.
    print("KERNEL_OK")
</pallas_src>

<mosaic_0001>
module attributes {stable_mosaic.version = 11 : i64} {
  func.func @kernel(%arg0: i32, %arg1: i32, %arg2: memref<1xi32, #tpu.memory_space<smem>>, %arg3: memref<1x384xf32, #tpu.memory_space<vmem>>, %arg4: memref<2x128x384xf32, #tpu.memory_space<vmem>>, %arg5: memref<2x384x64xf32, #tpu.memory_space<vmem>>, %arg6: memref<2x128x64xf32, #tpu.memory_space<vmem>>) attributes {dimension_semantics = [#tpu.dimension_semantics<parallel>, #tpu.dimension_semantics<arbitrary>], iteration_bounds = array<i64: 2, 3>, scalar_prefetch = 1 : i64, scratch_operands = 0 : i64, tpu.core_type = #tpu.core_type<tc>, window_params = [{pipeline_mode = #tpu.pipeline_mode<synchronous>, transform_indices = @transform_0, window_bounds = array<i64: 1, 384>}, {transform_indices = @transform_1, window_bounds = array<i64: 2, 128, 384>}, {transform_indices = @transform_2, window_bounds = array<i64: 2, 384, 64>}, {transform_indices = @transform_3, window_bounds = array<i64: 2, 128, 64>}]} {
    %c0 = arith.constant 0 : index
    %c0_0 = arith.constant 0 : index
    %c0_1 = arith.constant 0 : index
    %0 = vector.load %arg4[%c0, %c0_0, %c0_1] : memref<2x128x384xf32, #tpu.memory_space<vmem>>, vector<2x128x384xf32>
    %c0_2 = arith.constant 0 : index
    %c0_3 = arith.constant 0 : index
    %1 = vector.load %arg3[%c0_2, %c0_3] : memref<1x384xf32, #tpu.memory_space<vmem>>, vector<1x384xf32>
    %2 = vector.shape_cast %1 : vector<1x384xf32> to vector<1x1x384xf32>
    %3 = vector.broadcast %2 : vector<1x1x384xf32> to vector<2x128x384xf32>
    %4 = arith.addf %0, %3 : vector<2x128x384xf32>
    %cst = arith.constant dense<0xFF800000> : vector<2x128xf32>
    %5 = vector.multi_reduction <maximumf>, %4, %cst [2] : vector<2x128x384xf32> to vector<2x128xf32>
    %6 = vector.shape_cast %5 : vector<2x128xf32> to vector<2x128x1xf32>
    %7 = vector.broadcast %6 : vector<2x128x1xf32> to vector<2x128x384xf32>
    %8 = arith.subf %4, %7 : vector<2x128x384xf32>
    %9 = math.exp %8 : vector<2x128x384xf32>
    %cst_4 = arith.constant dense<0.000000e+00> : vector<2x128xf32>
    %10 = vector.multi_reduction <add>, %9, %cst_4 [2] : vector<2x128x384xf32> to vector<2x128xf32>
    %11 = vector.shape_cast %10 : vector<2x128xf32> to vector<2x128x1xf32>
    %cst_5 = arith.constant 1.11111116 : f32
    %12 = vector.broadcast %cst_5 : f32 to vector<2x128x1xf32>
    %13 = arith.divf %12, %11 : vector<2x128x1xf32>
    %c2_i32 = arith.constant 2 : i32
    %14 = arith.muli %arg0, %c2_i32 : i32
    %c128_i32 = arith.constant 128 : i32
    %15 = arith.muli %arg1, %c128_i32 : i32
    %16 = tpu.iota {dimensions = array<i32: 0>} : vector<2x128x1xi32>
    %17 = tpu.iota {dimensions = array<i32: 1>} : vector<2x128x1xi32>
    %18 = tpu.iota {dimensions = array<i32: 2>} : vector<1x1x384xi32>
    %c0_6 = arith.constant 0 : index
    %19 = memref.load %arg2[%c0_6] : memref<1xi32, #tpu.memory_space<smem>>
    %20 = vector.broadcast %14 : i32 to vector<2x128x1xi32>
    %21 = arith.addi %16, %20 : vector<2x128x1xi32>
    %c384_i32 = arith.constant 384 : i32
    %22 = vector.broadcast %c384_i32 : i32 to vector<2x128x1xi32>
    %23 = arith.muli %21, %22 : vector<2x128x1xi32>
    %24 = vector.broadcast %15 : i32 to vector<2x128x1xi32>
    %25 = arith.addi %17, %24 : vector<2x128x1xi32>
    %26 = arith.addi %23, %25 : vector<2x128x1xi32>
    %c384_i32_7 = arith.constant 384 : i32
    %27 = vector.broadcast %c384_i32_7 : i32 to vector<2x128x1xi32>
    %28 = arith.muli %26, %27 : vector<2x128x1xi32>
    %c-1640531527_i32 = arith.constant -1640531527 : i32
    %29 = vector.broadcast %c-1640531527_i32 : i32 to vector<2x128x1xi32>
    %30 = arith.muli %28, %29 : vector<2x128x1xi32>
    %31 = vector.broadcast %19 : i32 to vector<2x128x1xi32>
    %32 = arith.addi %31, %30 : vector<2x128x1xi32>
    %c-1640531527_i32_8 = arith.constant -1640531527 : i32
    %33 = vector.broadcast %c-1640531527_i32_8 : i32 to vector<1x1x384xi32>
    %34 = arith.muli %18, %33 : vector<1x1x384xi32>
    %35 = vector.broadcast %32 : vector<2x128x1xi32> to vector<2x128x384xi32>
    %36 = vector.broadcast %34 : vector<1x1x384xi32> to vector<2x128x384xi32>
    %37 = arith.addi %35, %36 : vector<2x128x384xi32>
    %c16_i32 = arith.constant 16 : i32
    %38 = vector.broadcast %c16_i32 : i32 to vector<2x128x384xi32>
    %39 = arith.shrsi %37, %38 : vector<2x128x384xi32>
    %c65535_i32 = arith.constant 65535 : i32
    %40 = vector.broadcast %c65535_i32 : i32 to vector<2x128x384xi32>
    %41 = arith.andi %39, %40 : vector<2x128x384xi32>
    %42 = arith.xori %37, %41 : vector<2x128x384xi32>
    %c2146121005_i32 = arith.constant 2146121005 : i32
    %43 = vector.broadcast %c2146121005_i32 : i32 to vector<2x128x384xi32>
    %44 = arith.muli %42, %43 : vector<2x128x384xi32>
    %c15_i32 = arith.constant 15 : i32
    %45 = vector.broadcast %c15_i32 : i32 to vector<2x128x384xi32>
    %46 = arith.shrsi %44, %45 : vector<2x128x384xi32>
    %c131071_i32 = arith.constant 131071 : i32
    %47 = vector.broadcast %c131071_i32 : i32 to vector<2x128x384xi32>
    %48 = arith.andi %46, %47 : vector<2x128x384xi32>
    %49 = arith.xori %44, %48 : vector<2x128x384xi32>
    %c-2073254261_i32 = arith.constant -2073254261 : i32
    %50 = vector.broadcast %c-2073254261_i32 : i32 to vector<2x128x384xi32>
    %51 = arith.muli %49, %50 : vector<2x128x384xi32>
    %c16_i32_9 = arith.constant 16 : i32
    %52 = vector.broadcast %c16_i32_9 : i32 to vector<2x128x384xi32>
    %53 = arith.shrsi %51, %52 : vector<2x128x384xi32>
    %c65535_i32_10 = arith.constant 65535 : i32
    %54 = vector.broadcast %c65535_i32_10 : i32 to vector<2x128x384xi32>
    %55 = arith.andi %53, %54 : vector<2x128x384xi32>
    %56 = arith.xori %51, %55 : vector<2x128x384xi32>
    %c-1717986919_i32 = arith.constant -1717986919 : i32
    %57 = vector.broadcast %c-1717986919_i32 : i32 to vector<2x128x384xi32>
    %58 = arith.cmpi sge, %56, %57 : vector<2x128x384xi32>
    %cst_11 = arith.constant 0.000000e+00 : f32
    %59 = vector.broadcast %cst_11 : f32 to vector<2x128x384xf32>
    %60 = arith.select %58, %9, %59 : vector<2x128x384xi1>, vector<2x128x384xf32>
    %61 = arith.truncf %60 : vector<2x128x384xf32> to vector<2x128x384xbf16>
    %c0_12 = arith.constant 0 : index
    %c0_13 = arith.constant 0 : index
    %c0_14 = arith.constant 0 : index
    %62 = vector.load %arg5[%c0_12, %c0_13, %c0_14] : memref<2x384x64xf32, #tpu.memory_space<vmem>>, vector<2x384x64xf32>
    %63 = arith.truncf %62 : vector<2x384x64xf32> to vector<2x384x64xbf16>
    "tpu.trace_start"() <{level = 10 : i32, message = "gqk,gkd->gqd"}> : () -> ()
    %cst_15 = arith.constant dense<0.000000e+00> : vector<2x128x64xf32>
    %64 = tpu.matmul %61, %63, %cst_15 {dimension_numbers = #tpu.dot_dimension_numbers<[2], [1], [1], [2], [0, 0, 0, 1, 1, 2], [0], [0]>} : vector<2x128x384xbf16>, vector<2x384x64xbf16>, vector<2x128x64xf32> -> vector<2x128x64xf32>
    "tpu.trace_stop"() : () -> ()
    %65 = vector.broadcast %13 : vector<2x128x1xf32> to vector<2x128x64xf32>
    %66 = arith.mulf %64, %65 : vector<2x128x64xf32>
    %c0_16 = arith.constant 0 : index
    %c0_17 = arith.constant 0 : index
    %c0_18 = arith.constant 0 : index
    %67 = vector.load %arg6[%c0_16, %c0_17, %c0_18] : memref<2x128x64xf32, #tpu.memory_space<vmem>>, vector<2x128x64xf32>
    tpu.vector_store %arg6[%c0_16, %c0_17, %c0_18], %66 {strides = array<i32>} : memref<2x128x64xf32, #tpu.memory_space<vmem>>, vector<2x128x64xf32>,
    return
  }
  func.func @transform_0(%arg0: i32, %arg1: i32, %arg2: memref<1xi32, #tpu.memory_space<smem>>) -> (i32, i32) {
    %c0_i32 = arith.constant 0 : i32
    %c0_i32_0 = arith.constant 0 : i32
    %c0_i32_1 = arith.constant 0 : i32
    return %c0_i32, %c0_i32_0 : i32, i32
  }
  func.func @transform_1(%arg0: i32, %arg1: i32, %arg2: memref<1xi32, #tpu.memory_space<smem>>) -> (i32, i32, i32) {
    %c0_i32 = arith.constant 0 : i32
    %c0_i32_0 = arith.constant 0 : i32
    return %arg0, %arg1, %c0_i32 : i32, i32, i32
  }
  func.func @transform_2(%arg0: i32, %arg1: i32, %arg2: memref<1xi32, #tpu.memory_space<smem>>) -> (i32, i32, i32) {
    %c0_i32 = arith.constant 0 : i32
    %c0_i32_0 = arith.constant 0 : i32
    %c0_i32_1 = arith.constant 0 : i32
    return %arg0, %c0_i32, %c0_i32_0 : i32, i32, i32
  }
  func.func @transform_3(%arg0: i32, %arg1: i32, %arg2: memref<1xi32, #tpu.memory_space<smem>>) -> (i32, i32, i32) {
    %c0_i32 = arith.constant 0 : i32
    %c0_i32_0 = arith.constant 0 : i32
    return %arg0, %arg1, %c0_i32 : i32, i32, i32
  }
}

</mosaic_0001>

<llo_original>
// kernel: _add_softmax_dropout_matmul_impl.1
$region0: #{_add_softmax_dropout_matmul_impl.1}
  #allocation0 [shape = 'u32[]', space=smem, size = 0x4, offset = 0x4, fixed_abs, tag = 'smem constant byte address 0x4 - core index']
  #allocation1 [shape = 'u32[144,128]{1,0:T(1,128)}', space=vmem, size = 0x12000, scoped, tag = 'internal scratch']
  #allocation2 [shape = 's32[1]{0}', space=sflag, size = 0x4, scoped, tag = 'scoped memory for _add_softmax_dropout_matmul_impl.1']
  #allocation3 [shape = 's32[1]{0:T(128)S(6)}', space=smem, size = 0x200, scoped, tag = 'prefetched SMEM operand 0']
  #allocation9 [shape = 's32[]', space=sflag, size = 0x4, offset = 0, fixed_abs, tag = 'sflag constant byte address 0x0 - dummy sync flag']
  %s0 = inlined_call_operand.<no memory space> [shape: s32[1], index: 0, kind: input, shape index: {}]
  %s1 = inlined_call_operand.hbm [shape: f32[1,384], index: 1, kind: input, shape index: {}]
  %s2 = inlined_call_operand.hbm [shape: f32[4,384,384], index: 2, kind: input, shape index: {}]
  %s3 = inlined_call_operand.vmem [shape: f32[4,384,64], index: 3, kind: input, shape index: {}]
  %s4 = inlined_call_operand.vmem [shape: f32[4,384,64], index: 4, kind: output, shape index: {}]
  %s5 = sld [smem:[#allocation0]]
  $region87: #{_add_softmax_dropout_matmul_impl.1} parent=0
    _
  %s7 = ssub.s32 1, %s5
  %s8 = scalar_select 0, %s7, %s5
  %9 = sst [smem:[#allocation3]] %s0
  $region1: #{_add_softmax_dropout_matmul_impl.1} parent=0
    #allocation4 [shape = 'u8[1536]{0}', space=vmem, size = 0x800, scoped, tag = 'input window, operand 1, single buffered']
    #allocation5 [shape = 's32[2]{0}', space=sflag, size = 0x8, scoped, tag = 'scoped memory for _add_softmax_dropout_matmul_impl.1']
    #allocation6 [shape = 'u8[786432]{0}', space=vmem, size = 0xc0000, scoped, tag = 'input window, operand 2']
    #allocation7 [shape = 's32[2]{0}', space=sflag, size = 0x8, scoped, tag = 'scoped memory for _add_softmax_dropout_matmul_impl.1']
    #allocation8 [shape = 'u8[262144]{0}', space=vmem, size = 0x40000, scoped, tag = 'output window, operand 0']
    %10 = vsyncpa [#allocation5], 0
    %11 = vsyncpa [#allocation7], 0
    %s12 = scalar_lea.sflag [#allocation7], 1
    %13 = vsyncpa %s12, 0
    loop: start=0, step=1, limit=8
    $region2: #{_add_softmax_dropout_matmul_impl.1} parent=1 // loop_pre_header
      _
    $region3: #{_add_softmax_dropout_matmul_impl.1} parent=1 // loop_header
      %s15 = sphi 0, %s19
      %p16 = scmp.ge.s32.totalorder %s15, 8
      %s22 = sphi 0, %s34
      %s23 = sphi 0, %s30
      %s24 = sphi 0, %s22
      %s25 = sphi 0, %s23
      %s26 = sphi 0, %s24
      %s27 = sphi 0, %s25
      %s35 = sphi 0, %s35
      %s37 = sphi 0, %s35
      %s38 = sphi 0, %s37
      %s52 = sphi 0, %s38
      %s60 = sphi 0, %s62
      %s63 = sphi 0, %s60
      %s64 = sphi 0, %s63
      %s80 = sphi 0, %s64
      %s86 = sphi 0, %s88
      %s89 = sphi 0, %s86
      %s90 = sphi 0, %s89
      %s106 = sphi 0, %s90
      %s114 = sphi 0, %s116
      %s117 = sphi 0, %s114
      %s118 = sphi 0, %s117
      %s134 = sphi 0, %s118
    $region4: #{_add_softmax_dropout_matmul_impl.1} parent=1 // loop_header_branch
      %18 = sbr.rel (%p16) target = $region8
    $region5: #{_add_softmax_dropout_matmul_impl.1} parent=1 // loop_body
      %s20 = ssub.s32 %s15, 1
      %s21 = ssub.s32 %s15, 2
      %s28 = sadd.s32 1, %s23
      %p29 = scmp.ge.s32.totalorder %s28, 3
      %s30 = scalar_select %p29, 0, %s28
      %s31 = sadd.s32 1, %s22
      %s32 = scalar_select %p29, %s31, %s22
      %p33 = scmp.ge.s32.totalorder %s32, 2
      %s34 = scalar_select %p33, 0, %s32
      %s36 = sadd.s32 %s35, 1
      %p39 = scmp.eq.s32.totalorder %s15, 5
      %p40 = scmp.ne.s32.totalorder %s35, %s37
      %p41 = scmp.eq.s32.totalorder %s15, 0
      %p42 = por %p40, %p41
      %p43 = scmp.ne.s32.totalorder %s35, %s37
      %p44 = scmp.eq.s32.totalorder %s20, 5
      %p45 = por %p43, %p44
      %p46 = scmp.ne.s32.totalorder %s37, %s38
      %p47 = scmp.eq.s32.totalorder %s20, 0
      %p48 = por %p46, %p47
      %p49 = scmp.ne.s32.totalorder %s37, %s38
      %p50 = scmp.eq.s32.totalorder %s21, 5
      %p51 = por %p49, %p50
      %p53 = scmp.ne.s32.totalorder %s38, %s52
      %p54 = scmp.eq.s32.totalorder %s21, 0
      %p55 = por %p53, %p54
      %s56 = ssub.s32 %s22, %s34
      %s57 = ssub.s32 %s23, %s30
      %s58 = sor.u32 %s56, %s57
      %p59 = scmp.eq.s32.totalorder %s58, 0
      %s61 = sadd.s32 %s60, 1
      %s62 = scalar_select %p59, %s60, %s61
      %p65 = pneg %p59
      %p66 = scmp.eq.s32.totalorder %s15, 5
      %p67 = por %p65, %p66
      %p68 = scmp.ne.s32.totalorder %s60, %s63
      %p69 = scmp.eq.s32.totalorder %s15, 0
      %p70 = por %p68, %p69
      %p71 = scmp.ne.s32.totalorder %s60, %s63
      %p72 = scmp.eq.s32.totalorder %s20, 5
      %p73 = por %p71, %p72
      %p74 = scmp.ne.s32.totalorder %s63, %s64
      %p75 = scmp.eq.s32.totalorder %s20, 0
      %p76 = por %p74, %p75
      %p77 = scmp.ne.s32.totalorder %s63, %s64
      %p78 = scmp.eq.s32.totalorder %s21, 5
      %p79 = por %p77, %p78
      %p81 = scmp.ne.s32.totalorder %s64, %s80
      %p82 = scmp.eq.s32.totalorder %s21, 0
      %p83 = por %p81, %p82
      %s84 = ssub.s32 %s22, %s34
      %p85 = scmp.eq.s32.totalorder %s84, 0
      %s87 = sadd.s32 %s86, 1
      %s88 = scalar_select %p85, %s86, %s87
      %p91 = pneg %p85
      %p92 = scmp.eq.s32.totalorder %s15, 5
      %p93 = por %p91, %p92
      %p94 = scmp.ne.s32.totalorder %s86, %s89
      %p95 = scmp.eq.s32.totalorder %s15, 0
      %p96 = por %p94, %p95
      %p97 = scmp.ne.s32.totalorder %s86, %s89
      %p98 = scmp.eq.s32.totalorder %s20, 5
      %p99 = por %p97, %p98
      %p100 = scmp.ne.s32.totalorder %s89, %s90
      %p101 = scmp.eq.s32.totalorder %s20, 0
      %p102 = por %p100, %p101
      %p103 = scmp.ne.s32.totalorder %s89, %s90
      %p104 = scmp.eq.s32.totalorder %s21, 5
      %p105 = por %p103, %p104
      %p107 = scmp.ne.s32.totalorder %s90, %s106
      %p108 = scmp.eq.s32.totalorder %s21, 0
      %p109 = por %p107, %p108
      %s110 = ssub.s32 %s22, %s34
      %s111 = ssub.s32 %s23, %s30
      %s112 = sor.u32 %s110, %s111
      %p113 = scmp.eq.s32.totalorder %s112, 0
      %s115 = sadd.s32 %s114, 1
      %s116 = scalar_select %p113, %s114, %s115
      %p119 = pneg %p113
      %p120 = scmp.eq.s32.totalorder %s15, 5
      %p121 = por %p119, %p120
      %p122 = scmp.ne.s32.totalorder %s114, %s117
      %p123 = scmp.eq.s32.totalorder %s15, 0
      %p124 = por %p122, %p123
      %p125 = scmp.ne.s32.totalorder %s114, %s117
      %p126 = scmp.eq.s32.totalorder %s20, 5
      %p127 = por %p125, %p126
      %p128 = scmp.ne.s32.totalorder %s117, %s118
      %p129 = scmp.eq.s32.totalorder %s20, 0
      %p130 = por %p128, %p129
      %p131 = scmp.ne.s32.totalorder %s117, %s118
      %p132 = scmp.eq.s32.totalorder %s21, 5
      %p133 = por %p131, %p132
      %p135 = scmp.ne.s32.totalorder %s118, %s134
      %p136 = scmp.eq.s32.totalorder %s21, 0
      %p137 = por %p135, %p136
      %p138 = scmp.le.s32.totalorder 1, %s15
      %p139 = scmp.lt.s32.totalorder %s15, 7
      %p140 = pnand %p138, %p139
      %p141 = pneg %p140
      // Predicated region
      $region9: #{_add_softmax_dropout_matmul_impl.1} parent=5 // pred_check
        _
      $region10: #{_add_softmax_dropout_matmul_impl.1} parent=5 // pred_check_branch
        %143 = sbr.rel (%p140) target = $region12
      $region11: #{_add_softmax_dropout_matmul_impl.1} parent=5 // pred_region
        %s144 = ssub.s32 %s15, 1
        // Predicated region
        $region13: #{_add_softmax_dropout_matmul_impl.1} parent=11 // pred_check
          %p145 = pneg %p48
        $region14: #{_add_softmax_dropout_matmul_impl.1} parent=11 // pred_check_branch
          %147 = sbr.rel (%p145) target = $region16
        $region15: #{_add_softmax_dropout_matmul_impl.1} parent=11 // pred_region
          %s149 = ssub.s32 48, 48
          %150 = vsyncadd [#allocation5], %s149
          %s152 = sshll.u32 [#allocation4], 4
          %s153 = int_to_ptr.vmem [resolvable:$true] %s152
          %155 = dma.hbm_to_vmem [thread:$0]  %s1, 48, %s153, [#allocation5]
        $region16: #{_add_softmax_dropout_matmul_impl.1} parent=11 // pred_fallthru
          _
      $region12: #{_add_softmax_dropout_matmul_impl.1} parent=5 // pred_fallthru
        _
      %p156 = scmp.lt.s32.totalorder %s15, 6
      // Predicated region
      $region17: #{_add_softmax_dropout_matmul_impl.1} parent=5 // pred_check
        %p157 = pneg %p156
      $region18: #{_add_softmax_dropout_matmul_impl.1} parent=5 // pred_check_branch
        %159 = sbr.rel (%p157) target = $region20
      $region19: #{_add_softmax_dropout_matmul_impl.1} parent=5 // pred_region
        // Predicated region
        $region21: #{_add_softmax_dropout_matmul_impl.1} parent=19 // pred_check
          %p160 = pneg %p70
        $region22: #{_add_softmax_dropout_matmul_impl.1} parent=19 // pred_check_branch
          %162 = sbr.rel (%p160) target = $region24
        $region23: #{_add_softmax_dropout_matmul_impl.1} parent=19 // pred_region
          #allocation10 [shape = 'u32[6]{0}', space=smem, size = 0x18, scoped, tag = 'DMA stride descriptor']
          %s163 = sand.u32 %s60, 1
          %s164 = scalar_lea.sflag [#allocation7], %s163
          %s165 = sand.u32 %s60, 1
          %s166 = smul.addr %s165, 768
          %s167 = scalar_lea.vmem [#allocation6], %s166
          %s168 = smul.u32 2, %s22
          %s169 = smul.u32 16, %s23
          %s171 = ssub.s32 12288, 12288
          %172 = vsyncadd %s164, %s171
          %s173 = smul.addr %s169, 3
          %s174 = smul.addr %s168, 144
          %s175 = sadd.s32 %s173, %s174
          %s176 = smul.addr %s175, 128
          %s177 = scalar_lea.hbm %s2, %s176
          %s179 = sshll.u32 1, 14
          %s180 = sxor.u32 4294967295, %s179
          %s182 = sld [smem:[#allocation0]]
          %s183 = sadd.s32 2, %s182
          %s185 = sshll.u32 7, 26
          %s186 = sxor.u32 4294967295, %s185
          %s187 = sand.u32 0, %s186
          %s188 = sshll.u32 %s183, 26
          %s189 = sor.u32 %s187, %s188
          %s190 = sshll.u32 %s167, 4
          %s191 = int_to_ptr.vmem [resolvable:$true] %s190
          %197 = sst [smem:[#allocation10]] 18432
          %s198 = scalar_lea.smem [#allocation10], 1
          %199 = sst [smem:[%s198]] 6144
          %s200 = scalar_lea.smem [#allocation10], 2
          %201 = sst [smem:[%s200]] 16
          %s202 = scalar_lea.smem [#allocation10], 3
          %203 = sst [smem:[%s202]] 384
          %s204 = scalar_lea.smem [#allocation10], 4
          %205 = sst [smem:[%s204]] 384
          %s206 = scalar_lea.smem [#allocation10], 5
          %207 = sst [smem:[%s206]] 24
          %209 = dma.general %s177, 12288, %s191, %s164, [#allocation9], [#allocation10], %s189, 0
        $region24: #{_add_softmax_dropout_matmul_impl.1} parent=19 // pred_fallthru
          _
        // Predicated region
        $region25: #{_add_softmax_dropout_matmul_impl.1} parent=19 // pred_check
          %p210 = pneg %p96
        $region26: #{_add_softmax_dropout_matmul_impl.1} parent=19 // pred_check_branch
          %212 = sbr.rel (%p210) target = $region28
        $region27: #{_add_softmax_dropout_matmul_impl.1} parent=19 // pred_region
          %s213 = smul.u32 2, %s22
          %p214 = scmp.lt.s32.totalorder %s213, 3
          %s215 = scalar_select %p214, %s213, 3
          %s216 = smul.addr %s215, 48
          %s217 = smul.addr %s216, 8
          %s218 = scalar_lea.vmem %s3, %s217
          %s219 = smul.u32 2, %s22
        $region28: #{_add_softmax_dropout_matmul_impl.1} parent=19 // pred_fallthru
          _
      $region20: #{_add_softmax_dropout_matmul_impl.1} parent=5 // pred_fallthru
        _
      %p220 = scmp.le.s32.totalorder 1, %s15
      %p221 = scmp.lt.s32.totalorder %s15, 7
      %p222 = pnand %p220, %p221
      %p223 = pneg %p222
      // Predicated region
      $region29: #{_add_softmax_dropout_matmul_impl.1} parent=5 // pred_check
        _
      $region30: #{_add_softmax_dropout_matmul_impl.1} parent=5 // pred_check_branch
        %225 = sbr.rel (%p222) target = $region32
      $region31: #{_add_softmax_dropout_matmul_impl.1} parent=5 // pred_region
        %s226 = ssub.s32 %s15, 1
        // Predicated region
        $region33: #{_add_softmax_dropout_matmul_impl.1} parent=31 // pred_check
          %p227 = pneg %p48
        $region34: #{_add_softmax_dropout_matmul_impl.1} parent=31 // pred_check_branch
          %229 = sbr.rel (%p227) target = $region36
        $region35: #{_add_softmax_dropout_matmul_impl.1} parent=31 // pred_region
          %230 = dma.done [#allocation5], 48
        $region36: #{_add_softmax_dropout_matmul_impl.1} parent=31 // pred_fallthru
          _
        %s231 = sand.u32 %s63, 1
        %s232 = scalar_lea.sflag [#allocation7], %s231
        %s233 = sand.u32 %s63, 1
        %s234 = smul.addr %s233, 768
        %s235 = scalar_lea.vmem [#allocation6], %s234
        // Predicated region
        $region37: #{_add_softmax_dropout_matmul_impl.1} parent=31 // pred_check
          %p236 = pneg %p76
        $region38: #{_add_softmax_dropout_matmul_impl.1} parent=31 // pred_check_branch
          %238 = sbr.rel (%p236) target = $region40
        $region39: #{_add_softmax_dropout_matmul_impl.1} parent=31 // pred_region
          %239 = dma.done %s232, 12288
        $region40: #{_add_softmax_dropout_matmul_impl.1} parent=31 // pred_fallthru
          _
        %p240 = pneg %p48
        %p241 = pneg %p45
        %s242 = sand.u32 %s63, 1
        %s243 = scalar_lea.sflag [#allocation7], %s242
        %s244 = sand.u32 %s63, 1
        %s245 = smul.addr %s244, 768
        %s246 = scalar_lea.vmem [#allocation6], %s245
        %p247 = pneg %p76
        %p248 = pneg %p73
        %s249 = smul.u32 2, %s24
        %p250 = scmp.lt.s32.totalorder %s249, 3
        %s251 = scalar_select %p250, %s249, 3
        %s252 = smul.addr %s251, 48
        %s253 = smul.addr %s252, 8
        %s254 = scalar_lea.vmem %s3, %s253
        %p255 = pneg %p102
        %p256 = pneg %p99
        %p257 = pneg %p130
        %p258 = pneg %p127
        %s259 = sand.u32 %s117, 1
        %s260 = sand.u32 %s117, 1
        %s261 = smul.addr %s260, 256
        %s262 = scalar_lea.vmem [#allocation8], %s261
        %s263 = smul.u32 2, %s24
        %s264 = smul.u32 16, %s25
        %s265 = smul.u32 2, %s24
        %p266 = scmp.lt.s32.totalorder %s265, 3
        %s267 = scalar_select %p266, %s265, 3
        %s268 = smul.addr %s267, 48
        %s269 = smul.addr %s268, 8
        %s270 = scalar_lea.vmem %s3, %s269
        %s271 = smul.u32 2, %s24
        %s272 = smul.u32 2, %s24
        %s273 = smul.u32 16, %s25
        %v275 = vld [vmem:[%s235] sm:$0xff]
        %v276 = vld [vmem:[%s235 + $0x8] sm:$0xff]
        %v277 = vld [vmem:[%s235 + $0x10] sm:$0xff]
        %v278 = vld [vmem:[%s235 + $0x18] sm:$0xff]
        %v279 = vld [vmem:[%s235 + $0x20] sm:$0xff]
        %v280 = vld [vmem:[%s235 + $0x28] sm:$0xff]
        %v281 = vld [vmem:[%s235 + $0x30] sm:$0xff]
        %v282 = vld [vmem:[%s235 + $0x38] sm:$0xff]
        %v283 = vld [vmem:[%s235 + $0x40] sm:$0xff]
        %v284 = vld [vmem:[%s235 + $0x48] sm:$0xff]
        %v285 = vld [vmem:[%s235 + $0x50] sm:$0xff]
        %v286 = vld [vmem:[%s235 + $0x58] sm:$0xff]
        %v287 = vld [vmem:[%s235 + $0x60] sm:$0xff]
        %v288 = vld [vmem:[%s235 + $0x68] sm:$0xff]
        %v289 = vld [vmem:[%s235 + $0x70] sm:$0xff]
        %v290 = vld [vmem:[%s235 + $0x78] sm:$0xff]
        %v291 = vld [vmem:[%s235 + $0x80] sm:$0xff]
        %v292 = vld [vmem:[%s235 + $0x88] sm:$0xff]
        %v293 = vld [vmem:[%s235 + $0x90] sm:$0xff]
        %v294 = vld [vmem:[%s235 + $0x98] sm:$0xff]
        %v295 = vld [vmem:[%s235 + $0xa0] sm:$0xff]
        %v296 = vld [vmem:[%s235 + $0xa8] sm:$0xff]
        %v297 = vld [vmem:[%s235 + $0xb0] sm:$0xff]
        %v298 = vld [vmem:[%s235 + $0xb8] sm:$0xff]
        %v299 = vld [vmem:[%s235 + $0xc0] sm:$0xff]
        %v300 = vld [vmem:[%s235 + $0xc8] sm:$0xff]
        %v301 = vld [vmem:[%s235 + $0xd0] sm:$0xff]
        %v302 = vld [vmem:[%s235 + $0xd8] sm:$0xff]
        %v303 = vld [vmem:[%s235 + $0xe0] sm:$0xff]
        %v304 = vld [vmem:[%s235 + $0xe8] sm:$0xff]
        %v305 = vld [vmem:[%s235 + $0xf0] sm:$0xff]
        %v306 = vld [vmem:[%s235 + $0xf8] sm:$0xff]
        %v307 = vld [vmem:[%s235 + $0x100] sm:$0xff]
        %v308 = vld [vmem:[%s235 + $0x108] sm:$0xff]
        %v309 = vld [vmem:[%s235 + $0x110] sm:$0xff]
        %v310 = vld [vmem:[%s235 + $0x118] sm:$0xff]
        %v311 = vld [vmem:[%s235 + $0x120] sm:$0xff]
        %v312 = vld [vmem:[%s235 + $0x128] sm:$0xff]
        %v313 = vld [vmem:[%s235 + $0x130] sm:$0xff]
        %v314 = vld [vmem:[%s235 + $0x138] sm:$0xff]
        %v315 = vld [vmem:[%s235 + $0x140] sm:$0xff]
        %v316 = vld [vmem:[%s235 + $0x148] sm:$0xff]
        %v317 = vld [vmem:[%s235 + $0x150] sm:$0xff]
        %v318 = vld [vmem:[%s235 + $0x158] sm:$0xff]
        %v319 = vld [vmem:[%s235 + $0x160] sm:$0xff]
        %v320 = vld [vmem:[%s235 + $0x168] sm:$0xff]
        %v321 = vld [vmem:[%s235 + $0x170] sm:$0xff]
        %v322 = vld [vmem:[%s235 + $0x178] sm:$0xff]
        %v323 = vld [vmem:[%s235 + $0x180] sm:$0xff]
        %v324 = vld [vmem:[%s235 + $0x188] sm:$0xff]
        %v325 = vld [vmem:[%s235 + $0x190] sm:$0xff]
        %v326 = vld [vmem:[%s235 + $0x198] sm:$0xff]
        %v327 = vld [vmem:[%s235 + $0x1a0] sm:$0xff]
        %v328 = vld [vmem:[%s235 + $0x1a8] sm:$0xff]
        %v329 = vld [vmem:[%s235 + $0x1b0] sm:$0xff]
        %v330 = vld [vmem:[%s235 + $0x1b8] sm:$0xff]
        %v331 = vld [vmem:[%s235 + $0x1c0] sm:$0xff]
        %v332 = vld [vmem:[%s235 + $0x1c8] sm:$0xff]
        %v333 = vld [vmem:[%s235 + $0x1d0] sm:$0xff]
        %v334 = vld [vmem:[%s235 + $0x1d8] sm:$0xff]
        %v335 = vld [vmem:[%s235 + $0x1e0] sm:$0xff]
        %v336 = vld [vmem:[%s235 + $0x1e8] sm:$0xff]
        %v337 = vld [vmem:[%s235 + $0x1f0] sm:$0xff]
        %v338 = vld [vmem:[%s235 + $0x1f8] sm:$0xff]
        %v339 = vld [vmem:[%s235 + $0x200] sm:$0xff]
        %v340 = vld [vmem:[%s235 + $0x208] sm:$0xff]
        %v341 = vld [vmem:[%s235 + $0x210] sm:$0xff]
        %v342 = vld [vmem:[%s235 + $0x218] sm:$0xff]
        %v343 = vld [vmem:[%s235 + $0x220] sm:$0xff]
        %v344 = vld [vmem:[%s235 + $0x228] sm:$0xff]
        %v345 = vld [vmem:[%s235 + $0x230] sm:$0xff]
        %v346 = vld [vmem:[%s235 + $0x238] sm:$0xff]
        %v347 = vld [vmem:[%s235 + $0x240] sm:$0xff]
        %v348 = vld [vmem:[%s235 + $0x248] sm:$0xff]
        %v349 = vld [vmem:[%s235 + $0x250] sm:$0xff]
        %v350 = vld [vmem:[%s235 + $0x258] sm:$0xff]
        %v351 = vld [vmem:[%s235 + $0x260] sm:$0xff]
        %v352 = vld [vmem:[%s235 + $0x268] sm:$0xff]
        %v353 = vld [vmem:[%s235 + $0x270] sm:$0xff]
        %v354 = vld [vmem:[%s235 + $0x278] sm:$0xff]
        %v355 = vld [vmem:[%s235 + $0x280] sm:$0xff]
        %v356 = vld [vmem:[%s235 + $0x288] sm:$0xff]
        %v357 = vld [vmem:[%s235 + $0x290] sm:$0xff]
        %v358 = vld [vmem:[%s235 + $0x298] sm:$0xff]
        %v359 = vld [vmem:[%s235 + $0x2a0] sm:$0xff]
        %v360 = vld [vmem:[%s235 + $0x2a8] sm:$0xff]
        %v361 = vld [vmem:[%s235 + $0x2b0] sm:$0xff]
        %v362 = vld [vmem:[%s235 + $0x2b8] sm:$0xff]
        %v363 = vld [vmem:[%s235 + $0x2c0] sm:$0xff]
        %v364 = vld [vmem:[%s235 + $0x2c8] sm:$0xff]
        %v365 = vld [vmem:[%s235 + $0x2d0] sm:$0xff]
        %v366 = vld [vmem:[%s235 + $0x2d8] sm:$0xff]
        %v367 = vld [vmem:[%s235 + $0x2e0] sm:$0xff]
        %v368 = vld [vmem:[%s235 + $0x2e8] sm:$0xff]
        %v369 = vld [vmem:[%s235 + $0x2f0] sm:$0xff]
        %v370 = vld [vmem:[%s235 + $0x2f8] sm:$0xff]
        %v371 = vld [vmem:[#allocation4] sm:$0x7]
        %v373 = vlaneseq
        %v374 = vshrl.u32 %v373, 7
        %v375 = vsub.s32 0, %v374
        %v376 = vrot.slane %v371, %v375
        %v377 = vlaneseq
        %v378 = vshrl.u32 %v377, 7
        %v379 = vsub.s32 1, %v378
        %v380 = vrot.slane %v371, %v379
        %v381 = vlaneseq
        %v382 = vshrl.u32 %v381, 7
        %v383 = vsub.s32 2, %v382
        %v384 = vrot.slane %v371, %v383
        %v388 = vadd.f32 %v275, %v376
        %v389 = vadd.f32 %v276, %v380
        %v390 = vadd.f32 %v277, %v384
        %v391 = vadd.f32 %v278, %v376
        %v392 = vadd.f32 %v279, %v380
        %v393 = vadd.f32 %v280, %v384
        %v394 = vadd.f32 %v281, %v376
        %v395 = vadd.f32 %v282, %v380
        %v396 = vadd.f32 %v283, %v384
        %v397 = vadd.f32 %v284, %v376
        %v398 = vadd.f32 %v285, %v380
        %v399 = vadd.f32 %v286, %v384
        %v400 = vadd.f32 %v287, %v376
        %v401 = vadd.f32 %v288, %v380
        %v402 = vadd.f32 %v289, %v384
        %v403 = vadd.f32 %v290, %v376
        %v404 = vadd.f32 %v291, %v380
        %v405 = vadd.f32 %v292, %v384
        %v406 = vadd.f32 %v293, %v376
        %v407 = vadd.f32 %v294, %v380
        %v408 = vadd.f32 %v295, %v384
        %v409 = vadd.f32 %v296, %v376
        %v410 = vadd.f32 %v297, %v380
        %v411 = vadd.f32 %v298, %v384
        %v412 = vadd.f32 %v299, %v376
        %v413 = vadd.f32 %v300, %v380
        %v414 = vadd.f32 %v301, %v384
        %v415 = vadd.f32 %v302, %v376
        %v416 = vadd.f32 %v303, %v380
        %v417 = vadd.f32 %v304, %v384
        %v418 = vadd.f32 %v305, %v376
        %v419 = vadd.f32 %v306, %v380
        %v420 = vadd.f32 %v307, %v384
        %v421 = vadd.f32 %v308, %v376
        %v422 = vadd.f32 %v309, %v380
        %v423 = vadd.f32 %v310, %v384
        %v424 = vadd.f32 %v311, %v376
        %v425 = vadd.f32 %v312, %v380
        %v426 = vadd.f32 %v313, %v384
        %v427 = vadd.f32 %v314, %v376
        %v428 = vadd.f32 %v315, %v380
        %v429 = vadd.f32 %v316, %v384
        %v430 = vadd.f32 %v317, %v376
        %v431 = vadd.f32 %v318, %v380
        %v432 = vadd.f32 %v319, %v384
        %v433 = vadd.f32 %v320, %v376
        %v434 = vadd.f32 %v321, %v380
        %v435 = vadd.f32 %v322, %v384
        %v436 = vadd.f32 %v323, %v376
        %v437 = vadd.f32 %v324, %v380
        %v438 = vadd.f32 %v325, %v384
        %v439 = vadd.f32 %v326, %v376
        %v440 = vadd.f32 %v327, %v380
        %v441 = vadd.f32 %v328, %v384
        %v442 = vadd.f32 %v329, %v376
        %v443 = vadd.f32 %v330, %v380
        %v444 = vadd.f32 %v331, %v384
        %v445 = vadd.f32 %v332, %v376
        %v446 = vadd.f32 %v333, %v380
        %v447 = vadd.f32 %v334, %v384
        %v448 = vadd.f32 %v335, %v376
        %v449 = vadd.f32 %v336, %v380
        %v450 = vadd.f32 %v337, %v384
        %v451 = vadd.f32 %v338, %v376
        %v452 = vadd.f32 %v339, %v380
        %v453 = vadd.f32 %v340, %v384
        %v454 = vadd.f32 %v341, %v376
        %v455 = vadd.f32 %v342, %v380
        %v456 = vadd.f32 %v343, %v384
        %v457 = vadd.f32 %v344, %v376
        %v458 = vadd.f32 %v345, %v380
        %v459 = vadd.f32 %v346, %v384
        %v460 = vadd.f32 %v347, %v376
        %v461 = vadd.f32 %v348, %v380
        %v462 = vadd.f32 %v349, %v384
        %v463 = vadd.f32 %v350, %v376
        %v464 = vadd.f32 %v351, %v380
        %v465 = vadd.f32 %v352, %v384
        %v466 = vadd.f32 %v353, %v376
        %v467 = vadd.f32 %v354, %v380
        %v468 = vadd.f32 %v355, %v384
        %v469 = vadd.f32 %v356, %v376
        %v470 = vadd.f32 %v357, %v380
        %v471 = vadd.f32 %v358, %v384
        %v472 = vadd.f32 %v359, %v376
        %v473 = vadd.f32 %v360, %v380
        %v474 = vadd.f32 %v361, %v384
        %v475 = vadd.f32 %v362, %v376
        %v476 = vadd.f32 %v363, %v380
        %v477 = vadd.f32 %v364, %v384
        %v478 = vadd.f32 %v365, %v376
        %v479 = vadd.f32 %v366, %v380
        %v480 = vadd.f32 %v367, %v384
        %v481 = vadd.f32 %v368, %v376
        %v482 = vadd.f32 %v369, %v380
        %v483 = vadd.f32 %v370, %v384
        %v484 = vmax.f32 %v388, %v389
        %v485 = vmax.f32 %v484, %v390
        %486 = vmax.xlane.f32.xlu0 %v485
        %v487 = vpop.xlane.xlu0 %486
        %v488 = vmax.f32 %v391, %v392
        %v489 = vmax.f32 %v488, %v393
        %490 = vmax.xlane.f32.xlu0 %v489
        %v491 = vpop.xlane.xlu0 %490
        %v492 = vmax.f32 %v394, %v395
        %v493 = vmax.f32 %v492, %v396
        %494 = vmax.xlane.f32.xlu0 %v493
        %v495 = vpop.xlane.xlu0 %494
        %v496 = vmax.f32 %v397, %v398
        %v497 = vmax.f32 %v496, %v399
        %498 = vmax.xlane.f32.xlu0 %v497
        %v499 = vpop.xlane.xlu0 %498
        %v500 = vmax.f32 %v400, %v401
        %v501 = vmax.f32 %v500, %v402
        %502 = vmax.xlane.f32.xlu0 %v501
        %v503 = vpop.xlane.xlu0 %502
        %v504 = vmax.f32 %v403, %v404
        %v505 = vmax.f32 %v504, %v405
        %506 = vmax.xlane.f32.xlu0 %v505
        %v507 = vpop.xlane.xlu0 %506
        %v508 = vmax.f32 %v406, %v407
        %v509 = vmax.f32 %v508, %v408
        %510 = vmax.xlane.f32.xlu0 %v509
        %v511 = vpop.xlane.xlu0 %510
        %v512 = vmax.f32 %v409, %v410
        %v513 = vmax.f32 %v512, %v411
        %514 = vmax.xlane.f32.xlu0 %v513
        %v515 = vpop.xlane.xlu0 %514
        %v516 = vmax.f32 %v412, %v413
        %v517 = vmax.f32 %v516, %v414
        %518 = vmax.xlane.f32.xlu0 %v517
        %v519 = vpop.xlane.xlu0 %518
        %v520 = vmax.f32 %v415, %v416
        %v521 = vmax.f32 %v520, %v417
        %522 = vmax.xlane.f32.xlu0 %v521
        %v523 = vpop.xlane.xlu0 %522
        %v524 = vmax.f32 %v418, %v419
        %v525 = vmax.f32 %v524, %v420
        %526 = vmax.xlane.f32.xlu0 %v525
        %v527 = vpop.xlane.xlu0 %526
        %v528 = vmax.f32 %v421, %v422
        %v529 = vmax.f32 %v528, %v423
        %530 = vmax.xlane.f32.xlu0 %v529
        %v531 = vpop.xlane.xlu0 %530
        %v532 = vmax.f32 %v424, %v425
        %v533 = vmax.f32 %v532, %v426
        %534 = vmax.xlane.f32.xlu0 %v533
        %v535 = vpop.xlane.xlu0 %534
        %v536 = vmax.f32 %v427, %v428
        %v537 = vmax.f32 %v536, %v429
        %538 = vmax.xlane.f32.xlu0 %v537
        %v539 = vpop.xlane.xlu0 %538
        %v540 = vmax.f32 %v430, %v431
        %v541 = vmax.f32 %v540, %v432
        %542 = vmax.xlane.f32.xlu0 %v541
        %v543 = vpop.xlane.xlu0 %542
        %v544 = vmax.f32 %v433, %v434
        %v545 = vmax.f32 %v544, %v435
        %546 = vmax.xlane.f32.xlu0 %v545
        %v547 = vpop.xlane.xlu0 %546
        %v548 = vmax.f32 %v436, %v437
        %v549 = vmax.f32 %v548, %v438
        %550 = vmax.xlane.f32.xlu0 %v549
        %v551 = vpop.xlane.xlu0 %550
        %v552 = vmax.f32 %v439, %v440
        %v553 = vmax.f32 %v552, %v441
        %554 = vmax.xlane.f32.xlu0 %v553
        %v555 = vpop.xlane.xlu0 %554
        %v556 = vmax.f32 %v442, %v443
        %v557 = vmax.f32 %v556, %v444
        %558 = vmax.xlane.f32.xlu0 %v557
        %v559 = vpop.xlane.xlu0 %558
        %v560 = vmax.f32 %v445, %v446
        %v561 = vmax.f32 %v560, %v447
        %562 = vmax.xlane.f32.xlu0 %v561
        %v563 = vpop.xlane.xlu0 %562
        %v564 = vmax.f32 %v448, %v449
        %v565 = vmax.f32 %v564, %v450
        %566 = vmax.xlane.f32.xlu0 %v565
        %v567 = vpop.xlane.xlu0 %566
        %v568 = vmax.f32 %v451, %v452
        %v569 = vmax.f32 %v568, %v453
        %570 = vmax.xlane.f32.xlu0 %v569
        %v571 = vpop.xlane.xlu0 %570
        %v572 = vmax.f32 %v454, %v455
        %v573 = vmax.f32 %v572, %v456
        %574 = vmax.xlane.f32.xlu0 %v573
        %v575 = vpop.xlane.xlu0 %574
        %v576 = vmax.f32 %v457, %v458
        %v577 = vmax.f32 %v576, %v459
        %578 = vmax.xlane.f32.xlu0 %v577
        %v579 = vpop.xlane.xlu0 %578
        %v580 = vmax.f32 %v460, %v461
        %v581 = vmax.f32 %v580, %v462
        %582 = vmax.xlane.f32.xlu0 %v581
        %v583 = vpop.xlane.xlu0 %582
        %v584 = vmax.f32 %v463, %v464
        %v585 = vmax.f32 %v584, %v465
        %586 = vmax.xlane.f32.xlu0 %v585
        %v587 = vpop.xlane.xlu0 %586
        %v588 = vmax.f32 %v466, %v467
        %v589 = vmax.f32 %v588, %v468
        %590 = vmax.xlane.f32.xlu0 %v589
        %v591 = vpop.xlane.xlu0 %590
        %v592 = vmax.f32 %v469, %v470
        %v593 = vmax.f32 %v592, %v471
        %594 = vmax.xlane.f32.xlu0 %v593
        %v595 = vpop.xlane.xlu0 %594
        %v596 = vmax.f32 %v472, %v473
        %v597 = vmax.f32 %v596, %v474
        %598 = vmax.xlane.f32.xlu0 %v597
        %v599 = vpop.xlane.xlu0 %598
        %v600 = vmax.f32 %v475, %v476
        %v601 = vmax.f32 %v600, %v477
        %602 = vmax.xlane.f32.xlu0 %v601
        %v603 = vpop.xlane.xlu0 %602
        %v604 = vmax.f32 %v478, %v479
        %v605 = vmax.f32 %v604, %v480
        %606 = vmax.xlane.f32.xlu0 %v605
        %v607 = vpop.xlane.xlu0 %606
        %v608 = vmax.f32 %v481, %v482
        %v609 = vmax.f32 %v608, %v483
        %610 = vmax.xlane.f32.xlu0 %v609
        %v611 = vpop.xlane.xlu0 %610
        %v612 = vsub.f32 %v388, %v487
        %v613 = vsub.f32 %v389, %v487
        %v614 = vsub.f32 %v390, %v487
        %v615 = vsub.f32 %v391, %v491
        %v616 = vsub.f32 %v392, %v491
        %v617 = vsub.f32 %v393, %v491
        %v618 = vsub.f32 %v394, %v495
        %v619 = vsub.f32 %v395, %v495
        %v620 = vsub.f32 %v396, %v495
        %v621 = vsub.f32 %v397, %v499
        %v622 = vsub.f32 %v398, %v499
        %v623 = vsub.f32 %v399, %v499
        %v624 = vsub.f32 %v400, %v503
        %v625 = vsub.f32 %v401, %v503
        %v626 = vsub.f32 %v402, %v503
        %v627 = vsub.f32 %v403, %v507
        %v628 = vsub.f32 %v404, %v507
        %v629 = vsub.f32 %v405, %v507
        %v630 = vsub.f32 %v406, %v511
        %v631 = vsub.f32 %v407, %v511
        %v632 = vsub.f32 %v408, %v511
        %v633 = vsub.f32 %v409, %v515
        %v634 = vsub.f32 %v410, %v515
        %v635 = vsub.f32 %v411, %v515
        %v636 = vsub.f32 %v412, %v519
        %v637 = vsub.f32 %v413, %v519
        %v638 = vsub.f32 %v414, %v519
        %v639 = vsub.f32 %v415, %v523
        %v640 = vsub.f32 %v416, %v523
        %v641 = vsub.f32 %v417, %v523
        %v642 = vsub.f32 %v418, %v527
        %v643 = vsub.f32 %v419, %v527
        %v644 = vsub.f32 %v420, %v527
        %v645 = vsub.f32 %v421, %v531
        %v646 = vsub.f32 %v422, %v531
        %v647 = vsub.f32 %v423, %v531
        %v648 = vsub.f32 %v424, %v535
        %v649 = vsub.f32 %v425, %v535
        %v650 = vsub.f32 %v426, %v535
        %v651 = vsub.f32 %v427, %v539
        %v652 = vsub.f32 %v428, %v539
        %v653 = vsub.f32 %v429, %v539
        %v654 = vsub.f32 %v430, %v543
        %v655 = vsub.f32 %v431, %v543
        %v656 = vsub.f32 %v432, %v543
        %v657 = vsub.f32 %v433, %v547
        %v658 = vsub.f32 %v434, %v547
        %v659 = vsub.f32 %v435, %v547
        %v660 = vsub.f32 %v436, %v551
        %v661 = vsub.f32 %v437, %v551
        %v662 = vsub.f32 %v438, %v551
        %v663 = vsub.f32 %v439, %v555
        %v664 = vsub.f32 %v440, %v555
        %v665 = vsub.f32 %v441, %v555
        %v666 = vsub.f32 %v442, %v559
        %v667 = vsub.f32 %v443, %v559
        %v668 = vsub.f32 %v444, %v559
        %v669 = vsub.f32 %v445, %v563
        %v670 = vsub.f32 %v446, %v563
        %v671 = vsub.f32 %v447, %v563
        %v672 = vsub.f32 %v448, %v567
        %v673 = vsub.f32 %v449, %v567
        %v674 = vsub.f32 %v450, %v567
        %v675 = vsub.f32 %v451, %v571
        %v676 = vsub.f32 %v452, %v571
        %v677 = vsub.f32 %v453, %v571
        %v678 = vsub.f32 %v454, %v575
        %v679 = vsub.f32 %v455, %v575
        %v680 = vsub.f32 %v456, %v575
        %v681 = vsub.f32 %v457, %v579
        %v682 = vsub.f32 %v458, %v579
        %v683 = vsub.f32 %v459, %v579
        %v684 = vsub.f32 %v460, %v583
        %v685 = vsub.f32 %v461, %v583
        %v686 = vsub.f32 %v462, %v583
        %v687 = vsub.f32 %v463, %v587
        %v688 = vsub.f32 %v464, %v587
        %v689 = vsub.f32 %v465, %v587
        %v690 = vsub.f32 %v466, %v591
        %v691 = vsub.f32 %v467, %v591
        %v692 = vsub.f32 %v468, %v591
        %v693 = vsub.f32 %v469, %v595
        %v694 = vsub.f32 %v470, %v595
        %v695 = vsub.f32 %v471, %v595
        %v696 = vsub.f32 %v472, %v599
        %v697 = vsub.f32 %v473, %v599
        %v698 = vsub.f32 %v474, %v599
        %v699 = vsub.f32 %v475, %v603
        %v700 = vsub.f32 %v476, %v603
        %v701 = vsub.f32 %v477, %v603
        %v702 = vsub.f32 %v478, %v607
        %v703 = vsub.f32 %v479, %v607
        %v704 = vsub.f32 %v480, %v607
        %v705 = vsub.f32 %v481, %v611
        %v706 = vsub.f32 %v482, %v611
        %v707 = vsub.f32 %v483, %v611
        %v708 = vmul.f32 %v612, 1.442695
        %v709 = vpow.pop %v708
        %v710 = vmul.f32 %v613, 1.442695
        %v711 = vpow.pop %v710
        %v712 = vmul.f32 %v614, 1.442695
        %v713 = vpow.pop %v712
        %v714 = vmul.f32 %v615, 1.442695
        %v715 = vpow.pop %v714
        %v716 = vmul.f32 %v616, 1.442695
        %v717 = vpow.pop %v716
        %v718 = vmul.f32 %v617, 1.442695
        %v719 = vpow.pop %v718
        %v720 = vmul.f32 %v618, 1.442695
        %v721 = vpow.pop %v720
        %v722 = vmul.f32 %v619, 1.442695
        %v723 = vpow.pop %v722
        %v724 = vmul.f32 %v620, 1.442695
        %v725 = vpow.pop %v724
        %v726 = vmul.f32 %v621, 1.442695
        %v727 = vpow.pop %v726
        %v728 = vmul.f32 %v622, 1.442695
        %v729 = vpow.pop %v728
        %v730 = vmul.f32 %v623, 1.442695
        %v731 = vpow.pop %v730
        %v732 = vmul.f32 %v624, 1.442695
        %v733 = vpow.pop %v732
        %v734 = vmul.f32 %v625, 1.442695
        %v735 = vpow.pop %v734
        %v736 = vmul.f32 %v626, 1.442695
        %v737 = vpow.pop %v736
        %v738 = vmul.f32 %v627, 1.442695
        %v739 = vpow.pop %v738
        %v740 = vmul.f32 %v628, 1.442695
        %v741 = vpow.pop %v740
        %v742 = vmul.f32 %v629, 1.442695
        %v743 = vpow.pop %v742
        %v744 = vmul.f32 %v630, 1.442695
        %v745 = vpow.pop %v744
        %v746 = vmul.f32 %v631, 1.442695
        %v747 = vpow.pop %v746
        %v748 = vmul.f32 %v632, 1.442695
        %v749 = vpow.pop %v748
        %v750 = vmul.f32 %v633, 1.442695
        %v751 = vpow.pop %v750
        %v752 = vmul.f32 %v634, 1.442695
        %v753 = vpow.pop %v752
        %v754 = vmul.f32 %v635, 1.442695
        %v755 = vpow.pop %v754
        %v756 = vmul.f32 %v636, 1.442695
        %v757 = vpow.pop %v756
        %v758 = vmul.f32 %v637, 1.442695
        %v759 = vpow.pop %v758
        %v760 = vmul.f32 %v638, 1.442695
        %v761 = vpow.pop %v760
        %v762 = vmul.f32 %v639, 1.442695
        %v763 = vpow.pop %v762
        %v764 = vmul.f32 %v640, 1.442695
        %v765 = vpow.pop %v764
        %v766 = vmul.f32 %v641, 1.442695
        %v767 = vpow.pop %v766
        %v768 = vmul.f32 %v642, 1.442695
        %v769 = vpow.pop %v768
        %v770 = vmul.f32 %v643, 1.442695
        %v771 = vpow.pop %v770
        %v772 = vmul.f32 %v644, 1.442695
        %v773 = vpow.pop %v772
        %v774 = vmul.f32 %v645, 1.442695
        %v775 = vpow.pop %v774
        %v776 = vmul.f32 %v646, 1.442695
        %v777 = vpow.pop %v776
        %v778 = vmul.f32 %v647, 1.442695
        %v779 = vpow.pop %v778
        %v780 = vmul.f32 %v648, 1.442695
        %v781 = vpow.pop %v780
        %v782 = vmul.f32 %v649, 1.442695
        %v783 = vpow.pop %v782
        %v784 = vmul.f32 %v650, 1.442695
        %v785 = vpow.pop %v784
        %v786 = vmul.f32 %v651, 1.442695
        %v787 = vpow.pop %v786
        %v788 = vmul.f32 %v652, 1.442695
        %v789 = vpow.pop %v788
        %v790 = vmul.f32 %v653, 1.442695
        %v791 = vpow.pop %v790
        %v792 = vmul.f32 %v654, 1.442695
        %v793 = vpow.pop %v792
        %v794 = vmul.f32 %v655, 1.442695
        %v795 = vpow.pop %v794
        %v796 = vmul.f32 %v656, 1.442695
        %v797 = vpow.pop %v796
        %v798 = vmul.f32 %v657, 1.442695
        %v799 = vpow.pop %v798
        %v800 = vmul.f32 %v658, 1.442695
        %v801 = vpow.pop %v800
        %v802 = vmul.f32 %v659, 1.442695
        %v803 = vpow.pop %v802
        %v804 = vmul.f32 %v660, 1.442695
        %v805 = vpow.pop %v804
        %v806 = vmul.f32 %v661, 1.442695
        %v807 = vpow.pop %v806
        %v808 = vmul.f32 %v662, 1.442695
        %v809 = vpow.pop %v808
        %v810 = vmul.f32 %v663, 1.442695
        %v811 = vpow.pop %v810
        %v812 = vmul.f32 %v664, 1.442695
        %v813 = vpow.pop %v812
        %v814 = vmul.f32 %v665, 1.442695
        %v815 = vpow.pop %v814
        %v816 = vmul.f32 %v666, 1.442695
        %v817 = vpow.pop %v816
        %v818 = vmul.f32 %v667, 1.442695
        %v819 = vpow.pop %v818
        %v820 = vmul.f32 %v668, 1.442695
        %v821 = vpow.pop %v820
        %v822 = vmul.f32 %v669, 1.442695
        %v823 = vpow.pop %v822
        %v824 = vmul.f32 %v670, 1.442695
        %v825 = vpow.pop %v824
        %v826 = vmul.f32 %v671, 1.442695
        %v827 = vpow.pop %v826
        %v828 = vmul.f32 %v672, 1.442695
        %v829 = vpow.pop %v828
        %v830 = vmul.f32 %v673, 1.442695
        %v831 = vpow.pop %v830
        %v832 = vmul.f32 %v674, 1.442695
        %v833 = vpow.pop %v832
        %v834 = vmul.f32 %v675, 1.442695
        %v835 = vpow.pop %v834
        %v836 = vmul.f32 %v676, 1.442695
        %v837 = vpow.pop %v836
        %v838 = vmul.f32 %v677, 1.442695
        %v839 = vpow.pop %v838
        %v840 = vmul.f32 %v678, 1.442695
        %v841 = vpow.pop %v840
        %v842 = vmul.f32 %v679, 1.442695
        %v843 = vpow.pop %v842
        %v844 = vmul.f32 %v680, 1.442695
        %v845 = vpow.pop %v844
        %v846 = vmul.f32 %v681, 1.442695
        %v847 = vpow.pop %v846
        %v848 = vmul.f32 %v682, 1.442695
        %v849 = vpow.pop %v848
        %v850 = vmul.f32 %v683, 1.442695
        %v851 = vpow.pop %v850
        %v852 = vmul.f32 %v684, 1.442695
        %v853 = vpow.pop %v852
        %v854 = vmul.f32 %v685, 1.442695
        %v855 = vpow.pop %v854
        %v856 = vmul.f32 %v686, 1.442695
        %v857 = vpow.pop %v856
        %v858 = vmul.f32 %v687, 1.442695
        %v859 = vpow.pop %v858
        %v860 = vmul.f32 %v688, 1.442695
        %v861 = vpow.pop %v860
        %v862 = vmul.f32 %v689, 1.442695
        %v863 = vpow.pop %v862
        %v864 = vmul.f32 %v690, 1.442695
        %v865 = vpow.pop %v864
        %v866 = vmul.f32 %v691, 1.442695
        %v867 = vpow.pop %v866
        %v868 = vmul.f32 %v692, 1.442695
        %v869 = vpow.pop %v868
        %v870 = vmul.f32 %v693, 1.442695
        %v871 = vpow.pop %v870
        %v872 = vmul.f32 %v694, 1.442695
        %v873 = vpow.pop %v872
        %v874 = vmul.f32 %v695, 1.442695
        %v875 = vpow.pop %v874
        %v876 = vmul.f32 %v696, 1.442695
        %v877 = vpow.pop %v876
        %v878 = vmul.f32 %v697, 1.442695
        %v879 = vpow.pop %v878
        %v880 = vmul.f32 %v698, 1.442695
        %v881 = vpow.pop %v880
        %v882 = vmul.f32 %v699, 1.442695
        %v883 = vpow.pop %v882
        %v884 = vmul.f32 %v700, 1.442695
        %v885 = vpow.pop %v884
        %v886 = vmul.f32 %v701, 1.442695
        %v887 = vpow.pop %v886
        %v888 = vmul.f32 %v702, 1.442695
        %v889 = vpow.pop %v888
        %v890 = vmul.f32 %v703, 1.442695
        %v891 = vpow.pop %v890
        %v892 = vmul.f32 %v704, 1.442695
        %v893 = vpow.pop %v892
        %v894 = vmul.f32 %v705, 1.442695
        %v895 = vpow.pop %v894
        %v896 = vmul.f32 %v706, 1.442695
        %v897 = vpow.pop %v896
        %v898 = vmul.f32 %v707, 1.442695
        %v899 = vpow.pop %v898
        %v900 = vadd.f32 %v709, %v711
        %v901 = vadd.f32 %v900, %v713
        %902 = vadd.xlane.f32.xlu0 %v901
        %v903 = vpop.xlane.xlu0 %902
        %v904 = vadd.f32 %v715, %v717
        %v905 = vadd.f32 %v904, %v719
        %906 = vadd.xlane.f32.xlu0 %v905
        %v907 = vpop.xlane.xlu0 %906
        %v908 = vadd.f32 %v721, %v723
        %v909 = vadd.f32 %v908, %v725
        %910 = vadd.xlane.f32.xlu0 %v909
        %v911 = vpop.xlane.xlu0 %910
        %v912 = vadd.f32 %v727, %v729
        %v913 = vadd.f32 %v912, %v731
        %914 = vadd.xlane.f32.xlu0 %v913
        %v915 = vpop.xlane.xlu0 %914
        %v916 = vadd.f32 %v733, %v735
        %v917 = vadd.f32 %v916, %v737
        %918 = vadd.xlane.f32.xlu0 %v917
        %v919 = vpop.xlane.xlu0 %918
        %v920 = vadd.f32 %v739, %v741
        %v921 = vadd.f32 %v920, %v743
        %922 = vadd.xlane.f32.xlu0 %v921
        %v923 = vpop.xlane.xlu0 %922
        %v924 = vadd.f32 %v745, %v747
        %v925 = vadd.f32 %v924, %v749
        %926 = vadd.xlane.f32.xlu0 %v925
        %v927 = vpop.xlane.xlu0 %926
        %v928 = vadd.f32 %v751, %v753
        %v929 = vadd.f32 %v928, %v755
        %930 = vadd.xlane.f32.xlu0 %v929
        %v931 = vpop.xlane.xlu0 %930
        %v932 = vadd.f32 %v757, %v759
        %v933 = vadd.f32 %v932, %v761
        %934 = vadd.xlane.f32.xlu0 %v933
        %v935 = vpop.xlane.xlu0 %934
        %v936 = vadd.f32 %v763, %v765
        %v937 = vadd.f32 %v936, %v767
        %938 = vadd.xlane.f32.xlu0 %v937
        %v939 = vpop.xlane.xlu0 %938
        %v940 = vadd.f32 %v769, %v771
        %v941 = vadd.f32 %v940, %v773
        %942 = vadd.xlane.f32.xlu0 %v941
        %v943 = vpop.xlane.xlu0 %942
        %v944 = vadd.f32 %v775, %v777
        %v945 = vadd.f32 %v944, %v779
        %946 = vadd.xlane.f32.xlu0 %v945
        %v947 = vpop.xlane.xlu0 %946
        %v948 = vadd.f32 %v781, %v783
        %v949 = vadd.f32 %v948, %v785
        %950 = vadd.xlane.f32.xlu0 %v949
        %v951 = vpop.xlane.xlu0 %950
        %v952 = vadd.f32 %v787, %v789
        %v953 = vadd.f32 %v952, %v791
        %954 = vadd.xlane.f32.xlu0 %v953
        %v955 = vpop.xlane.xlu0 %954
        %v956 = vadd.f32 %v793, %v795
        %v957 = vadd.f32 %v956, %v797
        %958 = vadd.xlane.f32.xlu0 %v957
        %v959 = vpop.xlane.xlu0 %958
        %v960 = vadd.f32 %v799, %v801
        %v961 = vadd.f32 %v960, %v803
        %962 = vadd.xlane.f32.xlu0 %v961
        %v963 = vpop.xlane.xlu0 %962
        %v964 = vadd.f32 %v805, %v807
        %v965 = vadd.f32 %v964, %v809
        %966 = vadd.xlane.f32.xlu0 %v965
        %v967 = vpop.xlane.xlu0 %966
        %v968 = vadd.f32 %v811, %v813
        %v969 = vadd.f32 %v968, %v815
        %970 = vadd.xlane.f32.xlu0 %v969
        %v971 = vpop.xlane.xlu0 %970
        %v972 = vadd.f32 %v817, %v819
        %v973 = vadd.f32 %v972, %v821
        %974 = vadd.xlane.f32.xlu0 %v973
        %v975 = vpop.xlane.xlu0 %974
        %v976 = vadd.f32 %v823, %v825
        %v977 = vadd.f32 %v976, %v827
        %978 = vadd.xlane.f32.xlu0 %v977
        %v979 = vpop.xlane.xlu0 %978
        %v980 = vadd.f32 %v829, %v831
        %v981 = vadd.f32 %v980, %v833
        %982 = vadd.xlane.f32.xlu0 %v981
        %v983 = vpop.xlane.xlu0 %982
        %v984 = vadd.f32 %v835, %v837
        %v985 = vadd.f32 %v984, %v839
        %986 = vadd.xlane.f32.xlu0 %v985
        %v987 = vpop.xlane.xlu0 %986
        %v988 = vadd.f32 %v841, %v843
        %v989 = vadd.f32 %v988, %v845
        %990 = vadd.xlane.f32.xlu0 %v989
        %v991 = vpop.xlane.xlu0 %990
        %v992 = vadd.f32 %v847, %v849
        %v993 = vadd.f32 %v992, %v851
        %994 = vadd.xlane.f32.xlu0 %v993
        %v995 = vpop.xlane.xlu0 %994
        %v996 = vadd.f32 %v853, %v855
        %v997 = vadd.f32 %v996, %v857
        %998 = vadd.xlane.f32.xlu0 %v997
        %v999 = vpop.xlane.xlu0 %998
        %v1000 = vadd.f32 %v859, %v861
        %v1001 = vadd.f32 %v1000, %v863
        %1002 = vadd.xlane.f32.xlu0 %v1001
        %v1003 = vpop.xlane.xlu0 %1002
        %v1004 = vadd.f32 %v865, %v867
        %v1005 = vadd.f32 %v1004, %v869
        %1006 = vadd.xlane.f32.xlu0 %v1005
        %v1007 = vpop.xlane.xlu0 %1006
        %v1008 = vadd.f32 %v871, %v873
        %v1009 = vadd.f32 %v1008, %v875
        %1010 = vadd.xlane.f32.xlu0 %v1009
        %v1011 = vpop.xlane.xlu0 %1010
        %v1012 = vadd.f32 %v877, %v879
        %v1013 = vadd.f32 %v1012, %v881
        %1014 = vadd.xlane.f32.xlu0 %v1013
        %v1015 = vpop.xlane.xlu0 %1014
        %v1016 = vadd.f32 %v883, %v885
        %v1017 = vadd.f32 %v1016, %v887
        %1018 = vadd.xlane.f32.xlu0 %v1017
        %v1019 = vpop.xlane.xlu0 %1018
        %v1020 = vadd.f32 %v889, %v891
        %v1021 = vadd.f32 %v1020, %v893
        %1022 = vadd.xlane.f32.xlu0 %v1021
        %v1023 = vpop.xlane.xlu0 %1022
        %v1024 = vadd.f32 %v895, %v897
        %v1025 = vadd.f32 %v1024, %v899
        %1026 = vadd.xlane.f32.xlu0 %v1025
        %v1027 = vpop.xlane.xlu0 %1026
        %v1028 = vrcp.pop %v903
        %v1029 = vmul.f32 1.1111112, %v1028
        %v1030 = vrcp.pop %v907
        %v1031 = vmul.f32 1.1111112, %v1030
        %v1032 = vrcp.pop %v911
        %v1033 = vmul.f32 1.1111112, %v1032
        %v1034 = vrcp.pop %v915
        %v1035 = vmul.f32 1.1111112, %v1034
        %v1036 = vrcp.pop %v919
        %v1037 = vmul.f32 1.1111112, %v1036
        %v1038 = vrcp.pop %v923
        %v1039 = vmul.f32 1.1111112, %v1038
        %v1040 = vrcp.pop %v927
        %v1041 = vmul.f32 1.1111112, %v1040
        %v1042 = vrcp.pop %v931
        %v1043 = vmul.f32 1.1111112, %v1042
        %v1044 = vrcp.pop %v935
        %v1045 = vmul.f32 1.1111112, %v1044
        %v1046 = vrcp.pop %v939
        %v1047 = vmul.f32 1.1111112, %v1046
        %v1048 = vrcp.pop %v943
        %v1049 = vmul.f32 1.1111112, %v1048
        %v1050 = vrcp.pop %v947
        %v1051 = vmul.f32 1.1111112, %v1050
        %v1052 = vrcp.pop %v951
        %v1053 = vmul.f32 1.1111112, %v1052
        %v1054 = vrcp.pop %v955
        %v1055 = vmul.f32 1.1111112, %v1054
        %v1056 = vrcp.pop %v959
        %v1057 = vmul.f32 1.1111112, %v1056
        %v1058 = vrcp.pop %v963
        %v1059 = vmul.f32 1.1111112, %v1058
        %v1060 = vrcp.pop %v967
        %v1061 = vmul.f32 1.1111112, %v1060
        %v1062 = vrcp.pop %v971
        %v1063 = vmul.f32 1.1111112, %v1062
        %v1064 = vrcp.pop %v975
        %v1065 = vmul.f32 1.1111112, %v1064
        %v1066 = vrcp.pop %v979
        %v1067 = vmul.f32 1.1111112, %v1066
        %v1068 = vrcp.pop %v983
        %v1069 = vmul.f32 1.1111112, %v1068
        %v1070 = vrcp.pop %v987
        %v1071 = vmul.f32 1.1111112, %v1070
        %v1072 = vrcp.pop %v991
        %v1073 = vmul.f32 1.1111112, %v1072
        %v1074 = vrcp.pop %v995
        %v1075 = vmul.f32 1.1111112, %v1074
        %v1076 = vrcp.pop %v999
        %v1077 = vmul.f32 1.1111112, %v1076
        %v1078 = vrcp.pop %v1003
        %v1079 = vmul.f32 1.1111112, %v1078
        %v1080 = vrcp.pop %v1007
        %v1081 = vmul.f32 1.1111112, %v1080
        %v1082 = vrcp.pop %v1011
        %v1083 = vmul.f32 1.1111112, %v1082
        %v1084 = vrcp.pop %v1015
        %v1085 = vmul.f32 1.1111112, %v1084
        %v1086 = vrcp.pop %v1019
        %v1087 = vmul.f32 1.1111112, %v1086
        %v1088 = vrcp.pop %v1023
        %v1089 = vmul.f32 1.1111112, %v1088
        %v1090 = vrcp.pop %v1027
        %v1091 = vmul.f32 1.1111112, %v1090
        %s1092 = smul.u32 %s24, 2
        %s1093 = smul.u32 %s25, 128
        %v1094 = vlaneseq
        %v1095 = vshrl.u32 %v1094, 7
        %v1096 = vadd.s32 %v1095, 8
        %v1097 = vadd.s32 %v1095, 16
        %v1098 = vadd.s32 %v1095, 24
        %v1099 = vadd.s32 %v1095, 32
        %v1100 = vadd.s32 %v1095, 40
        %v1101 = vadd.s32 %v1095, 48
        %v1102 = vadd.s32 %v1095, 56
        %v1103 = vadd.s32 %v1095, 64
        %v1104 = vadd.s32 %v1095, 72
        %v1105 = vadd.s32 %v1095, 80
        %v1106 = vadd.s32 %v1095, 88
        %v1107 = vadd.s32 %v1095, 96
        %v1108 = vadd.s32 %v1095, 104
        %v1109 = vadd.s32 %v1095, 112
        %v1110 = vadd.s32 %v1095, 120
        %v1111 = vlaneseq
        %v1112 = vand.u32 %v1111, 127
        %v1113 = vadd.s32 %v1112, 128
        %v1114 = vadd.s32 %v1112, 256
        %s1115 = sld [smem:[#allocation3]]
        %v1116 = vstv %s1092
        %v1117 = vadd.s32 %v1116, 1
        %v1118 = vmul.u32 %v1116, 384
        %v1119 = vmul.u32 %v1117, 384
        %v1120 = vstv %s1093
        %v1121 = vadd.s32 %v1095, %v1120
        %v1122 = vadd.s32 %v1096, %v1120
        %v1123 = vadd.s32 %v1097, %v1120
        %v1124 = vadd.s32 %v1098, %v1120
        %v1125 = vadd.s32 %v1099, %v1120
        %v1126 = vadd.s32 %v1100, %v1120
        %v1127 = vadd.s32 %v1101, %v1120
        %v1128 = vadd.s32 %v1102, %v1120
        %v1129 = vadd.s32 %v1103, %v1120
        %v1130 = vadd.s32 %v1104, %v1120
        %v1131 = vadd.s32 %v1105, %v1120
        %v1132 = vadd.s32 %v1106, %v1120
        %v1133 = vadd.s32 %v1107, %v1120
        %v1134 = vadd.s32 %v1108, %v1120
        %v1135 = vadd.s32 %v1109, %v1120
        %v1136 = vadd.s32 %v1110, %v1120
        %v1137 = vadd.s32 %v1118, %v1121
        %v1138 = vadd.s32 %v1118, %v1122
        %v1139 = vadd.s32 %v1118, %v1123
        %v1140 = vadd.s32 %v1118, %v1124
        %v1141 = vadd.s32 %v1118, %v1125
        %v1142 = vadd.s32 %v1118, %v1126
        %v1143 = vadd.s32 %v1118, %v1127
        %v1144 = vadd.s32 %v1118, %v1128
        %v1145 = vadd.s32 %v1118, %v1129
        %v1146 = vadd.s32 %v1118, %v1130
        %v1147 = vadd.s32 %v1118, %v1131
        %v1148 = vadd.s32 %v1118, %v1132
        %v1149 = vadd.s32 %v1118, %v1133
        %v1150 = vadd.s32 %v1118, %v1134
        %v1151 = vadd.s32 %v1118, %v1135
        %v1152 = vadd.s32 %v1118, %v1136
        %v1153 = vadd.s32 %v1119, %v1121
        %v1154 = vadd.s32 %v1119, %v1122
        %v1155 = vadd.s32 %v1119, %v1123
        %v1156 = vadd.s32 %v1119, %v1124
        %v1157 = vadd.s32 %v1119, %v1125
        %v1158 = vadd.s32 %v1119, %v1126
        %v1159 = vadd.s32 %v1119, %v1127
        %v1160 = vadd.s32 %v1119, %v1128
        %v1161 = vadd.s32 %v1119, %v1129
        %v1162 = vadd.s32 %v1119, %v1130
        %v1163 = vadd.s32 %v1119, %v1131
        %v1164 = vadd.s32 %v1119, %v1132
        %v1165 = vadd.s32 %v1119, %v1133
        %v1166 = vadd.s32 %v1119, %v1134
        %v1167 = vadd.s32 %v1119, %v1135
        %v1168 = vadd.s32 %v1119, %v1136
        %v1169 = vmul.u32 %v1137, 384
        %v1170 = vmul.u32 %v1138, 384
        %v1171 = vmul.u32 %v1139, 384
        %v1172 = vmul.u32 %v1140, 384
        %v1173 = vmul.u32 %v1141, 384
        %v1174 = vmul.u32 %v1142, 384
        %v1175 = vmul.u32 %v1143, 384
        %v1176 = vmul.u32 %v1144, 384
        %v1177 = vmul.u32 %v1145, 384
        %v1178 = vmul.u32 %v1146, 384
        %v1179 = vmul.u32 %v1147, 384
        %v1180 = vmul.u32 %v1148, 384
        %v1181 = vmul.u32 %v1149, 384
        %v1182 = vmul.u32 %v1150, 384
        %v1183 = vmul.u32 %v1151, 384
        %v1184 = vmul.u32 %v1152, 384
        %v1185 = vmul.u32 %v1153, 384
        %v1186 = vmul.u32 %v1154, 384
        %v1187 = vmul.u32 %v1155, 384
        %v1188 = vmul.u32 %v1156, 384
        %v1189 = vmul.u32 %v1157, 384
        %v1190 = vmul.u32 %v1158, 384
        %v1191 = vmul.u32 %v1159, 384
        %v1192 = vmul.u32 %v1160, 384
        %v1193 = vmul.u32 %v1161, 384
        %v1194 = vmul.u32 %v1162, 384
        %v1195 = vmul.u32 %v1163, 384
        %v1196 = vmul.u32 %v1164, 384
        %v1197 = vmul.u32 %v1165, 384
        %v1198 = vmul.u32 %v1166, 384
        %v1199 = vmul.u32 %v1167, 384
        %v1200 = vmul.u32 %v1168, 384
        %v1201 = vmul.u32 %v1169, 2654435769
        %v1202 = vmul.u32 %v1170, 2654435769
        %v1203 = vmul.u32 %v1171, 2654435769
        %v1204 = vmul.u32 %v1172, 2654435769
        %v1205 = vmul.u32 %v1173, 2654435769
        %v1206 = vmul.u32 %v1174, 2654435769
        %v1207 = vmul.u32 %v1175, 2654435769
        %v1208 = vmul.u32 %v1176, 2654435769
        %v1209 = vmul.u32 %v1177, 2654435769
        %v1210 = vmul.u32 %v1178, 2654435769
        %v1211 = vmul.u32 %v1179, 2654435769
        %v1212 = vmul.u32 %v1180, 2654435769
        %v1213 = vmul.u32 %v1181, 2654435769
        %v1214 = vmul.u32 %v1182, 2654435769
        %v1215 = vmul.u32 %v1183, 2654435769
        %v1216 = vmul.u32 %v1184, 2654435769
        %v1217 = vmul.u32 %v1185, 2654435769
        %v1218 = vmul.u32 %v1186, 2654435769
        %v1219 = vmul.u32 %v1187, 2654435769
        %v1220 = vmul.u32 %v1188, 2654435769
        %v1221 = vmul.u32 %v1189, 2654435769
        %v1222 = vmul.u32 %v1190, 2654435769
        %v1223 = vmul.u32 %v1191, 2654435769
        %v1224 = vmul.u32 %v1192, 2654435769
        %v1225 = vmul.u32 %v1193, 2654435769
        %v1226 = vmul.u32 %v1194, 2654435769
        %v1227 = vmul.u32 %v1195, 2654435769
        %v1228 = vmul.u32 %v1196, 2654435769
        %v1229 = vmul.u32 %v1197, 2654435769
        %v1230 = vmul.u32 %v1198, 2654435769
        %v1231 = vmul.u32 %v1199, 2654435769
        %v1232 = vmul.u32 %v1200, 2654435769
        %v1233 = vstv %s1115
        %v1234 = vadd.s32 %v1233, %v1201
        %v1235 = vadd.s32 %v1233, %v1202
        %v1236 = vadd.s32 %v1233, %v1203
        %v1237 = vadd.s32 %v1233, %v1204
        %v1238 = vadd.s32 %v1233, %v1205
        %v1239 = vadd.s32 %v1233, %v1206
        %v1240 = vadd.s32 %v1233, %v1207
        %v1241 = vadd.s32 %v1233, %v1208
        %v1242 = vadd.s32 %v1233, %v1209
        %v1243 = vadd.s32 %v1233, %v1210
        %v1244 = vadd.s32 %v1233, %v1211
        %v1245 = vadd.s32 %v1233, %v1212
        %v1246 = vadd.s32 %v1233, %v1213
        %v1247 = vadd.s32 %v1233, %v1214
        %v1248 = vadd.s32 %v1233, %v1215
        %v1249 = vadd.s32 %v1233, %v1216
        %v1250 = vadd.s32 %v1233, %v1217
        %v1251 = vadd.s32 %v1233, %v1218
        %v1252 = vadd.s32 %v1233, %v1219
        %v1253 = vadd.s32 %v1233, %v1220
        %v1254 = vadd.s32 %v1233, %v1221
        %v1255 = vadd.s32 %v1233, %v1222
        %v1256 = vadd.s32 %v1233, %v1223
        %v1257 = vadd.s32 %v1233, %v1224
        %v1258 = vadd.s32 %v1233, %v1225
        %v1259 = vadd.s32 %v1233, %v1226
        %v1260 = vadd.s32 %v1233, %v1227
        %v1261 = vadd.s32 %v1233, %v1228
        %v1262 = vadd.s32 %v1233, %v1229
        %v1263 = vadd.s32 %v1233, %v1230
        %v1264 = vadd.s32 %v1233, %v1231
        %v1265 = vadd.s32 %v1233, %v1232
        %v1266 = vmul.u32 %v1112, 2654435769
        %v1267 = vmul.u32 %v1113, 2654435769
        %v1268 = vmul.u32 %v1114, 2654435769
        %v1269 = vadd.s32 %v1234, %v1266
        %v1270 = vadd.s32 %v1234, %v1267
        %v1271 = vadd.s32 %v1234, %v1268
        %v1272 = vadd.s32 %v1235, %v1266
        %v1273 = vadd.s32 %v1235, %v1267
        %v1274 = vadd.s32 %v1235, %v1268
        %v1275 = vadd.s32 %v1236, %v1266
        %v1276 = vadd.s32 %v1236, %v1267
        %v1277 = vadd.s32 %v1236, %v1268
        %v1278 = vadd.s32 %v1237, %v1266
        %v1279 = vadd.s32 %v1237, %v1267
        %v1280 = vadd.s32 %v1237, %v1268
        %v1281 = vadd.s32 %v1238, %v1266
        %v1282 = vadd.s32 %v1238, %v1267
        %v1283 = vadd.s32 %v1238, %v1268
        %v1284 = vadd.s32 %v1239, %v1266
        %v1285 = vadd.s32 %v1239, %v1267
        %v1286 = vadd.s32 %v1239, %v1268
        %v1287 = vadd.s32 %v1240, %v1266
        %v1288 = vadd.s32 %v1240, %v1267
        %v1289 = vadd.s32 %v1240, %v1268
        %v1290 = vadd.s32 %v1241, %v1266
        %v1291 = vadd.s32 %v1241, %v1267
        %v1292 = vadd.s32 %v1241, %v1268
        %v1293 = vadd.s32 %v1242, %v1266
        %v1294 = vadd.s32 %v1242, %v1267
        %v1295 = vadd.s32 %v1242, %v1268
        %v1296 = vadd.s32 %v1243, %v1266
        %v1297 = vadd.s32 %v1243, %v1267
        %v1298 = vadd.s32 %v1243, %v1268
        %v1299 = vadd.s32 %v1244, %v1266
        %v1300 = vadd.s32 %v1244, %v1267
        %v1301 = vadd.s32 %v1244, %v1268
        %v1302 = vadd.s32 %v1245, %v1266
        %v1303 = vadd.s32 %v1245, %v1267
        %v1304 = vadd.s32 %v1245, %v1268
        %v1305 = vadd.s32 %v1246, %v1266
        %v1306 = vadd.s32 %v1246, %v1267
        %v1307 = vadd.s32 %v1246, %v1268
        %v1308 = vadd.s32 %v1247, %v1266
        %v1309 = vadd.s32 %v1247, %v1267
        %v1310 = vadd.s32 %v1247, %v1268
        %v1311 = vadd.s32 %v1248, %v1266
        %v1312 = vadd.s32 %v1248, %v1267
        %v1313 = vadd.s32 %v1248, %v1268
        %v1314 = vadd.s32 %v1249, %v1266
        %v1315 = vadd.s32 %v1249, %v1267
        %v1316 = vadd.s32 %v1249, %v1268
        %v1317 = vadd.s32 %v1250, %v1266
        %v1318 = vadd.s32 %v1250, %v1267
        %v1319 = vadd.s32 %v1250, %v1268
        %v1320 = vadd.s32 %v1251, %v1266
        %v1321 = vadd.s32 %v1251, %v1267
        %v1322 = vadd.s32 %v1251, %v1268
        %v1323 = vadd.s32 %v1252, %v1266
        %v1324 = vadd.s32 %v1252, %v1267
        %v1325 = vadd.s32 %v1252, %v1268
        %v1326 = vadd.s32 %v1253, %v1266
        %v1327 = vadd.s32 %v1253, %v1267
        %v1328 = vadd.s32 %v1253, %v1268
        %v1329 = vadd.s32 %v1254, %v1266
        %v1330 = vadd.s32 %v1254, %v1267
        %v1331 = vadd.s32 %v1254, %v1268
        %v1332 = vadd.s32 %v1255, %v1266
        %v1333 = vadd.s32 %v1255, %v1267
        %v1334 = vadd.s32 %v1255, %v1268
        %v1335 = vadd.s32 %v1256, %v1266
        %v1336 = vadd.s32 %v1256, %v1267
        %v1337 = vadd.s32 %v1256, %v1268
        %v1338 = vadd.s32 %v1257, %v1266
        %v1339 = vadd.s32 %v1257, %v1267
        %v1340 = vadd.s32 %v1257, %v1268
        %v1341 = vadd.s32 %v1258, %v1266
        %v1342 = vadd.s32 %v1258, %v1267
        %v1343 = vadd.s32 %v1258, %v1268
        %v1344 = vadd.s32 %v1259, %v1266
        %v1345 = vadd.s32 %v1259, %v1267
        %v1346 = vadd.s32 %v1259, %v1268
        %v1347 = vadd.s32 %v1260, %v1266
        %v1348 = vadd.s32 %v1260, %v1267
        %v1349 = vadd.s32 %v1260, %v1268
        %v1350 = vadd.s32 %v1261, %v1266
        %v1351 = vadd.s32 %v1261, %v1267
        %v1352 = vadd.s32 %v1261, %v1268
        %v1353 = vadd.s32 %v1262, %v1266
        %v1354 = vadd.s32 %v1262, %v1267
        %v1355 = vadd.s32 %v1262, %v1268
        %v1356 = vadd.s32 %v1263, %v1266
        %v1357 = vadd.s32 %v1263, %v1267
        %v1358 = vadd.s32 %v1263, %v1268
        %v1359 = vadd.s32 %v1264, %v1266
        %v1360 = vadd.s32 %v1264, %v1267
        %v1361 = vadd.s32 %v1264, %v1268
        %v1362 = vadd.s32 %v1265, %v1266
        %v1363 = vadd.s32 %v1265, %v1267
        %v1364 = vadd.s32 %v1265, %v1268
        %v1365 = vshra.s32 %v1269, 16
        %v1366 = vshra.s32 %v1270, 16
        %v1367 = vshra.s32 %v1271, 16
        %v1368 = vshra.s32 %v1272, 16
        %v1369 = vshra.s32 %v1273, 16
        %v1370 = vshra.s32 %v1274, 16
        %v1371 = vshra.s32 %v1275, 16
        %v1372 = vshra.s32 %v1276, 16
        %v1373 = vshra.s32 %v1277, 16
        %v1374 = vshra.s32 %v1278, 16
        %v1375 = vshra.s32 %v1279, 16
        %v1376 = vshra.s32 %v1280, 16
        %v1377 = vshra.s32 %v1281, 16
        %v1378 = vshra.s32 %v1282, 16
        %v1379 = vshra.s32 %v1283, 16
        %v1380 = vshra.s32 %v1284, 16
        %v1381 = vshra.s32 %v1285, 16
        %v1382 = vshra.s32 %v1286, 16
        %v1383 = vshra.s32 %v1287, 16
        %v1384 = vshra.s32 %v1288, 16
        %v1385 = vshra.s32 %v1289, 16
        %v1386 = vshra.s32 %v1290, 16
        %v1387 = vshra.s32 %v1291, 16
        %v1388 = vshra.s32 %v1292, 16
        %v1389 = vshra.s32 %v1293, 16
        %v1390 = vshra.s32 %v1294, 16
        %v1391 = vshra.s32 %v1295, 16
        %v1392 = vshra.s32 %v1296, 16
        %v1393 = vshra.s32 %v1297, 16
        %v1394 = vshra.s32 %v1298, 16
        %v1395 = vshra.s32 %v1299, 16
        %v1396 = vshra.s32 %v1300, 16
        %v1397 = vshra.s32 %v1301, 16
        %v1398 = vshra.s32 %v1302, 16
        %v1399 = vshra.s32 %v1303, 16
        %v1400 = vshra.s32 %v1304, 16
        %v1401 = vshra.s32 %v1305, 16
        %v1402 = vshra.s32 %v1306, 16
        %v1403 = vshra.s32 %v1307, 16
        %v1404 = vshra.s32 %v1308, 16
        %v1405 = vshra.s32 %v1309, 16
        %v1406 = vshra.s32 %v1310, 16
        %v1407 = vshra.s32 %v1311, 16
        %v1408 = vshra.s32 %v1312, 16
        %v1409 = vshra.s32 %v1313, 16
        %v1410 = vshra.s32 %v1314, 16
        %v1411 = vshra.s32 %v1315, 16
        %v1412 = vshra.s32 %v1316, 16
        %v1413 = vshra.s32 %v1317, 16
        %v1414 = vshra.s32 %v1318, 16
        %v1415 = vshra.s32 %v1319, 16
        %v1416 = vshra.s32 %v1320, 16
        %v1417 = vshra.s32 %v1321, 16
        %v1418 = vshra.s32 %v1322, 16
        %v1419 = vshra.s32 %v1323, 16
        %v1420 = vshra.s32 %v1324, 16
        %v1421 = vshra.s32 %v1325, 16
        %v1422 = vshra.s32 %v1326, 16
        %v1423 = vshra.s32 %v1327, 16
        %v1424 = vshra.s32 %v1328, 16
        %v1425 = vshra.s32 %v1329, 16
        %v1426 = vshra.s32 %v1330, 16
        %v1427 = vshra.s32 %v1331, 16
        %v1428 = vshra.s32 %v1332, 16
        %v1429 = vshra.s32 %v1333, 16
        %v1430 = vshra.s32 %v1334, 16
        %v1431 = vshra.s32 %v1335, 16
        %v1432 = vshra.s32 %v1336, 16
        %v1433 = vshra.s32 %v1337, 16
        %v1434 = vshra.s32 %v1338, 16
        %v1435 = vshra.s32 %v1339, 16
        %v1436 = vshra.s32 %v1340, 16
        %v1437 = vshra.s32 %v1341, 16
        %v1438 = vshra.s32 %v1342, 16
        %v1439 = vshra.s32 %v1343, 16
        %v1440 = vshra.s32 %v1344, 16
        %v1441 = vshra.s32 %v1345, 16
        %v1442 = vshra.s32 %v1346, 16
        %v1443 = vshra.s32 %v1347, 16
        %v1444 = vshra.s32 %v1348, 16
        %v1445 = vshra.s32 %v1349, 16
        %v1446 = vshra.s32 %v1350, 16
        %v1447 = vshra.s32 %v1351, 16
        %v1448 = vshra.s32 %v1352, 16
        %v1449 = vshra.s32 %v1353, 16
        %v1450 = vshra.s32 %v1354, 16
        %v1451 = vshra.s32 %v1355, 16
        %v1452 = vshra.s32 %v1356, 16
        %v1453 = vshra.s32 %v1357, 16
        %v1454 = vshra.s32 %v1358, 16
        %v1455 = vshra.s32 %v1359, 16
        %v1456 = vshra.s32 %v1360, 16
        %v1457 = vshra.s32 %v1361, 16
        %v1458 = vshra.s32 %v1362, 16
        %v1459 = vshra.s32 %v1363, 16
        %v1460 = vshra.s32 %v1364, 16
        %v1461 = vand.u32 %v1365, 65535
        %v1462 = vand.u32 %v1366, 65535
        %v1463 = vand.u32 %v1367, 65535
        %v1464 = vand.u32 %v1368, 65535
        %v1465 = vand.u32 %v1369, 65535
        %v1466 = vand.u32 %v1370, 65535
        %v1467 = vand.u32 %v1371, 65535
        %v1468 = vand.u32 %v1372, 65535
        %v1469 = vand.u32 %v1373, 65535
        %v1470 = vand.u32 %v1374, 65535
        %v1471 = vand.u32 %v1375, 65535
        %v1472 = vand.u32 %v1376, 65535
        %v1473 = vand.u32 %v1377, 65535
        %v1474 = vand.u32 %v1378, 65535
        %v1475 = vand.u32 %v1379, 65535
        %v1476 = vand.u32 %v1380, 65535
        %v1477 = vand.u32 %v1381, 65535
        %v1478 = vand.u32 %v1382, 65535
        %v1479 = vand.u32 %v1383, 65535
        %v1480 = vand.u32 %v1384, 65535
        %v1481 = vand.u32 %v1385, 65535
        %v1482 = vand.u32 %v1386, 65535
        %v1483 = vand.u32 %v1387, 65535
        %v1484 = vand.u32 %v1388, 65535
        %v1485 = vand.u32 %v1389, 65535
        %v1486 = vand.u32 %v1390, 65535
        %v1487 = vand.u32 %v1391, 65535
        %v1488 = vand.u32 %v1392, 65535
        %v1489 = vand.u32 %v1393, 65535
        %v1490 = vand.u32 %v1394, 65535
        %v1491 = vand.u32 %v1395, 65535
        %v1492 = vand.u32 %v1396, 65535
        %v1493 = vand.u32 %v1397, 65535
        %v1494 = vand.u32 %v1398, 65535
        %v1495 = vand.u32 %v1399, 65535
        %v1496 = vand.u32 %v1400, 65535
        %v1497 = vand.u32 %v1401, 65535
        %v1498 = vand.u32 %v1402, 65535
        %v1499 = vand.u32 %v1403, 65535
        %v1500 = vand.u32 %v1404, 65535
        %v1501 = vand.u32 %v1405, 65535
        %v1502 = vand.u32 %v1406, 65535
        %v1503 = vand.u32 %v1407, 65535
        %v1504 = vand.u32 %v1408, 65535
        %v1505 = vand.u32 %v1409, 65535
        %v1506 = vand.u32 %v1410, 65535
        %v1507 = vand.u32 %v1411, 65535
        %v1508 = vand.u32 %v1412, 65535
        %v1509 = vand.u32 %v1413, 65535
        %v1510 = vand.u32 %v1414, 65535
        %v1511 = vand.u32 %v1415, 65535
        %v1512 = vand.u32 %v1416, 65535
        %v1513 = vand.u32 %v1417, 65535
        %v1514 = vand.u32 %v1418, 65535
        %v1515 = vand.u32 %v1419, 65535
        %v1516 = vand.u32 %v1420, 65535
        %v1517 = vand.u32 %v1421, 65535
        %v1518 = vand.u32 %v1422, 65535
        %v1519 = vand.u32 %v1423, 65535
        %v1520 = vand.u32 %v1424, 65535
        %v1521 = vand.u32 %v1425, 65535
        %v1522 = vand.u32 %v1426, 65535
        %v1523 = vand.u32 %v1427, 65535
        %v1524 = vand.u32 %v1428, 65535
        %v1525 = vand.u32 %v1429, 65535
        %v1526 = vand.u32 %v1430, 65535
        %v1527 = vand.u32 %v1431, 65535
        %v1528 = vand.u32 %v1432, 65535
        %v1529 = vand.u32 %v1433, 65535
        %v1530 = vand.u32 %v1434, 65535
        %v1531 = vand.u32 %v1435, 65535
        %v1532 = vand.u32 %v1436, 65535
        %v1533 = vand.u32 %v1437, 65535
        %v1534 = vand.u32 %v1438, 65535
        %v1535 = vand.u32 %v1439, 65535
        %v1536 = vand.u32 %v1440, 65535
        %v1537 = vand.u32 %v1441, 65535
        %v1538 = vand.u32 %v1442, 65535
        %v1539 = vand.u32 %v1443, 65535
        %v1540 = vand.u32 %v1444, 65535
        %v1541 = vand.u32 %v1445, 65535
        %v1542 = vand.u32 %v1446, 65535
        %v1543 = vand.u32 %v1447, 65535
        %v1544 = vand.u32 %v1448, 65535
        %v1545 = vand.u32 %v1449, 65535
        %v1546 = vand.u32 %v1450, 65535
        %v1547 = vand.u32 %v1451, 65535
        %v1548 = vand.u32 %v1452, 65535
        %v1549 = vand.u32 %v1453, 65535
        %v1550 = vand.u32 %v1454, 65535
        %v1551 = vand.u32 %v1455, 65535
        %v1552 = vand.u32 %v1456, 65535
        %v1553 = vand.u32 %v1457, 65535
        %v1554 = vand.u32 %v1458, 65535
        %v1555 = vand.u32 %v1459, 65535
        %v1556 = vand.u32 %v1460, 65535
        %v1557 = vxor.u32 %v1269, %v1461
        %v1558 = vxor.u32 %v1270, %v1462
        %v1559 = vxor.u32 %v1271, %v1463
        %v1560 = vxor.u32 %v1272, %v1464
        %v1561 = vxor.u32 %v1273, %v1465
        %v1562 = vxor.u32 %v1274, %v1466
        %v1563 = vxor.u32 %v1275, %v1467
        %v1564 = vxor.u32 %v1276, %v1468
        %v1565 = vxor.u32 %v1277, %v1469
        %v1566 = vxor.u32 %v1278, %v1470
        %v1567 = vxor.u32 %v1279, %v1471
        %v1568 = vxor.u32 %v1280, %v1472
        %v1569 = vxor.u32 %v1281, %v1473
        %v1570 = vxor.u32 %v1282, %v1474
        %v1571 = vxor.u32 %v1283, %v1475
        %v1572 = vxor.u32 %v1284, %v1476
        %v1573 = vxor.u32 %v1285, %v1477
        %v1574 = vxor.u32 %v1286, %v1478
        %v1575 = vxor.u32 %v1287, %v1479
        %v1576 = vxor.u32 %v1288, %v1480
        %v1577 = vxor.u32 %v1289, %v1481
        %v1578 = vxor.u32 %v1290, %v1482
        %v1579 = vxor.u32 %v1291, %v1483
        %v1580 = vxor.u32 %v1292, %v1484
        %v1581 = vxor.u32 %v1293, %v1485
        %v1582 = vxor.u32 %v1294, %v1486
        %v1583 = vxor.u32 %v1295, %v1487
        %v1584 = vxor.u32 %v1296, %v1488
        %v1585 = vxor.u32 %v1297, %v1489
        %v1586 = vxor.u32 %v1298, %v1490
        %v1587 = vxor.u32 %v1299, %v1491
        %v1588 = vxor.u32 %v1300, %v1492
        %v1589 = vxor.u32 %v1301, %v1493
        %v1590 = vxor.u32 %v1302, %v1494
        %v1591 = vxor.u32 %v1303, %v1495
        %v1592 = vxor.u32 %v1304, %v1496
        %v1593 = vxor.u32 %v1305, %v1497
        %v1594 = vxor.u32 %v1306, %v1498
        %v1595 = vxor.u32 %v1307, %v1499
        %v1596 = vxor.u32 %v1308, %v1500
        %v1597 = vxor.u32 %v1309, %v1501
        %v1598 = vxor.u32 %v1310, %v1502
        %v1599 = vxor.u32 %v1311, %v1503
        %v1600 = vxor.u32 %v1312, %v1504
        %v1601 = vxor.u32 %v1313, %v1505
        %v1602 = vxor.u32 %v1314, %v1506
        %v1603 = vxor.u32 %v1315, %v1507
        %v1604 = vxor.u32 %v1316, %v1508
        %v1605 = vxor.u32 %v1317, %v1509
        %v1606 = vxor.u32 %v1318, %v1510
        %v1607 = vxor.u32 %v1319, %v1511
        %v1608 = vxor.u32 %v1320, %v1512
        %v1609 = vxor.u32 %v1321, %v1513
        %v1610 = vxor.u32 %v1322, %v1514
        %v1611 = vxor.u32 %v1323, %v1515
        %v1612 = vxor.u32 %v1324, %v1516
        %v1613 = vxor.u32 %v1325, %v1517
        %v1614 = vxor.u32 %v1326, %v1518
        %v1615 = vxor.u32 %v1327, %v1519
        %v1616 = vxor.u32 %v1328, %v1520
        %v1617 = vxor.u32 %v1329, %v1521
        %v1618 = vxor.u32 %v1330, %v1522
        %v1619 = vxor.u32 %v1331, %v1523
        %v1620 = vxor.u32 %v1332, %v1524
        %v1621 = vxor.u32 %v1333, %v1525
        %v1622 = vxor.u32 %v1334, %v1526
        %v1623 = vxor.u32 %v1335, %v1527
        %v1624 = vxor.u32 %v1336, %v1528
        %v1625 = vxor.u32 %v1337, %v1529
        %v1626 = vxor.u32 %v1338, %v1530
        %v1627 = vxor.u32 %v1339, %v1531
        %v1628 = vxor.u32 %v1340, %v1532
        %v1629 = vxor.u32 %v1341, %v1533
        %v1630 = vxor.u32 %v1342, %v1534
        %v1631 = vxor.u32 %v1343, %v1535
        %v1632 = vxor.u32 %v1344, %v1536
        %v1633 = vxor.u32 %v1345, %v1537
        %v1634 = vxor.u32 %v1346, %v1538
        %v1635 = vxor.u32 %v1347, %v1539
        %v1636 = vxor.u32 %v1348, %v1540
        %v1637 = vxor.u32 %v1349, %v1541
        %v1638 = vxor.u32 %v1350, %v1542
        %v1639 = vxor.u32 %v1351, %v1543
        %v1640 = vxor.u32 %v1352, %v1544
        %v1641 = vxor.u32 %v1353, %v1545
        %v1642 = vxor.u32 %v1354, %v1546
        %v1643 = vxor.u32 %v1355, %v1547
        %v1644 = vxor.u32 %v1356, %v1548
        %v1645 = vxor.u32 %v1357, %v1549
        %v1646 = vxor.u32 %v1358, %v1550
        %v1647 = vxor.u32 %v1359, %v1551
        %v1648 = vxor.u32 %v1360, %v1552
        %v1649 = vxor.u32 %v1361, %v1553
        %v1650 = vxor.u32 %v1362, %v1554
        %v1651 = vxor.u32 %v1363, %v1555
        %v1652 = vxor.u32 %v1364, %v1556
        %v1653 = vmul.u32 %v1557, 2146121005
        %v1654 = vmul.u32 %v1558, 2146121005
        %v1655 = vmul.u32 %v1559, 2146121005
        %v1656 = vmul.u32 %v1560, 2146121005
        %v1657 = vmul.u32 %v1561, 2146121005
        %v1658 = vmul.u32 %v1562, 2146121005
        %v1659 = vmul.u32 %v1563, 2146121005
        %v1660 = vmul.u32 %v1564, 2146121005
        %v1661 = vmul.u32 %v1565, 2146121005
        %v1662 = vmul.u32 %v1566, 2146121005
        %v1663 = vmul.u32 %v1567, 2146121005
        %v1664 = vmul.u32 %v1568, 2146121005
        %v1665 = vmul.u32 %v1569, 2146121005
        %v1666 = vmul.u32 %v1570, 2146121005
        %v1667 = vmul.u32 %v1571, 2146121005
        %v1668 = vmul.u32 %v1572, 2146121005
        %v1669 = vmul.u32 %v1573, 2146121005
        %v1670 = vmul.u32 %v1574, 2146121005
        %v1671 = vmul.u32 %v1575, 2146121005
        %v1672 = vmul.u32 %v1576, 2146121005
        %v1673 = vmul.u32 %v1577, 2146121005
        %v1674 = vmul.u32 %v1578, 2146121005
        %v1675 = vmul.u32 %v1579, 2146121005
        %v1676 = vmul.u32 %v1580, 2146121005
        %v1677 = vmul.u32 %v1581, 2146121005
        %v1678 = vmul.u32 %v1582, 2146121005
        %v1679 = vmul.u32 %v1583, 2146121005
        %v1680 = vmul.u32 %v1584, 2146121005
        %v1681 = vmul.u32 %v1585, 2146121005
        %v1682 = vmul.u32 %v1586, 2146121005
        %v1683 = vmul.u32 %v1587, 2146121005
        %v1684 = vmul.u32 %v1588, 2146121005
        %v1685 = vmul.u32 %v1589, 2146121005
        %v1686 = vmul.u32 %v1590, 2146121005
        %v1687 = vmul.u32 %v1591, 2146121005
        %v1688 = vmul.u32 %v1592, 2146121005
        %v1689 = vmul.u32 %v1593, 2146121005
        %v1690 = vmul.u32 %v1594, 2146121005
        %v1691 = vmul.u32 %v1595, 2146121005
        %v1692 = vmul.u32 %v1596, 2146121005
        %v1693 = vmul.u32 %v1597, 2146121005
        %v1694 = vmul.u32 %v1598, 2146121005
        %v1695 = vmul.u32 %v1599, 2146121005
        %v1696 = vmul.u32 %v1600, 2146121005
        %v1697 = vmul.u32 %v1601, 2146121005
        %v1698 = vmul.u32 %v1602, 2146121005
        %v1699 = vmul.u32 %v1603, 2146121005
        %v1700 = vmul.u32 %v1604, 2146121005
        %v1701 = vmul.u32 %v1605, 2146121005
        %v1702 = vmul.u32 %v1606, 2146121005
        %v1703 = vmul.u32 %v1607, 2146121005
        %v1704 = vmul.u32 %v1608, 2146121005
        %v1705 = vmul.u32 %v1609, 2146121005
        %v1706 = vmul.u32 %v1610, 2146121005
        %v1707 = vmul.u32 %v1611, 2146121005
        %v1708 = vmul.u32 %v1612, 2146121005
        %v1709 = vmul.u32 %v1613, 2146121005
        %v1710 = vmul.u32 %v1614, 2146121005
        %v1711 = vmul.u32 %v1615, 2146121005
        %v1712 = vmul.u32 %v1616, 2146121005
        %v1713 = vmul.u32 %v1617, 2146121005
        %v1714 = vmul.u32 %v1618, 2146121005
        %v1715 = vmul.u32 %v1619, 2146121005
        %v1716 = vmul.u32 %v1620, 2146121005
        %v1717 = vmul.u32 %v1621, 2146121005
        %v1718 = vmul.u32 %v1622, 2146121005
        %v1719 = vmul.u32 %v1623, 2146121005
        %v1720 = vmul.u32 %v1624, 2146121005
        %v1721 = vmul.u32 %v1625, 2146121005
        %v1722 = vmul.u32 %v1626, 2146121005
        %v1723 = vmul.u32 %v1627, 2146121005
        %v1724 = vmul.u32 %v1628, 2146121005
        %v1725 = vmul.u32 %v1629, 2146121005
        %v1726 = vmul.u32 %v1630, 2146121005
        %v1727 = vmul.u32 %v1631, 2146121005
        %v1728 = vmul.u32 %v1632, 2146121005
        %v1729 = vmul.u32 %v1633, 2146121005
        %v1730 = vmul.u32 %v1634, 2146121005
        %v1731 = vmul.u32 %v1635, 2146121005
        %v1732 = vmul.u32 %v1636, 2146121005
        %v1733 = vmul.u32 %v1637, 2146121005
        %v1734 = vmul.u32 %v1638, 2146121005
        %v1735 = vmul.u32 %v1639, 2146121005
        %v1736 = vmul.u32 %v1640, 2146121005
        %v1737 = vmul.u32 %v1641, 2146121005
        %v1738 = vmul.u32 %v1642, 2146121005
        %v1739 = vmul.u32 %v1643, 2146121005
        %v1740 = vmul.u32 %v1644, 2146121005
        %v1741 = vmul.u32 %v1645, 2146121005
        %v1742 = vmul.u32 %v1646, 2146121005
        %v1743 = vmul.u32 %v1647, 2146121005
        %v1744 = vmul.u32 %v1648, 2146121005
        %v1745 = vmul.u32 %v1649, 2146121005
        %v1746 = vmul.u32 %v1650, 2146121005
        %v1747 = vmul.u32 %v1651, 2146121005
        %v1748 = vmul.u32 %v1652, 2146121005
        %v1749 = vshra.s32 %v1653, 15
        %v1750 = vshra.s32 %v1654, 15
        %v1751 = vshra.s32 %v1655, 15
        %v1752 = vshra.s32 %v1656, 15
        %v1753 = vshra.s32 %v1657, 15
        %v1754 = vshra.s32 %v1658, 15
        %v1755 = vshra.s32 %v1659, 15
        %v1756 = vshra.s32 %v1660, 15
        %v1757 = vshra.s32 %v1661, 15
        %v1758 = vshra.s32 %v1662, 15
        %v1759 = vshra.s32 %v1663, 15
        %v1760 = vshra.s32 %v1664, 15
        %v1761 = vshra.s32 %v1665, 15
        %v1762 = vshra.s32 %v1666, 15
        %v1763 = vshra.s32 %v1667, 15
        %v1764 = vshra.s32 %v1668, 15
        %v1765 = vshra.s32 %v1669, 15
        %v1766 = vshra.s32 %v1670, 15
        %v1767 = vshra.s32 %v1671, 15
        %v1768 = vshra.s32 %v1672, 15
        %v1769 = vshra.s32 %v1673, 15
        %v1770 = vshra.s32 %v1674, 15
        %v1771 = vshra.s32 %v1675, 15
        %v1772 = vshra.s32 %v1676, 15
        %v1773 = vshra.s32 %v1677, 15
        %v1774 = vshra.s32 %v1678, 15
        %v1775 = vshra.s32 %v1679, 15
        %v1776 = vshra.s32 %v1680, 15
        %v1777 = vshra.s32 %v1681, 15
        %v1778 = vshra.s32 %v1682, 15
        %v1779 = vshra.s32 %v1683, 15
        %v1780 = vshra.s32 %v1684, 15
        %v1781 = vshra.s32 %v1685, 15
        %v1782 = vshra.s32 %v1686, 15
        %v1783 = vshra.s32 %v1687, 15
        %v1784 = vshra.s32 %v1688, 15
        %v1785 = vshra.s32 %v1689, 15
        %v1786 = vshra.s32 %v1690, 15
        %v1787 = vshra.s32 %v1691, 15
        %v1788 = vshra.s32 %v1692, 15
        %v1789 = vshra.s32 %v1693, 15
        %v1790 = vshra.s32 %v1694, 15
        %v1791 = vshra.s32 %v1695, 15
        %v1792 = vshra.s32 %v1696, 15
        %v1793 = vshra.s32 %v1697, 15
        %v1794 = vshra.s32 %v1698, 15
        %v1795 = vshra.s32 %v1699, 15
        %v1796 = vshra.s32 %v1700, 15
        %v1797 = vshra.s32 %v1701, 15
        %v1798 = vshra.s32 %v1702, 15
        %v1799 = vshra.s32 %v1703, 15
        %v1800 = vshra.s32 %v1704, 15
        %v1801 = vshra.s32 %v1705, 15
        %v1802 = vshra.s32 %v1706, 15
        %v1803 = vshra.s32 %v1707, 15
        %v1804 = vshra.s32 %v1708, 15
        %v1805 = vshra.s32 %v1709, 15
        %v1806 = vshra.s32 %v1710, 15
        %v1807 = vshra.s32 %v1711, 15
        %v1808 = vshra.s32 %v1712, 15
        %v1809 = vshra.s32 %v1713, 15
        %v1810 = vshra.s32 %v1714, 15
        %v1811 = vshra.s32 %v1715, 15
        %v1812 = vshra.s32 %v1716, 15
        %v1813 = vshra.s32 %v1717, 15
        %v1814 = vshra.s32 %v1718, 15
        %v1815 = vshra.s32 %v1719, 15
        %v1816 = vshra.s32 %v1720, 15
        %v1817 = vshra.s32 %v1721, 15
        %v1818 = vshra.s32 %v1722, 15
        %v1819 = vshra.s32 %v1723, 15
        %v1820 = vshra.s32 %v1724, 15
        %v1821 = vshra.s32 %v1725, 15
        %v1822 = vshra.s32 %v1726, 15
        %v1823 = vshra.s32 %v1727, 15
        %v1824 = vshra.s32 %v1728, 15
        %v1825 = vshra.s32 %v1729, 15
        %v1826 = vshra.s32 %v1730, 15
        %v1827 = vshra.s32 %v1731, 15
        %v1828 = vshra.s32 %v1732, 15
        %v1829 = vshra.s32 %v1733, 15
        %v1830 = vshra.s32 %v1734, 15
        %v1831 = vshra.s32 %v1735, 15
        %v1832 = vshra.s32 %v1736, 15
        %v1833 = vshra.s32 %v1737, 15
        %v1834 = vshra.s32 %v1738, 15
        %v1835 = vshra.s32 %v1739, 15
        %v1836 = vshra.s32 %v1740, 15
        %v1837 = vshra.s32 %v1741, 15
        %v1838 = vshra.s32 %v1742, 15
        %v1839 = vshra.s32 %v1743, 15
        %v1840 = vshra.s32 %v1744, 15
        %v1841 = vshra.s32 %v1745, 15
        %v1842 = vshra.s32 %v1746, 15
        %v1843 = vshra.s32 %v1747, 15
        %v1844 = vshra.s32 %v1748, 15
        %v1845 = vand.u32 %v1749, 131071
        %v1846 = vand.u32 %v1750, 131071
        %v1847 = vand.u32 %v1751, 131071
        %v1848 = vand.u32 %v1752, 131071
        %v1849 = vand.u32 %v1753, 131071
        %v1850 = vand.u32 %v1754, 131071
        %v1851 = vand.u32 %v1755, 131071
        %v1852 = vand.u32 %v1756, 131071
        %v1853 = vand.u32 %v1757, 131071
        %v1854 = vand.u32 %v1758, 131071
        %v1855 = vand.u32 %v1759, 131071
        %v1856 = vand.u32 %v1760, 131071
        %v1857 = vand.u32 %v1761, 131071
        %v1858 = vand.u32 %v1762, 131071
        %v1859 = vand.u32 %v1763, 131071
        %v1860 = vand.u32 %v1764, 131071
        %v1861 = vand.u32 %v1765, 131071
        %v1862 = vand.u32 %v1766, 131071
        %v1863 = vand.u32 %v1767, 131071
        %v1864 = vand.u32 %v1768, 131071
        %v1865 = vand.u32 %v1769, 131071
        %v1866 = vand.u32 %v1770, 131071
        %v1867 = vand.u32 %v1771, 131071
        %v1868 = vand.u32 %v1772, 131071
        %v1869 = vand.u32 %v1773, 131071
        %v1870 = vand.u32 %v1774, 131071
        %v1871 = vand.u32 %v1775, 131071
        %v1872 = vand.u32 %v1776, 131071
        %v1873 = vand.u32 %v1777, 131071
        %v1874 = vand.u32 %v1778, 131071
        %v1875 = vand.u32 %v1779, 131071
        %v1876 = vand.u32 %v1780, 131071
        %v1877 = vand.u32 %v1781, 131071
        %v1878 = vand.u32 %v1782, 131071
        %v1879 = vand.u32 %v1783, 131071
        %v1880 = vand.u32 %v1784, 131071
        %v1881 = vand.u32 %v1785, 131071
        %v1882 = vand.u32 %v1786, 131071
        %v1883 = vand.u32 %v1787, 131071
        %v1884 = vand.u32 %v1788, 131071
        %v1885 = vand.u32 %v1789, 131071
        %v1886 = vand.u32 %v1790, 131071
        %v1887 = vand.u32 %v1791, 131071
        %v1888 = vand.u32 %v1792, 131071
        %v1889 = vand.u32 %v1793, 131071
        %v1890 = vand.u32 %v1794, 131071
        %v1891 = vand.u32 %v1795, 131071
        %v1892 = vand.u32 %v1796, 131071
        %v1893 = vand.u32 %v1797, 131071
        %v1894 = vand.u32 %v1798, 131071
        %v1895 = vand.u32 %v1799, 131071
        %v1896 = vand.u32 %v1800, 131071
        %v1897 = vand.u32 %v1801, 131071
        %v1898 = vand.u32 %v1802, 131071
        %v1899 = vand.u32 %v1803, 131071
        %v1900 = vand.u32 %v1804, 131071
        %v1901 = vand.u32 %v1805, 131071
        %v1902 = vand.u32 %v1806, 131071
        %v1903 = vand.u32 %v1807, 131071
        %v1904 = vand.u32 %v1808, 131071
        %v1905 = vand.u32 %v1809, 131071
        %v1906 = vand.u32 %v1810, 131071
        %v1907 = vand.u32 %v1811, 131071
        %v1908 = vand.u32 %v1812, 131071
        %v1909 = vand.u32 %v1813, 131071
        %v1910 = vand.u32 %v1814, 131071
        %v1911 = vand.u32 %v1815, 131071
        %v1912 = vand.u32 %v1816, 131071
        %v1913 = vand.u32 %v1817, 131071
        %v1914 = vand.u32 %v1818, 131071
        %v1915 = vand.u32 %v1819, 131071
        %v1916 = vand.u32 %v1820, 131071
        %v1917 = vand.u32 %v1821, 131071
        %v1918 = vand.u32 %v1822, 131071
        %v1919 = vand.u32 %v1823, 131071
        %v1920 = vand.u32 %v1824, 131071
        %v1921 = vand.u32 %v1825, 131071
        %v1922 = vand.u32 %v1826, 131071
        %v1923 = vand.u32 %v1827, 131071
        %v1924 = vand.u32 %v1828, 131071
        %v1925 = vand.u32 %v1829, 131071
        %v1926 = vand.u32 %v1830, 131071
        %v1927 = vand.u32 %v1831, 131071
        %v1928 = vand.u32 %v1832, 131071
        %v1929 = vand.u32 %v1833, 131071
        %v1930 = vand.u32 %v1834, 131071
        %v1931 = vand.u32 %v1835, 131071
        %v1932 = vand.u32 %v1836, 131071
        %v1933 = vand.u32 %v1837, 131071
        %v1934 = vand.u32 %v1838, 131071
        %v1935 = vand.u32 %v1839, 131071
        %v1936 = vand.u32 %v1840, 131071
        %v1937 = vand.u32 %v1841, 131071
        %v1938 = vand.u32 %v1842, 131071
        %v1939 = vand.u32 %v1843, 131071
        %v1940 = vand.u32 %v1844, 131071
        %v1941 = vxor.u32 %v1653, %v1845
        %v1942 = vxor.u32 %v1654, %v1846
        %v1943 = vxor.u32 %v1655, %v1847
        %v1944 = vxor.u32 %v1656, %v1848
        %v1945 = vxor.u32 %v1657, %v1849
        %v1946 = vxor.u32 %v1658, %v1850
        %v1947 = vxor.u32 %v1659, %v1851
        %v1948 = vxor.u32 %v1660, %v1852
        %v1949 = vxor.u32 %v1661, %v1853
        %v1950 = vxor.u32 %v1662, %v1854
        %v1951 = vxor.u32 %v1663, %v1855
        %v1952 = vxor.u32 %v1664, %v1856
        %v1953 = vxor.u32 %v1665, %v1857
        %v1954 = vxor.u32 %v1666, %v1858
        %v1955 = vxor.u32 %v1667, %v1859
        %v1956 = vxor.u32 %v1668, %v1860
        %v1957 = vxor.u32 %v1669, %v1861
        %v1958 = vxor.u32 %v1670, %v1862
        %v1959 = vxor.u32 %v1671, %v1863
        %v1960 = vxor.u32 %v1672, %v1864
        %v1961 = vxor.u32 %v1673, %v1865
        %v1962 = vxor.u32 %v1674, %v1866
        %v1963 = vxor.u32 %v1675, %v1867
        %v1964 = vxor.u32 %v1676, %v1868
        %v1965 = vxor.u32 %v1677, %v1869
        %v1966 = vxor.u32 %v1678, %v1870
        %v1967 = vxor.u32 %v1679, %v1871
        %v1968 = vxor.u32 %v1680, %v1872
        %v1969 = vxor.u32 %v1681, %v1873
        %v1970 = vxor.u32 %v1682, %v1874
        %v1971 = vxor.u32 %v1683, %v1875
        %v1972 = vxor.u32 %v1684, %v1876
        %v1973 = vxor.u32 %v1685, %v1877
        %v1974 = vxor.u32 %v1686, %v1878
        %v1975 = vxor.u32 %v1687, %v1879
        %v1976 = vxor.u32 %v1688, %v1880
        %v1977 = vxor.u32 %v1689, %v1881
        %v1978 = vxor.u32 %v1690, %v1882
        %v1979 = vxor.u32 %v1691, %v1883
        %v1980 = vxor.u32 %v1692, %v1884
        %v1981 = vxor.u32 %v1693, %v1885
        %v1982 = vxor.u32 %v1694, %v1886
        %v1983 = vxor.u32 %v1695, %v1887
        %v1984 = vxor.u32 %v1696, %v1888
        %v1985 = vxor.u32 %v1697, %v1889
        %v1986 = vxor.u32 %v1698, %v1890
        %v1987 = vxor.u32 %v1699, %v1891
        %v1988 = vxor.u32 %v1700, %v1892
        %v1989 = vxor.u32 %v1701, %v1893
        %v1990 = vxor.u32 %v1702, %v1894
        %v1991 = vxor.u32 %v1703, %v1895
        %v1992 = vxor.u32 %v1704, %v1896
        %v1993 = vxor.u32 %v1705, %v1897
        %v1994 = vxor.u32 %v1706, %v1898
        %v1995 = vxor.u32 %v1707, %v1899
        %v1996 = vxor.u32 %v1708, %v1900
        %v1997 = vxor.u32 %v1709, %v1901
        %v1998 = vxor.u32 %v1710, %v1902
        %v1999 = vxor.u32 %v1711, %v1903
        %v2000 = vxor.u32 %v1712, %v1904
        %v2001 = vxor.u32 %v1713, %v1905
        %v2002 = vxor.u32 %v1714, %v1906
        %v2003 = vxor.u32 %v1715, %v1907
        %v2004 = vxor.u32 %v1716, %v1908
        %v2005 = vxor.u32 %v1717, %v1909
        %v2006 = vxor.u32 %v1718, %v1910
        %v2007 = vxor.u32 %v1719, %v1911
        %v2008 = vxor.u32 %v1720, %v1912
        %v2009 = vxor.u32 %v1721, %v1913
        %v2010 = vxor.u32 %v1722, %v1914
        %v2011 = vxor.u32 %v1723, %v1915
        %v2012 = vxor.u32 %v1724, %v1916
        %v2013 = vxor.u32 %v1725, %v1917
        %v2014 = vxor.u32 %v1726, %v1918
        %v2015 = vxor.u32 %v1727, %v1919
        %v2016 = vxor.u32 %v1728, %v1920
        %v2017 = vxor.u32 %v1729, %v1921
        %v2018 = vxor.u32 %v1730, %v1922
        %v2019 = vxor.u32 %v1731, %v1923
        %v2020 = vxor.u32 %v1732, %v1924
        %v2021 = vxor.u32 %v1733, %v1925
        %v2022 = vxor.u32 %v1734, %v1926
        %v2023 = vxor.u32 %v1735, %v1927
        %v2024 = vxor.u32 %v1736, %v1928
        %v2025 = vxor.u32 %v1737, %v1929
        %v2026 = vxor.u32 %v1738, %v1930
        %v2027 = vxor.u32 %v1739, %v1931
        %v2028 = vxor.u32 %v1740, %v1932
        %v2029 = vxor.u32 %v1741, %v1933
        %v2030 = vxor.u32 %v1742, %v1934
        %v2031 = vxor.u32 %v1743, %v1935
        %v2032 = vxor.u32 %v1744, %v1936
        %v2033 = vxor.u32 %v1745, %v1937
        %v2034 = vxor.u32 %v1746, %v1938
        %v2035 = vxor.u32 %v1747, %v1939
        %v2036 = vxor.u32 %v1748, %v1940
        %v2037 = vmul.u32 %v1941, 2221713035
        %v2038 = vmul.u32 %v1942, 2221713035
        %v2039 = vmul.u32 %v1943, 2221713035
        %v2040 = vmul.u32 %v1944, 2221713035
        %v2041 = vmul.u32 %v1945, 2221713035
        %v2042 = vmul.u32 %v1946, 2221713035
        %v2043 = vmul.u32 %v1947, 2221713035
        %v2044 = vmul.u32 %v1948, 2221713035
        %v2045 = vmul.u32 %v1949, 2221713035
        %v2046 = vmul.u32 %v1950, 2221713035
        %v2047 = vmul.u32 %v1951, 2221713035
        %v2048 = vmul.u32 %v1952, 2221713035
        %v2049 = vmul.u32 %v1953, 2221713035
        %v2050 = vmul.u32 %v1954, 2221713035
        %v2051 = vmul.u32 %v1955, 2221713035
        %v2052 = vmul.u32 %v1956, 2221713035
        %v2053 = vmul.u32 %v1957, 2221713035
        %v2054 = vmul.u32 %v1958, 2221713035
        %v2055 = vmul.u32 %v1959, 2221713035
        %v2056 = vmul.u32 %v1960, 2221713035
        %v2057 = vmul.u32 %v1961, 2221713035
        %v2058 = vmul.u32 %v1962, 2221713035
        %v2059 = vmul.u32 %v1963, 2221713035
        %v2060 = vmul.u32 %v1964, 2221713035
        %v2061 = vmul.u32 %v1965, 2221713035
        %v2062 = vmul.u32 %v1966, 2221713035
        %v2063 = vmul.u32 %v1967, 2221713035
        %v2064 = vmul.u32 %v1968, 2221713035
        %v2065 = vmul.u32 %v1969, 2221713035
        %v2066 = vmul.u32 %v1970, 2221713035
        %v2067 = vmul.u32 %v1971, 2221713035
        %v2068 = vmul.u32 %v1972, 2221713035
        %v2069 = vmul.u32 %v1973, 2221713035
        %v2070 = vmul.u32 %v1974, 2221713035
        %v2071 = vmul.u32 %v1975, 2221713035
        %v2072 = vmul.u32 %v1976, 2221713035
        %v2073 = vmul.u32 %v1977, 2221713035
        %v2074 = vmul.u32 %v1978, 2221713035
        %v2075 = vmul.u32 %v1979, 2221713035
        %v2076 = vmul.u32 %v1980, 2221713035
        %v2077 = vmul.u32 %v1981, 2221713035
        %v2078 = vmul.u32 %v1982, 2221713035
        %v2079 = vmul.u32 %v1983, 2221713035
        %v2080 = vmul.u32 %v1984, 2221713035
        %v2081 = vmul.u32 %v1985, 2221713035
        %v2082 = vmul.u32 %v1986, 2221713035
        %v2083 = vmul.u32 %v1987, 2221713035
        %v2084 = vmul.u32 %v1988, 2221713035
        %v2085 = vmul.u32 %v1989, 2221713035
        %v2086 = vmul.u32 %v1990, 2221713035
        %v2087 = vmul.u32 %v1991, 2221713035
        %v2088 = vmul.u32 %v1992, 2221713035
        %v2089 = vmul.u32 %v1993, 2221713035
        %v2090 = vmul.u32 %v1994, 2221713035
        %v2091 = vmul.u32 %v1995, 2221713035
        %v2092 = vmul.u32 %v1996, 2221713035
        %v2093 = vmul.u32 %v1997, 2221713035
        %v2094 = vmul.u32 %v1998, 2221713035
        %v2095 = vmul.u32 %v1999, 2221713035
        %v2096 = vmul.u32 %v2000, 2221713035
        %v2097 = vmul.u32 %v2001, 2221713035
        %v2098 = vmul.u32 %v2002, 2221713035
        %v2099 = vmul.u32 %v2003, 2221713035
        %v2100 = vmul.u32 %v2004, 2221713035
        %v2101 = vmul.u32 %v2005, 2221713035
        %v2102 = vmul.u32 %v2006, 2221713035
        %v2103 = vmul.u32 %v2007, 2221713035
        %v2104 = vmul.u32 %v2008, 2221713035
        %v2105 = vmul.u32 %v2009, 2221713035
        %v2106 = vmul.u32 %v2010, 2221713035
        %v2107 = vmul.u32 %v2011, 2221713035
        %v2108 = vmul.u32 %v2012, 2221713035
        %v2109 = vmul.u32 %v2013, 2221713035
        %v2110 = vmul.u32 %v2014, 2221713035
        %v2111 = vmul.u32 %v2015, 2221713035
        %v2112 = vmul.u32 %v2016, 2221713035
        %v2113 = vmul.u32 %v2017, 2221713035
        %v2114 = vmul.u32 %v2018, 2221713035
        %v2115 = vmul.u32 %v2019, 2221713035
        %v2116 = vmul.u32 %v2020, 2221713035
        %v2117 = vmul.u32 %v2021, 2221713035
        %v2118 = vmul.u32 %v2022, 2221713035
        %v2119 = vmul.u32 %v2023, 2221713035
        %v2120 = vmul.u32 %v2024, 2221713035
        %v2121 = vmul.u32 %v2025, 2221713035
        %v2122 = vmul.u32 %v2026, 2221713035
        %v2123 = vmul.u32 %v2027, 2221713035
        %v2124 = vmul.u32 %v2028, 2221713035
        %v2125 = vmul.u32 %v2029, 2221713035
        %v2126 = vmul.u32 %v2030, 2221713035
        %v2127 = vmul.u32 %v2031, 2221713035
        %v2128 = vmul.u32 %v2032, 2221713035
        %v2129 = vmul.u32 %v2033, 2221713035
        %v2130 = vmul.u32 %v2034, 2221713035
        %v2131 = vmul.u32 %v2035, 2221713035
        %v2132 = vmul.u32 %v2036, 2221713035
        %v2133 = vshra.s32 %v2037, 16
        %v2134 = vshra.s32 %v2038, 16
        %v2135 = vshra.s32 %v2039, 16
        %v2136 = vshra.s32 %v2040, 16
        %v2137 = vshra.s32 %v2041, 16
        %v2138 = vshra.s32 %v2042, 16
        %v2139 = vshra.s32 %v2043, 16
        %v2140 = vshra.s32 %v2044, 16
        %v2141 = vshra.s32 %v2045, 16
        %v2142 = vshra.s32 %v2046, 16
        %v2143 = vshra.s32 %v2047, 16
        %v2144 = vshra.s32 %v2048, 16
        %v2145 = vshra.s32 %v2049, 16
        %v2146 = vshra.s32 %v2050, 16
        %v2147 = vshra.s32 %v2051, 16
        %v2148 = vshra.s32 %v2052, 16
        %v2149 = vshra.s32 %v2053, 16
        %v2150 = vshra.s32 %v2054, 16
        %v2151 = vshra.s32 %v2055, 16
        %v2152 = vshra.s32 %v2056, 16
        %v2153 = vshra.s32 %v2057, 16
        %v2154 = vshra.s32 %v2058, 16
        %v2155 = vshra.s32 %v2059, 16
        %v2156 = vshra.s32 %v2060, 16
        %v2157 = vshra.s32 %v2061, 16
        %v2158 = vshra.s32 %v2062, 16
        %v2159 = vshra.s32 %v2063, 16
        %v2160 = vshra.s32 %v2064, 16
        %v2161 = vshra.s32 %v2065, 16
        %v2162 = vshra.s32 %v2066, 16
        %v2163 = vshra.s32 %v2067, 16
        %v2164 = vshra.s32 %v2068, 16
        %v2165 = vshra.s32 %v2069, 16
        %v2166 = vshra.s32 %v2070, 16
        %v2167 = vshra.s32 %v2071, 16
        %v2168 = vshra.s32 %v2072, 16
        %v2169 = vshra.s32 %v2073, 16
        %v2170 = vshra.s32 %v2074, 16
        %v2171 = vshra.s32 %v2075, 16
        %v2172 = vshra.s32 %v2076, 16
        %v2173 = vshra.s32 %v2077, 16
        %v2174 = vshra.s32 %v2078, 16
        %v2175 = vshra.s32 %v2079, 16
        %v2176 = vshra.s32 %v2080, 16
        %v2177 = vshra.s32 %v2081, 16
        %v2178 = vshra.s32 %v2082, 16
        %v2179 = vshra.s32 %v2083, 16
        %v2180 = vshra.s32 %v2084, 16
        %v2181 = vshra.s32 %v2085, 16
        %v2182 = vshra.s32 %v2086, 16
        %v2183 = vshra.s32 %v2087, 16
        %v2184 = vshra.s32 %v2088, 16
        %v2185 = vshra.s32 %v2089, 16
        %v2186 = vshra.s32 %v2090, 16
        %v2187 = vshra.s32 %v2091, 16
        %v2188 = vshra.s32 %v2092, 16
        %v2189 = vshra.s32 %v2093, 16
        %v2190 = vshra.s32 %v2094, 16
        %v2191 = vshra.s32 %v2095, 16
        %v2192 = vshra.s32 %v2096, 16
        %v2193 = vshra.s32 %v2097, 16
        %v2194 = vshra.s32 %v2098, 16
        %v2195 = vshra.s32 %v2099, 16
        %v2196 = vshra.s32 %v2100, 16
        %v2197 = vshra.s32 %v2101, 16
        %v2198 = vshra.s32 %v2102, 16
        %v2199 = vshra.s32 %v2103, 16
        %v2200 = vshra.s32 %v2104, 16
        %v2201 = vshra.s32 %v2105, 16
        %v2202 = vshra.s32 %v2106, 16
        %v2203 = vshra.s32 %v2107, 16
        %v2204 = vshra.s32 %v2108, 16
        %v2205 = vshra.s32 %v2109, 16
        %v2206 = vshra.s32 %v2110, 16
        %v2207 = vshra.s32 %v2111, 16
        %v2208 = vshra.s32 %v2112, 16
        %v2209 = vshra.s32 %v2113, 16
        %v2210 = vshra.s32 %v2114, 16
        %v2211 = vshra.s32 %v2115, 16
        %v2212 = vshra.s32 %v2116, 16
        %v2213 = vshra.s32 %v2117, 16
        %v2214 = vshra.s32 %v2118, 16
        %v2215 = vshra.s32 %v2119, 16
        %v2216 = vshra.s32 %v2120, 16
        %v2217 = vshra.s32 %v2121, 16
        %v2218 = vshra.s32 %v2122, 16
        %v2219 = vshra.s32 %v2123, 16
        %v2220 = vshra.s32 %v2124, 16
        %v2221 = vshra.s32 %v2125, 16
        %v2222 = vshra.s32 %v2126, 16
        %v2223 = vshra.s32 %v2127, 16
        %v2224 = vshra.s32 %v2128, 16
        %v2225 = vshra.s32 %v2129, 16
        %v2226 = vshra.s32 %v2130, 16
        %v2227 = vshra.s32 %v2131, 16
        %v2228 = vshra.s32 %v2132, 16
        %v2229 = vand.u32 %v2133, 65535
        %v2230 = vand.u32 %v2134, 65535
        %v2231 = vand.u32 %v2135, 65535
        %v2232 = vand.u32 %v2136, 65535
        %v2233 = vand.u32 %v2137, 65535
        %v2234 = vand.u32 %v2138, 65535
        %v2235 = vand.u32 %v2139, 65535
        %v2236 = vand.u32 %v2140, 65535
        %v2237 = vand.u32 %v2141, 65535
        %v2238 = vand.u32 %v2142, 65535
        %v2239 = vand.u32 %v2143, 65535
        %v2240 = vand.u32 %v2144, 65535
        %v2241 = vand.u32 %v2145, 65535
        %v2242 = vand.u32 %v2146, 65535
        %v2243 = vand.u32 %v2147, 65535
        %v2244 = vand.u32 %v2148, 65535
        %v2245 = vand.u32 %v2149, 65535
        %v2246 = vand.u32 %v2150, 65535
        %v2247 = vand.u32 %v2151, 65535
        %v2248 = vand.u32 %v2152, 65535
        %v2249 = vand.u32 %v2153, 65535
        %v2250 = vand.u32 %v2154, 65535
        %v2251 = vand.u32 %v2155, 65535
        %v2252 = vand.u32 %v2156, 65535
        %v2253 = vand.u32 %v2157, 65535
        %v2254 = vand.u32 %v2158, 65535
        %v2255 = vand.u32 %v2159, 65535
        %v2256 = vand.u32 %v2160, 65535
        %v2257 = vand.u32 %v2161, 65535
        %v2258 = vand.u32 %v2162, 65535
        %v2259 = vand.u32 %v2163, 65535
        %v2260 = vand.u32 %v2164, 65535
        %v2261 = vand.u32 %v2165, 65535
        %v2262 = vand.u32 %v2166, 65535
        %v2263 = vand.u32 %v2167, 65535
        %v2264 = vand.u32 %v2168, 65535
        %v2265 = vand.u32 %v2169, 65535
        %v2266 = vand.u32 %v2170, 65535
        %v2267 = vand.u32 %v2171, 65535
        %v2268 = vand.u32 %v2172, 65535
        %v2269 = vand.u32 %v2173, 65535
        %v2270 = vand.u32 %v2174, 65535
        %v2271 = vand.u32 %v2175, 65535
        %v2272 = vand.u32 %v2176, 65535
        %v2273 = vand.u32 %v2177, 65535
        %v2274 = vand.u32 %v2178, 65535
        %v2275 = vand.u32 %v2179, 65535
        %v2276 = vand.u32 %v2180, 65535
        %v2277 = vand.u32 %v2181, 65535
        %v2278 = vand.u32 %v2182, 65535
        %v2279 = vand.u32 %v2183, 65535
        %v2280 = vand.u32 %v2184, 65535
        %v2281 = vand.u32 %v2185, 65535
        %v2282 = vand.u32 %v2186, 65535
        %v2283 = vand.u32 %v2187, 65535
        %v2284 = vand.u32 %v2188, 65535
        %v2285 = vand.u32 %v2189, 65535
        %v2286 = vand.u32 %v2190, 65535
        %v2287 = vand.u32 %v2191, 65535
        %v2288 = vand.u32 %v2192, 65535
        %v2289 = vand.u32 %v2193, 65535
        %v2290 = vand.u32 %v2194, 65535
        %v2291 = vand.u32 %v2195, 65535
        %v2292 = vand.u32 %v2196, 65535
        %v2293 = vand.u32 %v2197, 65535
        %v2294 = vand.u32 %v2198, 65535
        %v2295 = vand.u32 %v2199, 65535
        %v2296 = vand.u32 %v2200, 65535
        %v2297 = vand.u32 %v2201, 65535
        %v2298 = vand.u32 %v2202, 65535
        %v2299 = vand.u32 %v2203, 65535
        %v2300 = vand.u32 %v2204, 65535
        %v2301 = vand.u32 %v2205, 65535
        %v2302 = vand.u32 %v2206, 65535
        %v2303 = vand.u32 %v2207, 65535
        %v2304 = vand.u32 %v2208, 65535
        %v2305 = vand.u32 %v2209, 65535
        %v2306 = vand.u32 %v2210, 65535
        %v2307 = vand.u32 %v2211, 65535
        %v2308 = vand.u32 %v2212, 65535
        %v2309 = vand.u32 %v2213, 65535
        %v2310 = vand.u32 %v2214, 65535
        %v2311 = vand.u32 %v2215, 65535
        %v2312 = vand.u32 %v2216, 65535
        %v2313 = vand.u32 %v2217, 65535
        %v2314 = vand.u32 %v2218, 65535
        %v2315 = vand.u32 %v2219, 65535
        %v2316 = vand.u32 %v2220, 65535
        %v2317 = vand.u32 %v2221, 65535
        %v2318 = vand.u32 %v2222, 65535
        %v2319 = vand.u32 %v2223, 65535
        %v2320 = vand.u32 %v2224, 65535
        %v2321 = vand.u32 %v2225, 65535
        %v2322 = vand.u32 %v2226, 65535
        %v2323 = vand.u32 %v2227, 65535
        %v2324 = vand.u32 %v2228, 65535
        %v2325 = vxor.u32 %v2037, %v2229
        %v2326 = vxor.u32 %v2038, %v2230
        %v2327 = vxor.u32 %v2039, %v2231
        %v2328 = vxor.u32 %v2040, %v2232
        %v2329 = vxor.u32 %v2041, %v2233
        %v2330 = vxor.u32 %v2042, %v2234
        %v2331 = vxor.u32 %v2043, %v2235
        %v2332 = vxor.u32 %v2044, %v2236
        %v2333 = vxor.u32 %v2045, %v2237
        %v2334 = vxor.u32 %v2046, %v2238
        %v2335 = vxor.u32 %v2047, %v2239
        %v2336 = vxor.u32 %v2048, %v2240
        %v2337 = vxor.u32 %v2049, %v2241
        %v2338 = vxor.u32 %v2050, %v2242
        %v2339 = vxor.u32 %v2051, %v2243
        %v2340 = vxor.u32 %v2052, %v2244
        %v2341 = vxor.u32 %v2053, %v2245
        %v2342 = vxor.u32 %v2054, %v2246
        %v2343 = vxor.u32 %v2055, %v2247
        %v2344 = vxor.u32 %v2056, %v2248
        %v2345 = vxor.u32 %v2057, %v2249
        %v2346 = vxor.u32 %v2058, %v2250
        %v2347 = vxor.u32 %v2059, %v2251
        %v2348 = vxor.u32 %v2060, %v2252
        %v2349 = vxor.u32 %v2061, %v2253
        %v2350 = vxor.u32 %v2062, %v2254
        %v2351 = vxor.u32 %v2063, %v2255
        %v2352 = vxor.u32 %v2064, %v2256
        %v2353 = vxor.u32 %v2065, %v2257
        %v2354 = vxor.u32 %v2066, %v2258
        %v2355 = vxor.u32 %v2067, %v2259
        %v2356 = vxor.u32 %v2068, %v2260
        %v2357 = vxor.u32 %v2069, %v2261
        %v2358 = vxor.u32 %v2070, %v2262
        %v2359 = vxor.u32 %v2071, %v2263
        %v2360 = vxor.u32 %v2072, %v2264
        %v2361 = vxor.u32 %v2073, %v2265
        %v2362 = vxor.u32 %v2074, %v2266
        %v2363 = vxor.u32 %v2075, %v2267
        %v2364 = vxor.u32 %v2076, %v2268
        %v2365 = vxor.u32 %v2077, %v2269
        %v2366 = vxor.u32 %v2078, %v2270
        %v2367 = vxor.u32 %v2079, %v2271
        %v2368 = vxor.u32 %v2080, %v2272
        %v2369 = vxor.u32 %v2081, %v2273
        %v2370 = vxor.u32 %v2082, %v2274
        %v2371 = vxor.u32 %v2083, %v2275
        %v2372 = vxor.u32 %v2084, %v2276
        %v2373 = vxor.u32 %v2085, %v2277
        %v2374 = vxor.u32 %v2086, %v2278
        %v2375 = vxor.u32 %v2087, %v2279
        %v2376 = vxor.u32 %v2088, %v2280
        %v2377 = vxor.u32 %v2089, %v2281
        %v2378 = vxor.u32 %v2090, %v2282
        %v2379 = vxor.u32 %v2091, %v2283
        %v2380 = vxor.u32 %v2092, %v2284
        %v2381 = vxor.u32 %v2093, %v2285
        %v2382 = vxor.u32 %v2094, %v2286
        %v2383 = vxor.u32 %v2095, %v2287
        %v2384 = vxor.u32 %v2096, %v2288
        %v2385 = vxor.u32 %v2097, %v2289
        %v2386 = vxor.u32 %v2098, %v2290
        %v2387 = vxor.u32 %v2099, %v2291
        %v2388 = vxor.u32 %v2100, %v2292
        %v2389 = vxor.u32 %v2101, %v2293
        %v2390 = vxor.u32 %v2102, %v2294
        %v2391 = vxor.u32 %v2103, %v2295
        %v2392 = vxor.u32 %v2104, %v2296
        %v2393 = vxor.u32 %v2105, %v2297
        %v2394 = vxor.u32 %v2106, %v2298
        %v2395 = vxor.u32 %v2107, %v2299
        %v2396 = vxor.u32 %v2108, %v2300
        %v2397 = vxor.u32 %v2109, %v2301
        %v2398 = vxor.u32 %v2110, %v2302
        %v2399 = vxor.u32 %v2111, %v2303
        %v2400 = vxor.u32 %v2112, %v2304
        %v2401 = vxor.u32 %v2113, %v2305
        %v2402 = vxor.u32 %v2114, %v2306
        %v2403 = vxor.u32 %v2115, %v2307
        %v2404 = vxor.u32 %v2116, %v2308
        %v2405 = vxor.u32 %v2117, %v2309
        %v2406 = vxor.u32 %v2118, %v2310
        %v2407 = vxor.u32 %v2119, %v2311
        %v2408 = vxor.u32 %v2120, %v2312
        %v2409 = vxor.u32 %v2121, %v2313
        %v2410 = vxor.u32 %v2122, %v2314
        %v2411 = vxor.u32 %v2123, %v2315
        %v2412 = vxor.u32 %v2124, %v2316
        %v2413 = vxor.u32 %v2125, %v2317
        %v2414 = vxor.u32 %v2126, %v2318
        %v2415 = vxor.u32 %v2127, %v2319
        %v2416 = vxor.u32 %v2128, %v2320
        %v2417 = vxor.u32 %v2129, %v2321
        %v2418 = vxor.u32 %v2130, %v2322
        %v2419 = vxor.u32 %v2131, %v2323
        %v2420 = vxor.u32 %v2132, %v2324
        %vm2421 = vcmp.ge.s32.totalorder %v2325, 2576980377
        %vm2422 = vcmp.ge.s32.totalorder %v2326, 2576980377
        %vm2423 = vcmp.ge.s32.totalorder %v2327, 2576980377
        %vm2424 = vcmp.ge.s32.totalorder %v2328, 2576980377
        %vm2425 = vcmp.ge.s32.totalorder %v2329, 2576980377
        %vm2426 = vcmp.ge.s32.totalorder %v2330, 2576980377
        %vm2427 = vcmp.ge.s32.totalorder %v2331, 2576980377
        %vm2428 = vcmp.ge.s32.totalorder %v2332, 2576980377
        %vm2429 = vcmp.ge.s32.totalorder %v2333, 2576980377
        %vm2430 = vcmp.ge.s32.totalorder %v2334, 2576980377
        %vm2431 = vcmp.ge.s32.totalorder %v2335, 2576980377
        %vm2432 = vcmp.ge.s32.totalorder %v2336, 2576980377
        %vm2433 = vcmp.ge.s32.totalorder %v2337, 2576980377
        %vm2434 = vcmp.ge.s32.totalorder %v2338, 2576980377
        %vm2435 = vcmp.ge.s32.totalorder %v2339, 2576980377
        %vm2436 = vcmp.ge.s32.totalorder %v2340, 2576980377
        %vm2437 = vcmp.ge.s32.totalorder %v2341, 2576980377
        %vm2438 = vcmp.ge.s32.totalorder %v2342, 2576980377
        %vm2439 = vcmp.ge.s32.totalorder %v2343, 2576980377
        %vm2440 = vcmp.ge.s32.totalorder %v2344, 2576980377
        %vm2441 = vcmp.ge.s32.totalorder %v2345, 2576980377
        %vm2442 = vcmp.ge.s32.totalorder %v2346, 2576980377
        %vm2443 = vcmp.ge.s32.totalorder %v2347, 2576980377
        %vm2444 = vcmp.ge.s32.totalorder %v2348, 2576980377
        %vm2445 = vcmp.ge.s32.totalorder %v2349, 2576980377
        %vm2446 = vcmp.ge.s32.totalorder %v2350, 2576980377
        %vm2447 = vcmp.ge.s32.totalorder %v2351, 2576980377
        %vm2448 = vcmp.ge.s32.totalorder %v2352, 2576980377
        %vm2449 = vcmp.ge.s32.totalorder %v2353, 2576980377
        %vm2450 = vcmp.ge.s32.totalorder %v2354, 2576980377
        %vm2451 = vcmp.ge.s32.totalorder %v2355, 2576980377
        %vm2452 = vcmp.ge.s32.totalorder %v2356, 2576980377
        %vm2453 = vcmp.ge.s32.totalorder %v2357, 2576980377
        %vm2454 = vcmp.ge.s32.totalorder %v2358, 2576980377
        %vm2455 = vcmp.ge.s32.totalorder %v2359, 2576980377
        %vm2456 = vcmp.ge.s32.totalorder %v2360, 2576980377
        %vm2457 = vcmp.ge.s32.totalorder %v2361, 2576980377
        %vm2458 = vcmp.ge.s32.totalorder %v2362, 2576980377
        %vm2459 = vcmp.ge.s32.totalorder %v2363, 2576980377
        %vm2460 = vcmp.ge.s32.totalorder %v2364, 2576980377
        %vm2461 = vcmp.ge.s32.totalorder %v2365, 2576980377
        %vm2462 = vcmp.ge.s32.totalorder %v2366, 2576980377
        %vm2463 = vcmp.ge.s32.totalorder %v2367, 2576980377
        %vm2464 = vcmp.ge.s32.totalorder %v2368, 2576980377
        %vm2465 = vcmp.ge.s32.totalorder %v2369, 2576980377
        %vm2466 = vcmp.ge.s32.totalorder %v2370, 2576980377
        %vm2467 = vcmp.ge.s32.totalorder %v2371, 2576980377
        %vm2468 = vcmp.ge.s32.totalorder %v2372, 2576980377
        %vm2469 = vcmp.ge.s32.totalorder %v2373, 2576980377
        %vm2470 = vcmp.ge.s32.totalorder %v2374, 2576980377
        %vm2471 = vcmp.ge.s32.totalorder %v2375, 2576980377
        %vm2472 = vcmp.ge.s32.totalorder %v2376, 2576980377
        %vm2473 = vcmp.ge.s32.totalorder %v2377, 2576980377
        %vm2474 = vcmp.ge.s32.totalorder %v2378, 2576980377
        %vm2475 = vcmp.ge.s32.totalorder %v2379, 2576980377
        %vm2476 = vcmp.ge.s32.totalorder %v2380, 2576980377
        %vm2477 = vcmp.ge.s32.totalorder %v2381, 2576980377
        %vm2478 = vcmp.ge.s32.totalorder %v2382, 2576980377
        %vm2479 = vcmp.ge.s32.totalorder %v2383, 2576980377
        %vm2480 = vcmp.ge.s32.totalorder %v2384, 2576980377
        %vm2481 = vcmp.ge.s32.totalorder %v2385, 2576980377
        %vm2482 = vcmp.ge.s32.totalorder %v2386, 2576980377
        %vm2483 = vcmp.ge.s32.totalorder %v2387, 2576980377
        %vm2484 = vcmp.ge.s32.totalorder %v2388, 2576980377
        %vm2485 = vcmp.ge.s32.totalorder %v2389, 2576980377
        %vm2486 = vcmp.ge.s32.totalorder %v2390, 2576980377
        %vm2487 = vcmp.ge.s32.totalorder %v2391, 2576980377
        %vm2488 = vcmp.ge.s32.totalorder %v2392, 2576980377
        %vm2489 = vcmp.ge.s32.totalorder %v2393, 2576980377
        %vm2490 = vcmp.ge.s32.totalorder %v2394, 2576980377
        %vm2491 = vcmp.ge.s32.totalorder %v2395, 2576980377
        %vm2492 = vcmp.ge.s32.totalorder %v2396, 2576980377
        %vm2493 = vcmp.ge.s32.totalorder %v2397, 2576980377
        %vm2494 = vcmp.ge.s32.totalorder %v2398, 2576980377
        %vm2495 = vcmp.ge.s32.totalorder %v2399, 2576980377
        %vm2496 = vcmp.ge.s32.totalorder %v2400, 2576980377
        %vm2497 = vcmp.ge.s32.totalorder %v2401, 2576980377
        %vm2498 = vcmp.ge.s32.totalorder %v2402, 2576980377
        %vm2499 = vcmp.ge.s32.totalorder %v2403, 2576980377
        %vm2500 = vcmp.ge.s32.totalorder %v2404, 2576980377
        %vm2501 = vcmp.ge.s32.totalorder %v2405, 2576980377
        %vm2502 = vcmp.ge.s32.totalorder %v2406, 2576980377
        %vm2503 = vcmp.ge.s32.totalorder %v2407, 2576980377
        %vm2504 = vcmp.ge.s32.totalorder %v2408, 2576980377
        %vm2505 = vcmp.ge.s32.totalorder %v2409, 2576980377
        %vm2506 = vcmp.ge.s32.totalorder %v2410, 2576980377
        %vm2507 = vcmp.ge.s32.totalorder %v2411, 2576980377
        %vm2508 = vcmp.ge.s32.totalorder %v2412, 2576980377
        %vm2509 = vcmp.ge.s32.totalorder %v2413, 2576980377
        %vm2510 = vcmp.ge.s32.totalorder %v2414, 2576980377
        %vm2511 = vcmp.ge.s32.totalorder %v2415, 2576980377
        %vm2512 = vcmp.ge.s32.totalorder %v2416, 2576980377
        %vm2513 = vcmp.ge.s32.totalorder %v2417, 2576980377
        %vm2514 = vcmp.ge.s32.totalorder %v2418, 2576980377
        %vm2515 = vcmp.ge.s32.totalorder %v2419, 2576980377
        %vm2516 = vcmp.ge.s32.totalorder %v2420, 2576980377
        %v2517 = vsel %vm2421, %v709, 0.0
        %v2518 = vsel %vm2422, %v711, 0.0
        %v2519 = vsel %vm2423, %v713, 0.0
        %v2520 = vsel %vm2424, %v715, 0.0
        %v2521 = vsel %vm2425, %v717, 0.0
        %v2522 = vsel %vm2426, %v719, 0.0
        %v2523 = vsel %vm2427, %v721, 0.0
        %v2524 = vsel %vm2428, %v723, 0.0
        %v2525 = vsel %vm2429, %v725, 0.0
        %v2526 = vsel %vm2430, %v727, 0.0
        %v2527 = vsel %vm2431, %v729, 0.0
        %v2528 = vsel %vm2432, %v731, 0.0
        %v2529 = vsel %vm2433, %v733, 0.0
        %v2530 = vsel %vm2434, %v735, 0.0
        %v2531 = vsel %vm2435, %v737, 0.0
        %v2532 = vsel %vm2436, %v739, 0.0
        %v2533 = vsel %vm2437, %v741, 0.0
        %v2534 = vsel %vm2438, %v743, 0.0
        %v2535 = vsel %vm2439, %v745, 0.0
        %v2536 = vsel %vm2440, %v747, 0.0
        %v2537 = vsel %vm2441, %v749, 0.0
        %v2538 = vsel %vm2442, %v751, 0.0
        %v2539 = vsel %vm2443, %v753, 0.0
        %v2540 = vsel %vm2444, %v755, 0.0
        %v2541 = vsel %vm2445, %v757, 0.0
        %v2542 = vsel %vm2446, %v759, 0.0
        %v2543 = vsel %vm2447, %v761, 0.0
        %v2544 = vsel %vm2448, %v763, 0.0
        %v2545 = vsel %vm2449, %v765, 0.0
        %v2546 = vsel %vm2450, %v767, 0.0
        %v2547 = vsel %vm2451, %v769, 0.0
        %v2548 = vsel %vm2452, %v771, 0.0
        %v2549 = vsel %vm2453, %v773, 0.0
        %v2550 = vsel %vm2454, %v775, 0.0
        %v2551 = vsel %vm2455, %v777, 0.0
        %v2552 = vsel %vm2456, %v779, 0.0
        %v2553 = vsel %vm2457, %v781, 0.0
        %v2554 = vsel %vm2458, %v783, 0.0
        %v2555 = vsel %vm2459, %v785, 0.0
        %v2556 = vsel %vm2460, %v787, 0.0
        %v2557 = vsel %vm2461, %v789, 0.0
        %v2558 = vsel %vm2462, %v791, 0.0
        %v2559 = vsel %vm2463, %v793, 0.0
        %v2560 = vsel %vm2464, %v795, 0.0
        %v2561 = vsel %vm2465, %v797, 0.0
        %v2562 = vsel %vm2466, %v799, 0.0
        %v2563 = vsel %vm2467, %v801, 0.0
        %v2564 = vsel %vm2468, %v803, 0.0
        %v2565 = vsel %vm2469, %v805, 0.0
        %v2566 = vsel %vm2470, %v807, 0.0
        %v2567 = vsel %vm2471, %v809, 0.0
        %v2568 = vsel %vm2472, %v811, 0.0
        %v2569 = vsel %vm2473, %v813, 0.0
        %v2570 = vsel %vm2474, %v815, 0.0
        %v2571 = vsel %vm2475, %v817, 0.0
        %v2572 = vsel %vm2476, %v819, 0.0
        %v2573 = vsel %vm2477, %v821, 0.0
        %v2574 = vsel %vm2478, %v823, 0.0
        %v2575 = vsel %vm2479, %v825, 0.0
        %v2576 = vsel %vm2480, %v827, 0.0
        %v2577 = vsel %vm2481, %v829, 0.0
        %v2578 = vsel %vm2482, %v831, 0.0
        %v2579 = vsel %vm2483, %v833, 0.0
        %v2580 = vsel %vm2484, %v835, 0.0
        %v2581 = vsel %vm2485, %v837, 0.0
        %v2582 = vsel %vm2486, %v839, 0.0
        %v2583 = vsel %vm2487, %v841, 0.0
        %v2584 = vsel %vm2488, %v843, 0.0
        %v2585 = vsel %vm2489, %v845, 0.0
        %v2586 = vsel %vm2490, %v847, 0.0
        %v2587 = vsel %vm2491, %v849, 0.0
        %v2588 = vsel %vm2492, %v851, 0.0
        %v2589 = vsel %vm2493, %v853, 0.0
        %v2590 = vsel %vm2494, %v855, 0.0
        %v2591 = vsel %vm2495, %v857, 0.0
        %v2592 = vsel %vm2496, %v859, 0.0
        %v2593 = vsel %vm2497, %v861, 0.0
        %v2594 = vsel %vm2498, %v863, 0.0
        %v2595 = vsel %vm2499, %v865, 0.0
        %v2596 = vsel %vm2500, %v867, 0.0
        %v2597 = vsel %vm2501, %v869, 0.0
        %v2598 = vsel %vm2502, %v871, 0.0
        %v2599 = vsel %vm2503, %v873, 0.0
        %v2600 = vsel %vm2504, %v875, 0.0
        %v2601 = vsel %vm2505, %v877, 0.0
        %v2602 = vsel %vm2506, %v879, 0.0
        %v2603 = vsel %vm2507, %v881, 0.0
        %v2604 = vsel %vm2508, %v883, 0.0
        %v2605 = vsel %vm2509, %v885, 0.0
        %v2606 = vsel %vm2510, %v887, 0.0
        %v2607 = vsel %vm2511, %v889, 0.0
        %v2608 = vsel %vm2512, %v891, 0.0
        %v2609 = vsel %vm2513, %v893, 0.0
        %v2610 = vsel %vm2514, %v895, 0.0
        %v2611 = vsel %vm2515, %v897, 0.0
        %v2612 = vsel %vm2516, %v899, 0.0
        %v2613 = vpack.c.bf16 %v2520, %v2517
        %v2614 = vpack.c.bf16 %v2521, %v2518
        %v2615 = vpack.c.bf16 %v2522, %v2519
        %v2616 = vpack.c.bf16 %v2526, %v2523
        %v2617 = vpack.c.bf16 %v2527, %v2524
        %v2618 = vpack.c.bf16 %v2528, %v2525
        %v2619 = vpack.c.bf16 %v2532, %v2529
        %v2620 = vpack.c.bf16 %v2533, %v2530
        %v2621 = vpack.c.bf16 %v2534, %v2531
        %v2622 = vpack.c.bf16 %v2538, %v2535
        %v2623 = vpack.c.bf16 %v2539, %v2536
        %v2624 = vpack.c.bf16 %v2540, %v2537
        %v2625 = vpack.c.bf16 %v2544, %v2541
        %v2626 = vpack.c.bf16 %v2545, %v2542
        %v2627 = vpack.c.bf16 %v2546, %v2543
        %v2628 = vpack.c.bf16 %v2550, %v2547
        %v2629 = vpack.c.bf16 %v2551, %v2548
        %v2630 = vpack.c.bf16 %v2552, %v2549
        %v2631 = vpack.c.bf16 %v2556, %v2553
        %v2632 = vpack.c.bf16 %v2557, %v2554
        %v2633 = vpack.c.bf16 %v2558, %v2555
        %v2634 = vpack.c.bf16 %v2562, %v2559
        %v2635 = vpack.c.bf16 %v2563, %v2560
        %v2636 = vpack.c.bf16 %v2564, %v2561
        %v2637 = vpack.c.bf16 %v2568, %v2565
        %v2638 = vpack.c.bf16 %v2569, %v2566
        %v2639 = vpack.c.bf16 %v2570, %v2567
        %v2640 = vpack.c.bf16 %v2574, %v2571
        %v2641 = vpack.c.bf16 %v2575, %v2572
        %v2642 = vpack.c.bf16 %v2576, %v2573
        %v2643 = vpack.c.bf16 %v2580, %v2577
        %v2644 = vpack.c.bf16 %v2581, %v2578
        %v2645 = vpack.c.bf16 %v2582, %v2579
        %v2646 = vpack.c.bf16 %v2586, %v2583
        %v2647 = vpack.c.bf16 %v2587, %v2584
        %v2648 = vpack.c.bf16 %v2588, %v2585
        %v2649 = vpack.c.bf16 %v2592, %v2589
        %v2650 = vpack.c.bf16 %v2593, %v2590
        %v2651 = vpack.c.bf16 %v2594, %v2591
        %v2652 = vpack.c.bf16 %v2598, %v2595
        %v2653 = vpack.c.bf16 %v2599, %v2596
        %v2654 = vpack.c.bf16 %v2600, %v2597
        %v2655 = vpack.c.bf16 %v2604, %v2601
        %v2656 = vpack.c.bf16 %v2605, %v2602
        %v2657 = vpack.c.bf16 %v2606, %v2603
        %v2658 = vpack.c.bf16 %v2610, %v2607
        %v2659 = vpack.c.bf16 %v2611, %v2608
        %v2660 = vpack.c.bf16 %v2612, %v2609
        %v2661 = vld [vmem:[%s270] sm:$0xff]
        %v2662 = vld [vmem:[%s270 + $0x8] sm:$0xff]
        %v2663 = vld [vmem:[%s270 + $0x10] sm:$0xff]
        %v2664 = vld [vmem:[%s270 + $0x18] sm:$0xff]
        %v2665 = vld [vmem:[%s270 + $0x20] sm:$0xff]
        %v2666 = vld [vmem:[%s270 + $0x28] sm:$0xff]
        %v2667 = vld [vmem:[%s270 + $0x30] sm:$0xff]
        %v2668 = vld [vmem:[%s270 + $0x38] sm:$0xff]
        %v2669 = vld [vmem:[%s270 + $0x40] sm:$0xff]
        %v2670 = vld [vmem:[%s270 + $0x48] sm:$0xff]
        %v2671 = vld [vmem:[%s270 + $0x50] sm:$0xff]
        %v2672 = vld [vmem:[%s270 + $0x58] sm:$0xff]
        %v2673 = vld [vmem:[%s270 + $0x60] sm:$0xff]
        %v2674 = vld [vmem:[%s270 + $0x68] sm:$0xff]
        %v2675 = vld [vmem:[%s270 + $0x70] sm:$0xff]
        %v2676 = vld [vmem:[%s270 + $0x78] sm:$0xff]
        %v2677 = vld [vmem:[%s270 + $0x80] sm:$0xff]
        %v2678 = vld [vmem:[%s270 + $0x88] sm:$0xff]
        %v2679 = vld [vmem:[%s270 + $0x90] sm:$0xff]
        %v2680 = vld [vmem:[%s270 + $0x98] sm:$0xff]
        %v2681 = vld [vmem:[%s270 + $0xa0] sm:$0xff]
        %v2682 = vld [vmem:[%s270 + $0xa8] sm:$0xff]
        %v2683 = vld [vmem:[%s270 + $0xb0] sm:$0xff]
        %v2684 = vld [vmem:[%s270 + $0xb8] sm:$0xff]
        %v2685 = vld [vmem:[%s270 + $0xc0] sm:$0xff]
        %v2686 = vld [vmem:[%s270 + $0xc8] sm:$0xff]
        %v2687 = vld [vmem:[%s270 + $0xd0] sm:$0xff]
        %v2688 = vld [vmem:[%s270 + $0xd8] sm:$0xff]
        %v2689 = vld [vmem:[%s270 + $0xe0] sm:$0xff]
        %v2690 = vld [vmem:[%s270 + $0xe8] sm:$0xff]
        %v2691 = vld [vmem:[%s270 + $0xf0] sm:$0xff]
        %v2692 = vld [vmem:[%s270 + $0xf8] sm:$0xff]
        %v2693 = vld [vmem:[%s270 + $0x100] sm:$0xff]
        %v2694 = vld [vmem:[%s270 + $0x108] sm:$0xff]
        %v2695 = vld [vmem:[%s270 + $0x110] sm:$0xff]
        %v2696 = vld [vmem:[%s270 + $0x118] sm:$0xff]
        %v2697 = vld [vmem:[%s270 + $0x120] sm:$0xff]
        %v2698 = vld [vmem:[%s270 + $0x128] sm:$0xff]
        %v2699 = vld [vmem:[%s270 + $0x130] sm:$0xff]
        %v2700 = vld [vmem:[%s270 + $0x138] sm:$0xff]
        %v2701 = vld [vmem:[%s270 + $0x140] sm:$0xff]
        %v2702 = vld [vmem:[%s270 + $0x148] sm:$0xff]
        %v2703 = vld [vmem:[%s270 + $0x150] sm:$0xff]
        %v2704 = vld [vmem:[%s270 + $0x158] sm:$0xff]
        %v2705 = vld [vmem:[%s270 + $0x160] sm:$0xff]
        %v2706 = vld [vmem:[%s270 + $0x168] sm:$0xff]
        %v2707 = vld [vmem:[%s270 + $0x170] sm:$0xff]
        %v2708 = vld [vmem:[%s270 + $0x178] sm:$0xff]
        %v2709 = vld [vmem:[%s270 + $0x180] sm:$0xff]
        %v2710 = vld [vmem:[%s270 + $0x188] sm:$0xff]
        %v2711 = vld [vmem:[%s270 + $0x190] sm:$0xff]
        %v2712 = vld [vmem:[%s270 + $0x198] sm:$0xff]
        %v2713 = vld [vmem:[%s270 + $0x1a0] sm:$0xff]
        %v2714 = vld [vmem:[%s270 + $0x1a8] sm:$0xff]
        %v2715 = vld [vmem:[%s270 + $0x1b0] sm:$0xff]
        %v2716 = vld [vmem:[%s270 + $0x1b8] sm:$0xff]
        %v2717 = vld [vmem:[%s270 + $0x1c0] sm:$0xff]
        %v2718 = vld [vmem:[%s270 + $0x1c8] sm:$0xff]
        %v2719 = vld [vmem:[%s270 + $0x1d0] sm:$0xff]
        %v2720 = vld [vmem:[%s270 + $0x1d8] sm:$0xff]
        %v2721 = vld [vmem:[%s270 + $0x1e0] sm:$0xff]
        %v2722 = vld [vmem:[%s270 + $0x1e8] sm:$0xff]
        %v2723 = vld [vmem:[%s270 + $0x1f0] sm:$0xff]
        %v2724 = vld [vmem:[%s270 + $0x1f8] sm:$0xff]
        %v2725 = vld [vmem:[%s270 + $0x200] sm:$0xff]
        %v2726 = vld [vmem:[%s270 + $0x208] sm:$0xff]
        %v2727 = vld [vmem:[%s270 + $0x210] sm:$0xff]
        %v2728 = vld [vmem:[%s270 + $0x218] sm:$0xff]
        %v2729 = vld [vmem:[%s270 + $0x220] sm:$0xff]
        %v2730 = vld [vmem:[%s270 + $0x228] sm:$0xff]
        %v2731 = vld [vmem:[%s270 + $0x230] sm:$0xff]
        %v2732 = vld [vmem:[%s270 + $0x238] sm:$0xff]
        %v2733 = vld [vmem:[%s270 + $0x240] sm:$0xff]
        %v2734 = vld [vmem:[%s270 + $0x248] sm:$0xff]
        %v2735 = vld [vmem:[%s270 + $0x250] sm:$0xff]
        %v2736 = vld [vmem:[%s270 + $0x258] sm:$0xff]
        %v2737 = vld [vmem:[%s270 + $0x260] sm:$0xff]
        %v2738 = vld [vmem:[%s270 + $0x268] sm:$0xff]
        %v2739 = vld [vmem:[%s270 + $0x270] sm:$0xff]
        %v2740 = vld [vmem:[%s270 + $0x278] sm:$0xff]
        %v2741 = vld [vmem:[%s270 + $0x280] sm:$0xff]
        %v2742 = vld [vmem:[%s270 + $0x288] sm:$0xff]
        %v2743 = vld [vmem:[%s270 + $0x290] sm:$0xff]
        %v2744 = vld [vmem:[%s270 + $0x298] sm:$0xff]
        %v2745 = vld [vmem:[%s270 + $0x2a0] sm:$0xff]
        %v2746 = vld [vmem:[%s270 + $0x2a8] sm:$0xff]
        %v2747 = vld [vmem:[%s270 + $0x2b0] sm:$0xff]
        %v2748 = vld [vmem:[%s270 + $0x2b8] sm:$0xff]
        %v2749 = vld [vmem:[%s270 + $0x2c0] sm:$0xff]
        %v2750 = vld [vmem:[%s270 + $0x2c8] sm:$0xff]
        %v2751 = vld [vmem:[%s270 + $0x2d0] sm:$0xff]
        %v2752 = vld [vmem:[%s270 + $0x2d8] sm:$0xff]
        %v2753 = vld [vmem:[%s270 + $0x2e0] sm:$0xff]
        %v2754 = vld [vmem:[%s270 + $0x2e8] sm:$0xff]
        %v2755 = vld [vmem:[%s270 + $0x2f0] sm:$0xff]
        %v2756 = vld [vmem:[%s270 + $0x2f8] sm:$0xff]
        %v2757 = vpack.c.bf16 %v2662, %v2661
        %v2758 = vpack.c.bf16 %v2664, %v2663
        %v2759 = vpack.c.bf16 %v2666, %v2665
        %v2760 = vpack.c.bf16 %v2668, %v2667
        %v2761 = vpack.c.bf16 %v2670, %v2669
        %v2762 = vpack.c.bf16 %v2672, %v2671
        %v2763 = vpack.c.bf16 %v2674, %v2673
        %v2764 = vpack.c.bf16 %v2676, %v2675
        %v2765 = vpack.c.bf16 %v2678, %v2677
        %v2766 = vpack.c.bf16 %v2680, %v2679
        %v2767 = vpack.c.bf16 %v2682, %v2681
        %v2768 = vpack.c.bf16 %v2684, %v2683
        %v2769 = vpack.c.bf16 %v2686, %v2685
        %v2770 = vpack.c.bf16 %v2688, %v2687
        %v2771 = vpack.c.bf16 %v2690, %v2689
        %v2772 = vpack.c.bf16 %v2692, %v2691
        %v2773 = vpack.c.bf16 %v2694, %v2693
        %v2774 = vpack.c.bf16 %v2696, %v2695
        %v2775 = vpack.c.bf16 %v2698, %v2697
        %v2776 = vpack.c.bf16 %v2700, %v2699
        %v2777 = vpack.c.bf16 %v2702, %v2701
        %v2778 = vpack.c.bf16 %v2704, %v2703
        %v2779 = vpack.c.bf16 %v2706, %v2705
        %v2780 = vpack.c.bf16 %v2708, %v2707
        %v2781 = vpack.c.bf16 %v2710, %v2709
        %v2782 = vpack.c.bf16 %v2712, %v2711
        %v2783 = vpack.c.bf16 %v2714, %v2713
        %v2784 = vpack.c.bf16 %v2716, %v2715
        %v2785 = vpack.c.bf16 %v2718, %v2717
        %v2786 = vpack.c.bf16 %v2720, %v2719
        %v2787 = vpack.c.bf16 %v2722, %v2721
        %v2788 = vpack.c.bf16 %v2724, %v2723
        %v2789 = vpack.c.bf16 %v2726, %v2725
        %v2790 = vpack.c.bf16 %v2728, %v2727
        %v2791 = vpack.c.bf16 %v2730, %v2729
        %v2792 = vpack.c.bf16 %v2732, %v2731
        %v2793 = vpack.c.bf16 %v2734, %v2733
        %v2794 = vpack.c.bf16 %v2736, %v2735
        %v2795 = vpack.c.bf16 %v2738, %v2737
        %v2796 = vpack.c.bf16 %v2740, %v2739
        %v2797 = vpack.c.bf16 %v2742, %v2741
        %v2798 = vpack.c.bf16 %v2744, %v2743
        %v2799 = vpack.c.bf16 %v2746, %v2745
        %v2800 = vpack.c.bf16 %v2748, %v2747
        %v2801 = vpack.c.bf16 %v2750, %v2749
        %v2802 = vpack.c.bf16 %v2752, %v2751
        %v2803 = vpack.c.bf16 %v2754, %v2753
        %v2804 = vpack.c.bf16 %v2756, %v2755
        %2805 = vmatprep.subr.bf16.mxu0 0
        %2806 = vmatpush1.bf16.msra.mxu0 %v2757
        %2807 = vmatprep.subr.bf16.mxu0 0
        %2808 = vmatpush1.bf16.msra.mxu0 %v2758
        %2809 = vmatprep.subr.bf16.mxu0 0
        %2810 = vmatpush1.bf16.msra.mxu0 %v2759
        %2811 = vmatprep.subr.bf16.mxu0 0
        %2812 = vmatpush1.bf16.msra.mxu0 %v2760
        %2813 = vmatprep.subr.bf16.mxu0 0
        %2814 = vmatpush1.bf16.msra.mxu0 %v2761
        %2815 = vmatprep.subr.bf16.mxu0 0
        %2816 = vmatpush1.bf16.msra.mxu0 %v2762
        %2817 = vmatprep.subr.bf16.mxu0 0
        %2818 = vmatpush1.bf16.msra.mxu0 %v2763
        %2819 = vmatprep.subr.bf16.mxu0 0
        %2820 = vmatpush1.bf16.msra.mxu0 %v2764
        %2821 = vmatprep.subr.bf16.mxu0 0
        %2822 = vmatpush1.bf16.msra.mxu0 %v2765
        %2823 = vmatprep.subr.bf16.mxu0 0
        %2824 = vmatpush1.bf16.msra.mxu0 %v2766
        %2825 = vmatprep.subr.bf16.mxu0 0
        %2826 = vmatpush1.bf16.msra.mxu0 %v2767
        %2827 = vmatprep.subr.bf16.mxu0 0
        %2828 = vmatpush1.bf16.msra.mxu0 %v2768
        %2829 = vmatprep.subr.bf16.mxu0 0
        %2830 = vmatpush1.bf16.msra.mxu0 %v2769
        %2831 = vmatprep.subr.bf16.mxu0 0
        %2832 = vmatpush1.bf16.msra.mxu0 %v2770
        %2833 = vmatprep.subr.bf16.mxu0 0
        %2834 = vmatpush1.bf16.msra.mxu0 %v2771
        %2835 = vmatprep.subr.bf16.mxu0 0
        %2836 = vmatpush1.bf16.msra.mxu0 %v2772
        %2837 = vmatprep.mubr.bf16.mxu0 %v2614
        %2838 = vmatmul.mubr.bf16.gmra.mrb[0].mxu0 %v2613
        %v2839 = vpop.f32.mrb[0].mxu0
        %v2840 = vadd.f32 0.0, %v2839
        %v2841 = vpop.f32.mrb[0].mxu0
        %v2842 = vpop.f32.mrb[0].mxu0
        %v2843 = vadd.f32 0.0, %v2842
        %v2844 = vpop.f32.mrb[0].mxu0
        %2845 = vmatprep.mubr.bf16.mxu0 %v2617
        %2846 = vmatmul.mubr.bf16.gmra.mrb[0].mxu0 %v2616
        %v2847 = vpop.f32.mrb[0].mxu0
        %v2848 = vadd.f32 0.0, %v2847
        %v2849 = vpop.f32.mrb[0].mxu0
        %v2850 = vpop.f32.mrb[0].mxu0
        %v2851 = vadd.f32 0.0, %v2850
        %v2852 = vpop.f32.mrb[0].mxu0
        %2853 = vmatprep.mubr.bf16.mxu0 %v2620
        %2854 = vmatmul.mubr.bf16.gmra.mrb[0].mxu0 %v2619
        %v2855 = vpop.f32.mrb[0].mxu0
        %v2856 = vadd.f32 0.0, %v2855
        %v2857 = vpop.f32.mrb[0].mxu0
        %v2858 = vpop.f32.mrb[0].mxu0
        %v2859 = vadd.f32 0.0, %v2858
        %v2860 = vpop.f32.mrb[0].mxu0
        %2861 = vmatprep.mubr.bf16.mxu0 %v2623
        %2862 = vmatmul.mubr.bf16.gmra.mrb[0].mxu0 %v2622
        %v2863 = vpop.f32.mrb[0].mxu0
        %v2864 = vadd.f32 0.0, %v2863
        %v2865 = vpop.f32.mrb[0].mxu0
        %v2866 = vpop.f32.mrb[0].mxu0
        %v2867 = vadd.f32 0.0, %v2866
        %v2868 = vpop.f32.mrb[0].mxu0
        %2869 = vmatprep.mubr.bf16.mxu0 %v2626
        %2870 = vmatmul.mubr.bf16.gmra.mrb[0].mxu0 %v2625
        %v2871 = vpop.f32.mrb[0].mxu0
        %v2872 = vadd.f32 0.0, %v2871
        %v2873 = vpop.f32.mrb[0].mxu0
        %v2874 = vpop.f32.mrb[0].mxu0
        %v2875 = vadd.f32 0.0, %v2874
        %v2876 = vpop.f32.mrb[0].mxu0
        %2877 = vmatprep.mubr.bf16.mxu0 %v2629
        %2878 = vmatmul.mubr.bf16.gmra.mrb[0].mxu0 %v2628
        %v2879 = vpop.f32.mrb[0].mxu0
        %v2880 = vadd.f32 0.0, %v2879
        %v2881 = vpop.f32.mrb[0].mxu0
        %v2882 = vpop.f32.mrb[0].mxu0
        %v2883 = vadd.f32 0.0, %v2882
        %v2884 = vpop.f32.mrb[0].mxu0
        %2885 = vmatprep.mubr.bf16.mxu0 %v2632
        %2886 = vmatmul.mubr.bf16.gmra.mrb[0].mxu0 %v2631
        %v2887 = vpop.f32.mrb[0].mxu0
        %v2888 = vadd.f32 0.0, %v2887
        %v2889 = vpop.f32.mrb[0].mxu0
        %v2890 = vpop.f32.mrb[0].mxu0
        %v2891 = vadd.f32 0.0, %v2890
        %v2892 = vpop.f32.mrb[0].mxu0
        %2893 = vmatprep.mubr.bf16.mxu0 %v2635
        %2894 = vmatmul.mubr.bf16.gmra.mrb[0].mxu0 %v2634
        %v2895 = vpop.f32.mrb[0].mxu0
        %v2896 = vadd.f32 0.0, %v2895
        %v2897 = vpop.f32.mrb[0].mxu0
        %v2898 = vpop.f32.mrb[0].mxu0
        %v2899 = vadd.f32 0.0, %v2898
        %v2900 = vpop.f32.mrb[0].mxu0
        %2901 = vdwg.mxu0
        %2902 = vmatprep.subr.bf16.mxu0 0
        %2903 = vmatpush1.bf16.msra.mxu0 %v2773
        %2904 = vmatprep.subr.bf16.mxu0 0
        %2905 = vmatpush1.bf16.msra.mxu0 %v2774
        %2906 = vmatprep.subr.bf16.mxu0 0
        %2907 = vmatpush1.bf16.msra.mxu0 %v2775
        %2908 = vmatprep.subr.bf16.mxu0 0
        %2909 = vmatpush1.bf16.msra.mxu0 %v2776
        %2910 = vmatprep.subr.bf16.mxu0 0
        %2911 = vmatpush1.bf16.msra.mxu0 %v2777
        %2912 = vmatprep.subr.bf16.mxu0 0
        %2913 = vmatpush1.bf16.msra.mxu0 %v2778
        %2914 = vmatprep.subr.bf16.mxu0 0
        %2915 = vmatpush1.bf16.msra.mxu0 %v2779
        %2916 = vmatprep.subr.bf16.mxu0 0
        %2917 = vmatpush1.bf16.msra.mxu0 %v2780
        %2918 = vmatprep.subr.bf16.mxu0 0
        %2919 = vmatpush1.bf16.msra.mxu0 0
        %2920 = vmatprep.subr.bf16.mxu0 0
        %2921 = vmatpush1.bf16.msra.mxu0 0
        %2922 = vmatprep.subr.bf16.mxu0 0
        %2923 = vmatpush1.bf16.msra.mxu0 0
        %2924 = vmatprep.subr.bf16.mxu0 0
        %2925 = vmatpush1.bf16.msra.mxu0 0
        %2926 = vmatprep.subr.bf16.mxu0 0
        %2927 = vmatpush1.bf16.msra.mxu0 0
        %2928 = vmatprep.subr.bf16.mxu0 0
        %2929 = vmatpush1.bf16.msra.mxu0 0
        %2930 = vmatprep.subr.bf16.mxu0 0
        %2931 = vmatpush1.bf16.msra.mxu0 0
        %2932 = vmatprep.subr.bf16.mxu0 0
        %2933 = vmatpush1.bf16.msra.mxu0 0
        %2934 = vmatprep.mubr.bf16.mxu0 0
        %2935 = vmatmul.mubr.bf16.gmra.mrb[0].mxu0 %v2615
        %v2936 = vpop.f32.mrb[0].mxu0
        %v2937 = vadd.f32 %v2840, %v2936
        %v2938 = vpop.f32.mrb[0].mxu0
        %v2939 = vpop.f32.mrb[0].mxu0
        %v2940 = vadd.f32 %v2843, %v2939
        %v2941 = vpop.f32.mrb[0].mxu0
        %2942 = vmatprep.mubr.bf16.mxu0 0
        %2943 = vmatmul.mubr.bf16.gmra.mrb[0].mxu0 %v2618
        %v2944 = vpop.f32.mrb[0].mxu0
        %v2945 = vadd.f32 %v2848, %v2944
        %v2946 = vpop.f32.mrb[0].mxu0
        %v2947 = vpop.f32.mrb[0].mxu0
        %v2948 = vadd.f32 %v2851, %v2947
        %v2949 = vpop.f32.mrb[0].mxu0
        %2950 = vmatprep.mubr.bf16.mxu0 0
        %2951 = vmatmul.mubr.bf16.gmra.mrb[0].mxu0 %v2621
        %v2952 = vpop.f32.mrb[0].mxu0
        %v2953 = vadd.f32 %v2856, %v2952
        %v2954 = vpop.f32.mrb[0].mxu0
        %v2955 = vpop.f32.mrb[0].mxu0
        %v2956 = vadd.f32 %v2859, %v2955
        %v2957 = vpop.f32.mrb[0].mxu0
        %2958 = vmatprep.mubr.bf16.mxu0 0
        %2959 = vmatmul.mubr.bf16.gmra.mrb[0].mxu0 %v2624
        %v2960 = vpop.f32.mrb[0].mxu0
        %v2961 = vadd.f32 %v2864, %v2960
        %v2962 = vpop.f32.mrb[0].mxu0
        %v2963 = vpop.f32.mrb[0].mxu0
        %v2964 = vadd.f32 %v2867, %v2963
        %v2965 = vpop.f32.mrb[0].mxu0
        %2966 = vmatprep.mubr.bf16.mxu0 0
        %2967 = vmatmul.mubr.bf16.gmra.mrb[0].mxu0 %v2627
        %v2968 = vpop.f32.mrb[0].mxu0
        %v2969 = vadd.f32 %v2872, %v2968
        %v2970 = vpop.f32.mrb[0].mxu0
        %v2971 = vpop.f32.mrb[0].mxu0
        %v2972 = vadd.f32 %v2875, %v2971
        %v2973 = vpop.f32.mrb[0].mxu0
        %2974 = vmatprep.mubr.bf16.mxu0 0
        %2975 = vmatmul.mubr.bf16.gmra.mrb[0].mxu0 %v2630
        %v2976 = vpop.f32.mrb[0].mxu0
        %v2977 = vadd.f32 %v2880, %v2976
        %v2978 = vpop.f32.mrb[0].mxu0
        %v2979 = vpop.f32.mrb[0].mxu0
        %v2980 = vadd.f32 %v2883, %v2979
        %v2981 = vpop.f32.mrb[0].mxu0
        %2982 = vmatprep.mubr.bf16.mxu0 0
        %2983 = vmatmul.mubr.bf16.gmra.mrb[0].mxu0 %v2633
        %v2984 = vpop.f32.mrb[0].mxu0
        %v2985 = vadd.f32 %v2888, %v2984
        %v2986 = vpop.f32.mrb[0].mxu0
        %v2987 = vpop.f32.mrb[0].mxu0
        %v2988 = vadd.f32 %v2891, %v2987
        %v2989 = vpop.f32.mrb[0].mxu0
        %2990 = vmatprep.mubr.bf16.mxu0 0
        %2991 = vmatmul.mubr.bf16.gmra.mrb[0].mxu0 %v2636
        %v2992 = vpop.f32.mrb[0].mxu0
        %v2993 = vadd.f32 %v2896, %v2992
        %v2994 = vpop.f32.mrb[0].mxu0
        %v2995 = vpop.f32.mrb[0].mxu0
        %v2996 = vadd.f32 %v2899, %v2995
        %v2997 = vpop.f32.mrb[0].mxu0
        %2998 = vdwg.mxu0
        %2999 = vmatprep.subr.bf16.mxu0 0
        %3000 = vmatpush1.bf16.msra.mxu0 %v2781
        %3001 = vmatprep.subr.bf16.mxu0 0
        %3002 = vmatpush1.bf16.msra.mxu0 %v2782
        %3003 = vmatprep.subr.bf16.mxu0 0
        %3004 = vmatpush1.bf16.msra.mxu0 %v2783
        %3005 = vmatprep.subr.bf16.mxu0 0
        %3006 = vmatpush1.bf16.msra.mxu0 %v2784
        %3007 = vmatprep.subr.bf16.mxu0 0
        %3008 = vmatpush1.bf16.msra.mxu0 %v2785
        %3009 = vmatprep.subr.bf16.mxu0 0
        %3010 = vmatpush1.bf16.msra.mxu0 %v2786
        %3011 = vmatprep.subr.bf16.mxu0 0
        %3012 = vmatpush1.bf16.msra.mxu0 %v2787
        %3013 = vmatprep.subr.bf16.mxu0 0
        %3014 = vmatpush1.bf16.msra.mxu0 %v2788
        %3015 = vmatprep.subr.bf16.mxu0 0
        %3016 = vmatpush1.bf16.msra.mxu0 %v2789
        %3017 = vmatprep.subr.bf16.mxu0 0
        %3018 = vmatpush1.bf16.msra.mxu0 %v2790
        %3019 = vmatprep.subr.bf16.mxu0 0
        %3020 = vmatpush1.bf16.msra.mxu0 %v2791
        %3021 = vmatprep.subr.bf16.mxu0 0
        %3022 = vmatpush1.bf16.msra.mxu0 %v2792
        %3023 = vmatprep.subr.bf16.mxu0 0
        %3024 = vmatpush1.bf16.msra.mxu0 %v2793
        %3025 = vmatprep.subr.bf16.mxu0 0
        %3026 = vmatpush1.bf16.msra.mxu0 %v2794
        %3027 = vmatprep.subr.bf16.mxu0 0
        %3028 = vmatpush1.bf16.msra.mxu0 %v2795
        %3029 = vmatprep.subr.bf16.mxu0 0
        %3030 = vmatpush1.bf16.msra.mxu0 %v2796
        %3031 = vmatprep.mubr.bf16.mxu0 %v2638
        %3032 = vmatmul.mubr.bf16.gmra.mrb[0].mxu0 %v2637
        %v3033 = vpop.f32.mrb[0].mxu0
        %v3034 = vadd.f32 0.0, %v3033
        %v3035 = vpop.f32.mrb[0].mxu0
        %v3036 = vpop.f32.mrb[0].mxu0
        %v3037 = vadd.f32 0.0, %v3036
        %v3038 = vpop.f32.mrb[0].mxu0
        %3039 = vmatprep.mubr.bf16.mxu0 %v2641
        %3040 = vmatmul.mubr.bf16.gmra.mrb[0].mxu0 %v2640
        %v3041 = vpop.f32.mrb[0].mxu0
        %v3042 = vadd.f32 0.0, %v3041
        %v3043 = vpop.f32.mrb[0].mxu0
        %v3044 = vpop.f32.mrb[0].mxu0
        %v3045 = vadd.f32 0.0, %v3044
        %v3046 = vpop.f32.mrb[0].mxu0
        %3047 = vmatprep.mubr.bf16.mxu0 %v2644
        %3048 = vmatmul.mubr.bf16.gmra.mrb[0].mxu0 %v2643
        %v3049 = vpop.f32.mrb[0].mxu0
        %v3050 = vadd.f32 0.0, %v3049
        %v3051 = vpop.f32.mrb[0].mxu0
        %v3052 = vpop.f32.mrb[0].mxu0
        %v3053 = vadd.f32 0.0, %v3052
        %v3054 = vpop.f32.mrb[0].mxu0
        %3055 = vmatprep.mubr.bf16.mxu0 %v2647
        %3056 = vmatmul.mubr.bf16.gmra.mrb[0].mxu0 %v2646
        %v3057 = vpop.f32.mrb[0].mxu0
        %v3058 = vadd.f32 0.0, %v3057
        %v3059 = vpop.f32.mrb[0].mxu0
        %v3060 = vpop.f32.mrb[0].mxu0
        %v3061 = vadd.f32 0.0, %v3060
        %v3062 = vpop.f32.mrb[0].mxu0
        %3063 = vmatprep.mubr.bf16.mxu0 %v2650
        %3064 = vmatmul.mubr.bf16.gmra.mrb[0].mxu0 %v2649
        %v3065 = vpop.f32.mrb[0].mxu0
        %v3066 = vadd.f32 0.0, %v3065
        %v3067 = vpop.f32.mrb[0].mxu0
        %v3068 = vpop.f32.mrb[0].mxu0
        %v3069 = vadd.f32 0.0, %v3068
        %v3070 = vpop.f32.mrb[0].mxu0
        %3071 = vmatprep.mubr.bf16.mxu0 %v2653
        %3072 = vmatmul.mubr.bf16.gmra.mrb[0].mxu0 %v2652
        %v3073 = vpop.f32.mrb[0].mxu0
        %v3074 = vadd.f32 0.0, %v3073
        %v3075 = vpop.f32.mrb[0].mxu0
        %v3076 = vpop.f32.mrb[0].mxu0
        %v3077 = vadd.f32 0.0, %v3076
        %v3078 = vpop.f32.mrb[0].mxu0
        %3079 = vmatprep.mubr.bf16.mxu0 %v2656
        %3080 = vmatmul.mubr.bf16.gmra.mrb[0].mxu0 %v2655
        %v3081 = vpop.f32.mrb[0].mxu0
        %v3082 = vadd.f32 0.0, %v3081
        %v3083 = vpop.f32.mrb[0].mxu0
        %v3084 = vpop.f32.mrb[0].mxu0
        %v3085 = vadd.f32 0.0, %v3084
        %v3086 = vpop.f32.mrb[0].mxu0
        %3087 = vmatprep.mubr.bf16.mxu0 %v2659
        %3088 = vmatmul.mubr.bf16.gmra.mrb[0].mxu0 %v2658
        %v3089 = vpop.f32.mrb[0].mxu0
        %v3090 = vadd.f32 0.0, %v3089
        %v3091 = vpop.f32.mrb[0].mxu0
        %v3092 = vpop.f32.mrb[0].mxu0
        %v3093 = vadd.f32 0.0, %v3092
        %v3094 = vpop.f32.mrb[0].mxu0
        %3095 = vdwg.mxu0
        %3096 = vmatprep.subr.bf16.mxu0 0
        %3097 = vmatpush1.bf16.msra.mxu0 %v2797
        %3098 = vmatprep.subr.bf16.mxu0 0
        %3099 = vmatpush1.bf16.msra.mxu0 %v2798
        %3100 = vmatprep.subr.bf16.mxu0 0
        %3101 = vmatpush1.bf16.msra.mxu0 %v2799
        %3102 = vmatprep.subr.bf16.mxu0 0
        %3103 = vmatpush1.bf16.msra.mxu0 %v2800
        %3104 = vmatprep.subr.bf16.mxu0 0
        %3105 = vmatpush1.bf16.msra.mxu0 %v2801
        %3106 = vmatprep.subr.bf16.mxu0 0
        %3107 = vmatpush1.bf16.msra.mxu0 %v2802
        %3108 = vmatprep.subr.bf16.mxu0 0
        %3109 = vmatpush1.bf16.msra.mxu0 %v2803
        %3110 = vmatprep.subr.bf16.mxu0 0
        %3111 = vmatpush1.bf16.msra.mxu0 %v2804
        %3112 = vmatprep.subr.bf16.mxu0 0
        %3113 = vmatpush1.bf16.msra.mxu0 0
        %3114 = vmatprep.subr.bf16.mxu0 0
        %3115 = vmatpush1.bf16.msra.mxu0 0
        %3116 = vmatprep.subr.bf16.mxu0 0
        %3117 = vmatpush1.bf16.msra.mxu0 0
        %3118 = vmatprep.subr.bf16.mxu0 0
        %3119 = vmatpush1.bf16.msra.mxu0 0
        %3120 = vmatprep.subr.bf16.mxu0 0
        %3121 = vmatpush1.bf16.msra.mxu0 0
        %3122 = vmatprep.subr.bf16.mxu0 0
        %3123 = vmatpush1.bf16.msra.mxu0 0
        %3124 = vmatprep.subr.bf16.mxu0 0
        %3125 = vmatpush1.bf16.msra.mxu0 0
        %3126 = vmatprep.subr.bf16.mxu0 0
        %3127 = vmatpush1.bf16.msra.mxu0 0
        %3128 = vmatprep.mubr.bf16.mxu0 0
        %3129 = vmatmul.mubr.bf16.gmra.mrb[0].mxu0 %v2639
        %v3130 = vpop.f32.mrb[0].mxu0
        %v3131 = vadd.f32 %v3034, %v3130
        %v3132 = vpop.f32.mrb[0].mxu0
        %v3133 = vpop.f32.mrb[0].mxu0
        %v3134 = vadd.f32 %v3037, %v3133
        %v3135 = vpop.f32.mrb[0].mxu0
        %3136 = vmatprep.mubr.bf16.mxu0 0
        %3137 = vmatmul.mubr.bf16.gmra.mrb[0].mxu0 %v2642
        %v3138 = vpop.f32.mrb[0].mxu0
        %v3139 = vadd.f32 %v3042, %v3138
        %v3140 = vpop.f32.mrb[0].mxu0
        %v3141 = vpop.f32.mrb[0].mxu0
        %v3142 = vadd.f32 %v3045, %v3141
        %v3143 = vpop.f32.mrb[0].mxu0
        %3144 = vmatprep.mubr.bf16.mxu0 0
        %3145 = vmatmul.mubr.bf16.gmra.mrb[0].mxu0 %v2645
        %v3146 = vpop.f32.mrb[0].mxu0
        %v3147 = vadd.f32 %v3050, %v3146
        %v3148 = vpop.f32.mrb[0].mxu0
        %v3149 = vpop.f32.mrb[0].mxu0
        %v3150 = vadd.f32 %v3053, %v3149
        %v3151 = vpop.f32.mrb[0].mxu0
        %3152 = vmatprep.mubr.bf16.mxu0 0
        %3153 = vmatmul.mubr.bf16.gmra.mrb[0].mxu0 %v2648
        %v3154 = vpop.f32.mrb[0].mxu0
        %v3155 = vadd.f32 %v3058, %v3154
        %v3156 = vpop.f32.mrb[0].mxu0
        %v3157 = vpop.f32.mrb[0].mxu0
        %v3158 = vadd.f32 %v3061, %v3157
        %v3159 = vpop.f32.mrb[0].mxu0
        %3160 = vmatprep.mubr.bf16.mxu0 0
        %3161 = vmatmul.mubr.bf16.gmra.mrb[0].mxu0 %v2651
        %v3162 = vpop.f32.mrb[0].mxu0
        %v3163 = vadd.f32 %v3066, %v3162
        %v3164 = vpop.f32.mrb[0].mxu0
        %v3165 = vpop.f32.mrb[0].mxu0
        %v3166 = vadd.f32 %v3069, %v3165
        %v3167 = vpop.f32.mrb[0].mxu0
        %3168 = vmatprep.mubr.bf16.mxu0 0
        %3169 = vmatmul.mubr.bf16.gmra.mrb[0].mxu0 %v2654
        %v3170 = vpop.f32.mrb[0].mxu0
        %v3171 = vadd.f32 %v3074, %v3170
        %v3172 = vpop.f32.mrb[0].mxu0
        %v3173 = vpop.f32.mrb[0].mxu0
        %v3174 = vadd.f32 %v3077, %v3173
        %v3175 = vpop.f32.mrb[0].mxu0
        %3176 = vmatprep.mubr.bf16.mxu0 0
        %3177 = vmatmul.mubr.bf16.gmra.mrb[0].mxu0 %v2657
        %v3178 = vpop.f32.mrb[0].mxu0
        %v3179 = vadd.f32 %v3082, %v3178
        %v3180 = vpop.f32.mrb[0].mxu0
        %v3181 = vpop.f32.mrb[0].mxu0
        %v3182 = vadd.f32 %v3085, %v3181
        %v3183 = vpop.f32.mrb[0].mxu0
        %3184 = vmatprep.mubr.bf16.mxu0 0
        %3185 = vmatmul.mubr.bf16.gmra.mrb[0].mxu0 %v2660
        %v3186 = vpop.f32.mrb[0].mxu0
        %v3187 = vadd.f32 %v3090, %v3186
        %v3188 = vpop.f32.mrb[0].mxu0
        %v3189 = vpop.f32.mrb[0].mxu0
        %v3190 = vadd.f32 %v3093, %v3189
        %v3191 = vpop.f32.mrb[0].mxu0
        %3192 = vdwg.mxu0
        %v3193 = vmul.f32 %v2937, %v1029
        %v3194 = vmul.f32 %v2940, %v1031
        %v3195 = vmul.f32 %v2945, %v1033
        %v3196 = vmul.f32 %v2948, %v1035
        %v3197 = vmul.f32 %v2953, %v1037
        %v3198 = vmul.f32 %v2956, %v1039
        %v3199 = vmul.f32 %v2961, %v1041
        %v3200 = vmul.f32 %v2964, %v1043
        %v3201 = vmul.f32 %v2969, %v1045
        %v3202 = vmul.f32 %v2972, %v1047
        %v3203 = vmul.f32 %v2977, %v1049
        %v3204 = vmul.f32 %v2980, %v1051
        %v3205 = vmul.f32 %v2985, %v1053
        %v3206 = vmul.f32 %v2988, %v1055
        %v3207 = vmul.f32 %v2993, %v1057
        %v3208 = vmul.f32 %v2996, %v1059
        %v3209 = vmul.f32 %v3131, %v1061
        %v3210 = vmul.f32 %v3134, %v1063
        %v3211 = vmul.f32 %v3139, %v1065
        %v3212 = vmul.f32 %v3142, %v1067
        %v3213 = vmul.f32 %v3147, %v1069
        %v3214 = vmul.f32 %v3150, %v1071
        %v3215 = vmul.f32 %v3155, %v1073
        %v3216 = vmul.f32 %v3158, %v1075
        %v3217 = vmul.f32 %v3163, %v1077
        %v3218 = vmul.f32 %v3166, %v1079
        %v3219 = vmul.f32 %v3171, %v1081
        %v3220 = vmul.f32 %v3174, %v1083
        %v3221 = vmul.f32 %v3179, %v1085
        %v3222 = vmul.f32 %v3182, %v1087
        %v3223 = vmul.f32 %v3187, %v1089
        %v3224 = vmul.f32 %v3190, %v1091
        %vm3225 = vcmask 523264
        %3226 = vst.msk [vmem:[%s262] sm:$0xff] %vm3225, %v3193
        %3227 = vst.msk [vmem:[%s262 + $0x8] sm:$0xff] %vm3225, %v3194
        %3228 = vst.msk [vmem:[%s262 + $0x10] sm:$0xff] %vm3225, %v3195
        %3229 = vst.msk [vmem:[%s262 + $0x18] sm:$0xff] %vm3225, %v3196
        %3230 = vst.msk [vmem:[%s262 + $0x20] sm:$0xff] %vm3225, %v3197
        %3231 = vst.msk [vmem:[%s262 + $0x28] sm:$0xff] %vm3225, %v3198
        %3232 = vst.msk [vmem:[%s262 + $0x30] sm:$0xff] %vm3225, %v3199
        %3233 = vst.msk [vmem:[%s262 + $0x38] sm:$0xff] %vm3225, %v3200
        %3234 = vst.msk [vmem:[%s262 + $0x40] sm:$0xff] %vm3225, %v3201
        %3235 = vst.msk [vmem:[%s262 + $0x48] sm:$0xff] %vm3225, %v3202
        %3236 = vst.msk [vmem:[%s262 + $0x50] sm:$0xff] %vm3225, %v3203
        %3237 = vst.msk [vmem:[%s262 + $0x58] sm:$0xff] %vm3225, %v3204
        %3238 = vst.msk [vmem:[%s262 + $0x60] sm:$0xff] %vm3225, %v3205
        %3239 = vst.msk [vmem:[%s262 + $0x68] sm:$0xff] %vm3225, %v3206
        %3240 = vst.msk [vmem:[%s262 + $0x70] sm:$0xff] %vm3225, %v3207
        %3241 = vst.msk [vmem:[%s262 + $0x78] sm:$0xff] %vm3225, %v3208
        %3242 = vst.msk [vmem:[%s262 + $0x80] sm:$0xff] %vm3225, %v3209
        %3243 = vst.msk [vmem:[%s262 + $0x88] sm:$0xff] %vm3225, %v3210
        %3244 = vst.msk [vmem:[%s262 + $0x90] sm:$0xff] %vm3225, %v3211
        %3245 = vst.msk [vmem:[%s262 + $0x98] sm:$0xff] %vm3225, %v3212
        %3246 = vst.msk [vmem:[%s262 + $0xa0] sm:$0xff] %vm3225, %v3213
        %3247 = vst.msk [vmem:[%s262 + $0xa8] sm:$0xff] %vm3225, %v3214
        %3248 = vst.msk [vmem:[%s262 + $0xb0] sm:$0xff] %vm3225, %v3215
        %3249 = vst.msk [vmem:[%s262 + $0xb8] sm:$0xff] %vm3225, %v3216
        %3250 = vst.msk [vmem:[%s262 + $0xc0] sm:$0xff] %vm3225, %v3217
        %3251 = vst.msk [vmem:[%s262 + $0xc8] sm:$0xff] %vm3225, %v3218
        %3252 = vst.msk [vmem:[%s262 + $0xd0] sm:$0xff] %vm3225, %v3219
        %3253 = vst.msk [vmem:[%s262 + $0xd8] sm:$0xff] %vm3225, %v3220
        %3254 = vst.msk [vmem:[%s262 + $0xe0] sm:$0xff] %vm3225, %v3221
        %3255 = vst.msk [vmem:[%s262 + $0xe8] sm:$0xff] %vm3225, %v3222
        %3256 = vst.msk [vmem:[%s262 + $0xf0] sm:$0xff] %vm3225, %v3223
        %3257 = vst.msk [vmem:[%s262 + $0xf8] sm:$0xff] %vm3225, %v3224
        %s3258 = sand.u32 %s117, 1
        %s3259 = sand.u32 %s117, 1
        %s3260 = smul.addr %s3259, 256
        %s3261 = scalar_lea.vmem [#allocation8], %s3260
        // Predicated region
        $region41: #{_add_softmax_dropout_matmul_impl.1} parent=31 // pred_check
          %p3262 = pneg %p127
        $region42: #{_add_softmax_dropout_matmul_impl.1} parent=31 // pred_check_branch
          %3264 = sbr.rel (%p3262) target = $region44
        $region43: #{_add_softmax_dropout_matmul_impl.1} parent=31 // pred_region
          %s3265 = smul.u32 2, %s24
          %s3266 = smul.u32 16, %s25
          %s3267 = smul.addr %s3265, 48
          %s3268 = sadd.s32 %s3266, %s3267
          %s3269 = smul.addr %s3268, 8
          %s3270 = scalar_lea.vmem %s4, %s3269
          // Predicated region
          $region45: #{_add_softmax_dropout_matmul_impl.1} parent=43 // pred_check
            _
          $region46: #{_add_softmax_dropout_matmul_impl.1} parent=43 // pred_check_branch
            %3272 = sbr.rel (0) target = $region48
          $region47: #{_add_softmax_dropout_matmul_impl.1} parent=43 // pred_region
            // Predicated region
            $region49: #{_add_softmax_dropout_matmul_impl.1} parent=47 // pred_check
              _
            $region50: #{_add_softmax_dropout_matmul_impl.1} parent=47 // pred_check_branch
              %3274 = sbr.rel (0) target = $region52
            $region51: #{_add_softmax_dropout_matmul_impl.1} parent=47 // pred_region
              // Predicated region
              $region64: #{_add_softmax_dropout_matmul_impl.1} parent=51 // pred_check
                _
              $region65: #{_add_softmax_dropout_matmul_impl.1} parent=51 // pred_check_branch
                %3351 = sbr.rel (0) target = $region67
              $region66: #{_add_softmax_dropout_matmul_impl.1} parent=51 // pred_region
                loop: start=0, step=1, limit=1
                $region68: #{_add_softmax_dropout_matmul_impl.1} parent=66 // loop_pre_header
                  _
                $region69: #{_add_softmax_dropout_matmul_impl.1} parent=66 // loop_header
                  %s3353 = sphi 0, %s3357
                  %p3354 = scmp.ge.s32.totalorder %s3353, 1
                  %s3358 = sphi %s3261, %s3261
                  %s3359 = sphi %s3270, %s3270
                $region70: #{_add_softmax_dropout_matmul_impl.1} parent=66 // loop_header_branch
                  %3356 = sbr.rel (%p3354) target = $region74
                $region71: #{_add_softmax_dropout_matmul_impl.1} parent=66 // loop_body
                  %v3360 = vld [vmem:[%s3358] sm:$0xff]
                  %3361 = vst [vmem:[%s3359] sm:$0xff] %v3360
                  %v3362 = vld [vmem:[%s3358 + $0x8] sm:$0xff]
                  %3363 = vst [vmem:[%s3359 + $0x8] sm:$0xff] %v3362
                  %v3364 = vld [vmem:[%s3358 + $0x10] sm:$0xff]
                  %3365 = vst [vmem:[%s3359 + $0x10] sm:$0xff] %v3364
                  %v3366 = vld [vmem:[%s3358 + $0x18] sm:$0xff]
                  %3367 = vst [vmem:[%s3359 + $0x18] sm:$0xff] %v3366
                  %v3368 = vld [vmem:[%s3358 + $0x20] sm:$0xff]
                  %3369 = vst [vmem:[%s3359 + $0x20] sm:$0xff] %v3368
                  %v3370 = vld [vmem:[%s3358 + $0x28] sm:$0xff]
                  %3371 = vst [vmem:[%s3359 + $0x28] sm:$0xff] %v3370
                  %v3372 = vld [vmem:[%s3358 + $0x30] sm:$0xff]
                  %3373 = vst [vmem:[%s3359 + $0x30] sm:$0xff] %v3372
                  %v3374 = vld [vmem:[%s3358 + $0x38] sm:$0xff]
                  %3375 = vst [vmem:[%s3359 + $0x38] sm:$0xff] %v3374
                  %v3376 = vld [vmem:[%s3358 + $0x40] sm:$0xff]
                  %3377 = vst [vmem:[%s3359 + $0x40] sm:$0xff] %v3376
                  %v3378 = vld [vmem:[%s3358 + $0x48] sm:$0xff]
                  %3379 = vst [vmem:[%s3359 + $0x48] sm:$0xff] %v3378
                  %v3380 = vld [vmem:[%s3358 + $0x50] sm:$0xff]
                  %3381 = vst [vmem:[%s3359 + $0x50] sm:$0xff] %v3380
                  %v3382 = vld [vmem:[%s3358 + $0x58] sm:$0xff]
                  %3383 = vst [vmem:[%s3359 + $0x58] sm:$0xff] %v3382
                  %v3384 = vld [vmem:[%s3358 + $0x60] sm:$0xff]
                  %3385 = vst [vmem:[%s3359 + $0x60] sm:$0xff] %v3384
                  %v3386 = vld [vmem:[%s3358 + $0x68] sm:$0xff]
                  %3387 = vst [vmem:[%s3359 + $0x68] sm:$0xff] %v3386
                  %v3388 = vld [vmem:[%s3358 + $0x70] sm:$0xff]
                  %3389 = vst [vmem:[%s3359 + $0x70] sm:$0xff] %v3388
                  %v3390 = vld [vmem:[%s3358 + $0x78] sm:$0xff]
                  %3391 = vst [vmem:[%s3359 + $0x78] sm:$0xff] %v3390
                  %v3392 = vld [vmem:[%s3358 + $0x80] sm:$0xff]
                  %3393 = vst [vmem:[%s3359 + $0x180] sm:$0xff] %v3392
                  %v3394 = vld [vmem:[%s3358 + $0x88] sm:$0xff]
                  %3395 = vst [vmem:[%s3359 + $0x188] sm:$0xff] %v3394
                  %v3396 = vld [vmem:[%s3358 + $0x90] sm:$0xff]
                  %3397 = vst [vmem:[%s3359 + $0x190] sm:$0xff] %v3396
                  %v3398 = vld [vmem:[%s3358 + $0x98] sm:$0xff]
                  %3399 = vst [vmem:[%s3359 + $0x198] sm:$0xff] %v3398
                  %v3400 = vld [vmem:[%s3358 + $0xa0] sm:$0xff]
                  %3401 = vst [vmem:[%s3359 + $0x1a0] sm:$0xff] %v3400
                  %v3402 = vld [vmem:[%s3358 + $0xa8] sm:$0xff]
                  %3403 = vst [vmem:[%s3359 + $0x1a8] sm:$0xff] %v3402
                  %v3404 = vld [vmem:[%s3358 + $0xb0] sm:$0xff]
                  %3405 = vst [vmem:[%s3359 + $0x1b0] sm:$0xff] %v3404
                  %v3406 = vld [vmem:[%s3358 + $0xb8] sm:$0xff]
                  %3407 = vst [vmem:[%s3359 + $0x1b8] sm:$0xff] %v3406
                  %v3408 = vld [vmem:[%s3358 + $0xc0] sm:$0xff]
                  %3409 = vst [vmem:[%s3359 + $0x1c0] sm:$0xff] %v3408
                  %v3410 = vld [vmem:[%s3358 + $0xc8] sm:$0xff]
                  %3411 = vst [vmem:[%s3359 + $0x1c8] sm:$0xff] %v3410
                  %v3412 = vld [vmem:[%s3358 + $0xd0] sm:$0xff]
                  %3413 = vst [vmem:[%s3359 + $0x1d0] sm:$0xff] %v3412
                  %v3414 = vld [vmem:[%s3358 + $0xd8] sm:$0xff]
                  %3415 = vst [vmem:[%s3359 + $0x1d8] sm:$0xff] %v3414
                  %v3416 = vld [vmem:[%s3358 + $0xe0] sm:$0xff]
                  %3417 = vst [vmem:[%s3359 + $0x1e0] sm:$0xff] %v3416
                  %v3418 = vld [vmem:[%s3358 + $0xe8] sm:$0xff]
                  %3419 = vst [vmem:[%s3359 + $0x1e8] sm:$0xff] %v3418
                  %v3420 = vld [vmem:[%s3358 + $0xf0] sm:$0xff]
                  %3421 = vst [vmem:[%s3359 + $0x1f0] sm:$0xff] %v3420
                  %v3422 = vld [vmem:[%s3358 + $0xf8] sm:$0xff]
                  %3423 = vst [vmem:[%s3359 + $0x1f8] sm:$0xff] %v3422
                $region72: #{_add_softmax_dropout_matmul_impl.1} parent=66 // loop_footer
                  %s3357 = sadd.s32 1, %s3353
                $region73: #{_add_softmax_dropout_matmul_impl.1} parent=66 // loop_footer_branch
                  %3352 = sbr.rel target = $region69
                $region74: #{_add_softmax_dropout_matmul_impl.1} parent=66 // loop_exit
                  _
              $region67: #{_add_softmax_dropout_matmul_impl.1} parent=51 // pred_fallthru
                _
              // Predicated region
              $region75: #{_add_softmax_dropout_matmul_impl.1} parent=51 // pred_check
                _
              $region76: #{_add_softmax_dropout_matmul_impl.1} parent=51 // pred_check_branch
                %3425 = sbr.rel target = $region78
              $region77: #{_add_softmax_dropout_matmul_impl.1} parent=51 // pred_region
                _
              $region78: #{_add_softmax_dropout_matmul_impl.1} parent=51 // pred_fallthru
                _
            $region52: #{_add_softmax_dropout_matmul_impl.1} parent=47 // pred_fallthru
              _
            // Predicated region
            $region53: #{_add_softmax_dropout_matmul_impl.1} parent=47 // pred_check
              _
            $region54: #{_add_softmax_dropout_matmul_impl.1} parent=47 // pred_check_branch
              %3276 = sbr.rel target = $region56
            $region55: #{_add_softmax_dropout_matmul_impl.1} parent=47 // pred_region
              loop: start=0, step=1, limit=1
              $region57: #{_add_softmax_dropout_matmul_impl.1} parent=55 // loop_pre_header
                _
              $region58: #{_add_softmax_dropout_matmul_impl.1} parent=55 // loop_header
                %s3279 = sphi 0, %s3283
                %p3280 = scmp.ge.s32.totalorder %s3279, 1
                %s3284 = sphi %s3261, %s3261
                %s3285 = sphi %s3270, %s3270
              $region59: #{_add_softmax_dropout_matmul_impl.1} parent=55 // loop_header_branch
                %3282 = sbr.rel (%p3280) target = $region63
              $region60: #{_add_softmax_dropout_matmul_impl.1} parent=55 // loop_body
                %v3286 = vld [vmem:[%s3284] sm:$0xff]
                %3287 = vst [vmem:[%s3285] sm:$0xff] %v3286
                %v3288 = vld [vmem:[%s3284 + $0x8] sm:$0xff]
                %3289 = vst [vmem:[%s3285 + $0x8] sm:$0xff] %v3288
                %v3290 = vld [vmem:[%s3284 + $0x10] sm:$0xff]
                %3291 = vst [vmem:[%s3285 + $0x10] sm:$0xff] %v3290
                %v3292 = vld [vmem:[%s3284 + $0x18] sm:$0xff]
                %3293 = vst [vmem:[%s3285 + $0x18] sm:$0xff] %v3292
                %v3294 = vld [vmem:[%s3284 + $0x20] sm:$0xff]
                %3295 = vst [vmem:[%s3285 + $0x20] sm:$0xff] %v3294
                %v3296 = vld [vmem:[%s3284 + $0x28] sm:$0xff]
                %3297 = vst [vmem:[%s3285 + $0x28] sm:$0xff] %v3296
                %v3298 = vld [vmem:[%s3284 + $0x30] sm:$0xff]
                %3299 = vst [vmem:[%s3285 + $0x30] sm:$0xff] %v3298
                %v3300 = vld [vmem:[%s3284 + $0x38] sm:$0xff]
                %3301 = vst [vmem:[%s3285 + $0x38] sm:$0xff] %v3300
                %v3302 = vld [vmem:[%s3284 + $0x40] sm:$0xff]
                %3303 = vst [vmem:[%s3285 + $0x40] sm:$0xff] %v3302
                %v3304 = vld [vmem:[%s3284 + $0x48] sm:$0xff]
                %3305 = vst [vmem:[%s3285 + $0x48] sm:$0xff] %v3304
                %v3306 = vld [vmem:[%s3284 + $0x50] sm:$0xff]
                %3307 = vst [vmem:[%s3285 + $0x50] sm:$0xff] %v3306
                %v3308 = vld [vmem:[%s3284 + $0x58] sm:$0xff]
                %3309 = vst [vmem:[%s3285 + $0x58] sm:$0xff] %v3308
                %v3310 = vld [vmem:[%s3284 + $0x60] sm:$0xff]
                %3311 = vst [vmem:[%s3285 + $0x60] sm:$0xff] %v3310
                %v3312 = vld [vmem:[%s3284 + $0x68] sm:$0xff]
                %3313 = vst [vmem:[%s3285 + $0x68] sm:$0xff] %v3312
                %v3314 = vld [vmem:[%s3284 + $0x70] sm:$0xff]
                %3315 = vst [vmem:[%s3285 + $0x70] sm:$0xff] %v3314
                %v3316 = vld [vmem:[%s3284 + $0x78] sm:$0xff]
                %3317 = vst [vmem:[%s3285 + $0x78] sm:$0xff] %v3316
                %v3318 = vld [vmem:[%s3284 + $0x80] sm:$0xff]
                %3319 = vst [vmem:[%s3285 + $0x180] sm:$0xff] %v3318
                %v3320 = vld [vmem:[%s3284 + $0x88] sm:$0xff]
                %3321 = vst [vmem:[%s3285 + $0x188] sm:$0xff] %v3320
                %v3322 = vld [vmem:[%s3284 + $0x90] sm:$0xff]
                %3323 = vst [vmem:[%s3285 + $0x190] sm:$0xff] %v3322
                %v3324 = vld [vmem:[%s3284 + $0x98] sm:$0xff]
                %3325 = vst [vmem:[%s3285 + $0x198] sm:$0xff] %v3324
                %v3326 = vld [vmem:[%s3284 + $0xa0] sm:$0xff]
                %3327 = vst [vmem:[%s3285 + $0x1a0] sm:$0xff] %v3326
                %v3328 = vld [vmem:[%s3284 + $0xa8] sm:$0xff]
                %3329 = vst [vmem:[%s3285 + $0x1a8] sm:$0xff] %v3328
                %v3330 = vld [vmem:[%s3284 + $0xb0] sm:$0xff]
                %3331 = vst [vmem:[%s3285 + $0x1b0] sm:$0xff] %v3330
                %v3332 = vld [vmem:[%s3284 + $0xb8] sm:$0xff]
                %3333 = vst [vmem:[%s3285 + $0x1b8] sm:$0xff] %v3332
                %v3334 = vld [vmem:[%s3284 + $0xc0] sm:$0xff]
                %3335 = vst [vmem:[%s3285 + $0x1c0] sm:$0xff] %v3334
                %v3336 = vld [vmem:[%s3284 + $0xc8] sm:$0xff]
                %3337 = vst [vmem:[%s3285 + $0x1c8] sm:$0xff] %v3336
                %v3338 = vld [vmem:[%s3284 + $0xd0] sm:$0xff]
                %3339 = vst [vmem:[%s3285 + $0x1d0] sm:$0xff] %v3338
                %v3340 = vld [vmem:[%s3284 + $0xd8] sm:$0xff]
                %3341 = vst [vmem:[%s3285 + $0x1d8] sm:$0xff] %v3340
                %v3342 = vld [vmem:[%s3284 + $0xe0] sm:$0xff]
                %3343 = vst [vmem:[%s3285 + $0x1e0] sm:$0xff] %v3342
                %v3344 = vld [vmem:[%s3284 + $0xe8] sm:$0xff]
                %3345 = vst [vmem:[%s3285 + $0x1e8] sm:$0xff] %v3344
                %v3346 = vld [vmem:[%s3284 + $0xf0] sm:$0xff]
                %3347 = vst [vmem:[%s3285 + $0x1f0] sm:$0xff] %v3346
                %v3348 = vld [vmem:[%s3284 + $0xf8] sm:$0xff]
                %3349 = vst [vmem:[%s3285 + $0x1f8] sm:$0xff] %v3348
              $region61: #{_add_softmax_dropout_matmul_impl.1} parent=55 // loop_footer
                %s3283 = sadd.s32 1, %s3279
              $region62: #{_add_softmax_dropout_matmul_impl.1} parent=55 // loop_footer_branch
                %3278 = sbr.rel target = $region58
              $region63: #{_add_softmax_dropout_matmul_impl.1} parent=55 // loop_exit
                _
            $region56: #{_add_softmax_dropout_matmul_impl.1} parent=47 // pred_fallthru
              _
          $region48: #{_add_softmax_dropout_matmul_impl.1} parent=43 // pred_fallthru
            _
          %3426 = vnop
        $region44: #{_add_softmax_dropout_matmul_impl.1} parent=31 // pred_fallthru
          _
      $region32: #{_add_softmax_dropout_matmul_impl.1} parent=5 // pred_fallthru
        _
      %p3427 = scmp.le.s32.totalorder 2, %s15
      // Predicated region
      $region79: #{_add_softmax_dropout_matmul_impl.1} parent=5 // pred_check
        %p3428 = pneg %p3427
      $region80: #{_add_softmax_dropout_matmul_impl.1} parent=5 // pred_check_branch
        %3430 = sbr.rel (%p3428) target = $region82
      $region81: #{_add_softmax_dropout_matmul_impl.1} parent=5 // pred_region
        %s3431 = ssub.s32 %s15, 2
        // Predicated region
        $region83: #{_add_softmax_dropout_matmul_impl.1} parent=81 // pred_check
          %p3432 = pneg %p133
        $region84: #{_add_softmax_dropout_matmul_impl.1} parent=81 // pred_check_branch
          %3434 = sbr.rel (%p3432) target = $region86
        $region85: #{_add_softmax_dropout_matmul_impl.1} parent=81 // pred_region
          %s3435 = sand.u32 %s118, 1
          %s3436 = sand.u32 %s118, 1
          %s3437 = smul.addr %s3436, 256
          %s3438 = scalar_lea.vmem [#allocation8], %s3437
        $region86: #{_add_softmax_dropout_matmul_impl.1} parent=81 // pred_fallthru
          _
      $region82: #{_add_softmax_dropout_matmul_impl.1} parent=5 // pred_fallthru
        _
    $region6: #{_add_softmax_dropout_matmul_impl.1} parent=1 // loop_footer
      %s19 = sadd.s32 1, %s15
    $region7: #{_add_softmax_dropout_matmul_impl.1} parent=1 // loop_footer_branch
      %14 = sbr.rel target = $region3
    $region8: #{_add_softmax_dropout_matmul_impl.1} parent=1 // loop_exit
      _
    %3439 = vsyncpa [#allocation5], 1
    %s3440 = scalar_lea.sflag [#allocation5], 1
    %3441 = vsyncpa %s3440, 1
    %3442 = vsyncpa [#allocation7], 1
    %s3443 = scalar_lea.sflag [#allocation7], 1
    %3444 = vsyncpa %s3443, 1

</llo_original>
